<compile_context>
chip_gen: v7x
topology: tpu7x:2x2x1
jax: 0.10.0
libtpu: 0.0.40
codegen_flags: <defaults>
</compile_context>

<pallas_src>
import functools

import numpy as np
import jax
import jax.numpy as jnp
from jax.experimental import pallas as pl
from jax.experimental.pallas import tpu as pltpu


# ---------------------------------------------------------------------------
# Fused kernel: whole network for B batch elements, activations in VMEM.
# ---------------------------------------------------------------------------
def _wakey_fused_kernel(x_ref, w5_ref, b5_ref, wl_ref, bl_ref, m_ref,
                        o_ref, patches_ref, *, H, W, B, n_conv):
    """x_ref      : (1, Cf, B*HW)      f32   input (Cin zero-padded to Cf),
                                             batch tile folded onto lanes
       w5_ref     : (n_conv, Cf, 9*Cf) bf16  packed 3x3 weights (tap-major K)
       b5_ref     : (n_conv, Cf, 1)    f32   3x3 biases
       wl_ref     : (NC, Cf)           bf16  1x1 "last" weights
       bl_ref     : (NC, 1)            f32   "last" bias
       m_ref      : (9, 1, B*HW)       f32   0/1 border masks per 3x3 tap
       o_ref      : (1, NC, B*HW)      f32   output logits
       patches_ref: (9*Cf, B*HW)       bf16  VMEM scratch for im2col patches
    """
    HW = H * W
    lanes = B * HW
    Cf = x_ref.shape[1]

    # Hoist mask broadcasts out of the layer loop: 8 broadcasts total
    # instead of 5*8 (JAX does not CSE broadcast_in_dim).
    bmask = {}
    for t in range(9):
        if t != 4:                                   # centre tap needs no mask
            bmask[t] = jnp.broadcast_to(m_ref[t], (Cf, lanes))

    act = x_ref[0]                                   # (Cf, lanes) f32

    for l in range(n_conv):                          # unrolled 5x conv3x3+ReLU
        # im2col: store each shifted+masked tap straight into the bf16
        # patches scratch (one tap live at a time, bf16 store bytes).
        for ky in range(3):
            for kx in range(3):
                t = ky * 3 + kx
                s = (ky - 1) * W + (kx - 1)          # flat lane shift for tap
                if s == 0:
                    col = act                        # centre tap: no shift/mask
                else:
                    # col[p] = act[(p + s) mod lanes]; lanes that wrapped over
                    # an image border (incl. into the neighbouring batch image
                    # on the lane axis) are zeroed by the precomputed mask.
                    shifted = pltpu.roll(act, shift=(-s) % lanes, axis=1)
                    col = shifted * bmask[t]
                patches_ref[pl.ds(t * Cf, Cf), :] = col.astype(jnp.bfloat16)
        # One (Cf, 9*Cf) @ (9*Cf, lanes) MXU matmul per layer,
        # bf16 operands, f32 accumulation, lane-dense N.
        acc = jnp.dot(w5_ref[l], patches_ref[...],
                      preferred_element_type=jnp.float32)
        act = jnp.maximum(acc + b5_ref[l], 0.0)      # bias + ReLU in f32

    # Final 1x1 conv, no ReLU: (NC, Cf) @ (Cf, lanes).
    out = jnp.dot(wl_ref[...], act.astype(jnp.bfloat16),
                  preferred_element_type=jnp.float32) + bl_ref[...]
    o_ref[0] = out.astype(o_ref.dtype)


# ---------------------------------------------------------------------------
# One-time packing (runs at model-load time, NOT per forward call).
# ---------------------------------------------------------------------------
_CONV_NAMES = ("conv1", "conv2", "conv3", "conv4", "conv5")


def _tap_masks(H, W):
    """(9, 1, H*W) f32 masks: 1 where the shifted tap stays inside the image."""
    y = np.arange(H)[:, None]
    x = np.arange(W)[None, :]
    masks = []
    for ky in range(3):
        for kx in range(3):
            dy, dx = ky - 1, kx - 1
            ok = ((y + dy >= 0) & (y + dy < H) & (x + dx >= 0) & (x + dx < W))
            masks.append(ok.astype(np.float32).reshape(1, H * W))
    return jnp.asarray(np.stack(masks, axis=0))


def pack_wakey_params(params, H, W):
    """Pack PyTorch-layout (Cout, Cin, KH, KW) weights for the fused kernel."""
    num_filters = params["conv2"][0].shape[1]
    w_list, b_list = [], []
    for name in _CONV_NAMES:
        w, b = params[name]                          # (Cout, Cin, 3, 3), (Cout,)
        cout, cin, kh, kw = w.shape
        assert cin <= num_filters, (
            f"{name}: Cin={cin} > num_filters={num_filters} not supported")
        if cin < num_filters:                        # conv1: zero-pad Cin -> Cf
            w = jnp.pad(w, ((0, 0), (0, num_filters - cin), (0, 0), (0, 0)))
        # K ordering (tap-major, channel-minor) matches the kernel's im2col.
        wp = jnp.transpose(w, (0, 2, 3, 1)).reshape(cout, kh * kw * num_filters)
        w_list.append(wp)
        b_list.append(b)
    wl, bl = params["last"]                          # (NC, Cf, 1, 1), (NC,)
    return {
        "w5": jnp.stack(w_list).astype(jnp.bfloat16),             # (5, Cf, 9Cf)
        "b5": jnp.stack(b_list)[..., None].astype(jnp.float32),   # (5, Cf, 1)
        "wl": wl.reshape(wl.shape[0], wl.shape[1]).astype(jnp.bfloat16),
        "bl": bl[:, None].astype(jnp.float32),                    # (NC, 1)
        "masks": _tap_masks(H, W),                                # (9, 1, HW)
    }


def _choose_batch_tile(N):
    """Largest B in {8,4,2} dividing N while keeping >= 2 grid steps
    (so v7x's two TensorCores both get work); else 1."""
    for b in (8, 4, 2):
        if N % b == 0 and N // b >= 2:
            return b
    return 1


# ---------------------------------------------------------------------------
# Jitted forward (takes pre-packed params).
# ---------------------------------------------------------------------------
@jax.jit
def wakey_fcn_forward(packed, x_nchw):
    """Full Wakey_FCN forward. Takes/returns NCHW, like the PyTorch module."""
    w5, b5, wl, bl = packed["w5"], packed["b5"], packed["wl"], packed["bl"]
    masks = packed["masks"]
    N, Cin, H, W = x_nchw.shape
    HW = H * W
    n_conv, Cf, _ = w5.shape
    NC = wl.shape[0]
    assert masks.shape[-1] == HW, "packed masks were built for different H, W"

    B = _choose_batch_tile(N)
    G = N // B
    lanes = B * HW

    # NCHW -> (G, Cf, B*HW): spatial (and the batch tile) on the lane axis;
    # zero-pad input channels up to num_filters so all 3x3 layers are uniform.
    x = x_nchw.reshape(N, Cin, HW)
    if Cin < Cf:
        x = jnp.pad(x, ((0, 0), (0, Cf - Cin), (0, 0)))
    x = x.reshape(G, B, Cf, HW).transpose(0, 2, 1, 3).reshape(G, Cf, lanes)

    masks_b = jnp.tile(masks, (1, 1, B))             # (9, 1, B*HW)

    kernel = functools.partial(_wakey_fused_kernel, H=H, W=W, B=B,
                               n_conv=n_conv)

    flops = 2 * N * HW * Cf * (n_conv * 9 * Cf + NC)
    bytes_accessed = (x.size * 4 + w5.size * 2 + b5.size * 4 + wl.size * 2 +
                      bl.size * 4 + masks_b.size * 4 + N * NC * HW * 4)

    out = pl.pallas_call(
        kernel,
        out_shape=jax.ShapeDtypeStruct((G, NC, lanes), jnp.float32),
        grid=(G,),
        in_specs=[
            pl.BlockSpec((1, Cf, lanes), lambda g: (g, 0, 0)),           # x
            pl.BlockSpec((n_conv, Cf, 9 * Cf), lambda g: (0, 0, 0)),     # w5
            pl.BlockSpec((n_conv, Cf, 1), lambda g: (0, 0, 0)),          # b5
            pl.BlockSpec((NC, Cf), lambda g: (0, 0)),                    # w_last
            pl.BlockSpec((NC, 1), lambda g: (0, 0)),                     # b_last
            pl.BlockSpec((9, 1, lanes), lambda g: (0, 0, 0)),            # masks
        ],
        out_specs=pl.BlockSpec((1, NC, lanes), lambda g: (g, 0, 0)),
        scratch_shapes=[pltpu.VMEM((9 * Cf, lanes), jnp.bfloat16)],      # patches
        compiler_params=pltpu.CompilerParams(
            dimension_semantics=("parallel",)),
        cost_estimate=pl.CostEstimate(flops=flops, transcendentals=0,
                                      bytes_accessed=bytes_accessed),
    )(x, w5, b5, wl, bl, masks_b)

    # (G, NC, B*HW) -> NCHW
    out = out.reshape(G, NC, B, HW).transpose(0, 2, 1, 3)
    return out.reshape(N, NC, H, W)


# ---------------------------------------------------------------------------
# Parameter init (deterministic, PyTorch-like uniform(-1/sqrt(fan_in), ...)).
# ---------------------------------------------------------------------------
def _init_conv(key, cout, cin, kh, kw):
    k_w, k_b = jax.random.split(key)
    bound = float(1.0 / np.sqrt(cin * kh * kw))
    w = jax.random.uniform(k_w, (cout, cin, kh, kw), jnp.float32, -bound, bound)
    b = jax.random.uniform(k_b, (cout,), jnp.float32, -bound, bound)
    return w, b


def init_wakey_fcn_params(key, num_input_channels, num_output_classes,
                          num_filters):
    keys = jax.random.split(key, 6)
    return {
        "conv1": _init_conv(keys[0], num_filters, num_input_channels, 3, 3),
        "conv2": _init_conv(keys[1], num_filters, num_filters, 3, 3),
        "conv3": _init_conv(keys[2], num_filters, num_filters, 3, 3),
        "conv4": _init_conv(keys[3], num_filters, num_filters, 3, 3),
        "conv5": _init_conv(keys[4], num_filters, num_filters, 3, 3),
        "last":  _init_conv(keys[5], num_output_classes, num_filters, 1, 1),
    }


# ---------------------------------------------------------------------------
# Pure-JAX reference (lax conv, NCHW). Inputs/weights are rounded to bf16
# before each conv (f32 accumulation) to mirror the kernel's bf16 MXU matmuls.
# ---------------------------------------------------------------------------
def wakey_fcn_reference(params, x_nchw):
    def conv(x, w, b, pad, relu):
        xq = x.astype(jnp.bfloat16).astype(jnp.float32)
        wq = w.astype(jnp.bfloat16).astype(jnp.float32)
        y = jax.lax.conv_general_dilated(
            xq, wq, window_strides=(1, 1),
            padding=((pad, pad), (pad, pad)),
            dimension_numbers=("NCHW", "OIHW", "NCHW"),
            precision=jax.lax.Precision.HIGHEST)
        y = y + b[None, :, None, None]
        return jnp.maximum(y, 0.0) if relu else y

    x = x_nchw
    for name in _CONV_NAMES:
        w, b = params[name]
        x = conv(x, w, b, 1, True)
    w, b = params["last"]
    return conv(x, w, b, 0, False)


if __name__ == "__main__":
    # Small shapes: batch=2, in-channels=4, spatial=16x16,
    # num_filters=32, num_output_classes=3.
    N, C_IN, H, W = 2, 4, 16, 16
    NUM_FILTERS = 32
    NUM_CLASSES = 3

    key = jax.random.PRNGKey(0)
    k_params, k_x = jax.random.split(key)

    params = init_wakey_fcn_params(k_params, C_IN, NUM_CLASSES, NUM_FILTERS)
    x = jax.random.normal(k_x, (N, C_IN, H, W), jnp.float32)

    packed = pack_wakey_params(params, H, W)         # once, outside the jit

    out = jax.block_until_ready(wakey_fcn_forward(packed, x))
    assert out.shape == (N, NUM_CLASSES, H, W), out.shape

    ref = jax.block_until_ready(wakey_fcn_reference(params, x))
    max_err = float(jnp.max(jnp.abs(out - ref)))
    assert jnp.allclose(out, ref, rtol=1e-3, atol=1e-4), max_err

    print("KERNEL_OK")
</pallas_src>

<mosaic_0001>
module attributes {stable_mosaic.version = 11 : i64} {
  func.func @_wakey_fused_kernel(%arg0: i32, %arg1: memref<1x32x256xf32, #tpu.memory_space<vmem>>, %arg2: memref<5x32x288xbf16, #tpu.memory_space<vmem>>, %arg3: memref<5x32x1xf32, #tpu.memory_space<vmem>>, %arg4: memref<3x32xbf16, #tpu.memory_space<vmem>>, %arg5: memref<3x1xf32, #tpu.memory_space<vmem>>, %arg6: memref<9x1x256xf32, #tpu.memory_space<vmem>>, %arg7: memref<1x3x256xf32, #tpu.memory_space<vmem>>, %arg8: memref<288x256xbf16, #tpu.memory_space<vmem>>) attributes {dimension_semantics = [#tpu.dimension_semantics<parallel>], iteration_bounds = array<i64: 2>, scalar_prefetch = 0 : i64, scratch_operands = 1 : i64, tpu.core_type = #tpu.core_type<tc>, window_params = [{transform_indices = @transform_0, window_bounds = array<i64: 1, 32, 256>}, {pipeline_mode = #tpu.pipeline_mode<synchronous>, transform_indices = @transform_1, window_bounds = array<i64: 5, 32, 288>}, {pipeline_mode = #tpu.pipeline_mode<synchronous>, transform_indices = @transform_2, window_bounds = array<i64: 5, 32, 1>}, {pipeline_mode = #tpu.pipeline_mode<synchronous>, transform_indices = @transform_3, window_bounds = array<i64: 3, 32>}, {pipeline_mode = #tpu.pipeline_mode<synchronous>, transform_indices = @transform_4, window_bounds = array<i64: 3, 1>}, {pipeline_mode = #tpu.pipeline_mode<synchronous>, transform_indices = @transform_5, window_bounds = array<i64: 9, 1, 256>}, {transform_indices = @transform_6, window_bounds = array<i64: 1, 3, 256>}]} {
    %c0 = arith.constant 0 : index
    %c0_0 = arith.constant 0 : index
    %c0_1 = arith.constant 0 : index
    %0 = vector.load %arg6[%c0, %c0_0, %c0_1] : memref<9x1x256xf32, #tpu.memory_space<vmem>>, vector<1x1x256xf32>
    %1 = vector.shape_cast %0 : vector<1x1x256xf32> to vector<1x256xf32>
    %2 = vector.shape_cast %1 : vector<1x256xf32> to vector<1x256xf32>
    %3 = vector.broadcast %2 : vector<1x256xf32> to vector<32x256xf32>
    %c1 = arith.constant 1 : index
    %c0_2 = arith.constant 0 : index
    %c0_3 = arith.constant 0 : index
    %4 = vector.load %arg6[%c1, %c0_2, %c0_3] : memref<9x1x256xf32, #tpu.memory_space<vmem>>, vector<1x1x256xf32>
    %5 = vector.shape_cast %4 : vector<1x1x256xf32> to vector<1x256xf32>
    %6 = vector.shape_cast %5 : vector<1x256xf32> to vector<1x256xf32>
    %7 = vector.broadcast %6 : vector<1x256xf32> to vector<32x256xf32>
    %c2 = arith.constant 2 : index
    %c0_4 = arith.constant 0 : index
    %c0_5 = arith.constant 0 : index
    %8 = vector.load %arg6[%c2, %c0_4, %c0_5] : memref<9x1x256xf32, #tpu.memory_space<vmem>>, vector<1x1x256xf32>
    %9 = vector.shape_cast %8 : vector<1x1x256xf32> to vector<1x256xf32>
    %10 = vector.shape_cast %9 : vector<1x256xf32> to vector<1x256xf32>
    %11 = vector.broadcast %10 : vector<1x256xf32> to vector<32x256xf32>
    %c3 = arith.constant 3 : index
    %c0_6 = arith.constant 0 : index
    %c0_7 = arith.constant 0 : index
    %12 = vector.load %arg6[%c3, %c0_6, %c0_7] : memref<9x1x256xf32, #tpu.memory_space<vmem>>, vector<1x1x256xf32>
    %13 = vector.shape_cast %12 : vector<1x1x256xf32> to vector<1x256xf32>
    %14 = vector.shape_cast %13 : vector<1x256xf32> to vector<1x256xf32>
    %15 = vector.broadcast %14 : vector<1x256xf32> to vector<32x256xf32>
    %c5 = arith.constant 5 : index
    %c0_8 = arith.constant 0 : index
    %c0_9 = arith.constant 0 : index
    %16 = vector.load %arg6[%c5, %c0_8, %c0_9] : memref<9x1x256xf32, #tpu.memory_space<vmem>>, vector<1x1x256xf32>
    %17 = vector.shape_cast %16 : vector<1x1x256xf32> to vector<1x256xf32>
    %18 = vector.shape_cast %17 : vector<1x256xf32> to vector<1x256xf32>
    %19 = vector.broadcast %18 : vector<1x256xf32> to vector<32x256xf32>
    %c6 = arith.constant 6 : index
    %c0_10 = arith.constant 0 : index
    %c0_11 = arith.constant 0 : index
    %20 = vector.load %arg6[%c6, %c0_10, %c0_11] : memref<9x1x256xf32, #tpu.memory_space<vmem>>, vector<1x1x256xf32>
    %21 = vector.shape_cast %20 : vector<1x1x256xf32> to vector<1x256xf32>
    %22 = vector.shape_cast %21 : vector<1x256xf32> to vector<1x256xf32>
    %23 = vector.broadcast %22 : vector<1x256xf32> to vector<32x256xf32>
    %c7 = arith.constant 7 : index
    %c0_12 = arith.constant 0 : index
    %c0_13 = arith.constant 0 : index
    %24 = vector.load %arg6[%c7, %c0_12, %c0_13] : memref<9x1x256xf32, #tpu.memory_space<vmem>>, vector<1x1x256xf32>
    %25 = vector.shape_cast %24 : vector<1x1x256xf32> to vector<1x256xf32>
    %26 = vector.shape_cast %25 : vector<1x256xf32> to vector<1x256xf32>
    %27 = vector.broadcast %26 : vector<1x256xf32> to vector<32x256xf32>
    %c8 = arith.constant 8 : index
    %c0_14 = arith.constant 0 : index
    %c0_15 = arith.constant 0 : index
    %28 = vector.load %arg6[%c8, %c0_14, %c0_15] : memref<9x1x256xf32, #tpu.memory_space<vmem>>, vector<1x1x256xf32>
    %29 = vector.shape_cast %28 : vector<1x1x256xf32> to vector<1x256xf32>
    %30 = vector.shape_cast %29 : vector<1x256xf32> to vector<1x256xf32>
    %31 = vector.broadcast %30 : vector<1x256xf32> to vector<32x256xf32>
    %c0_16 = arith.constant 0 : index
    %c0_17 = arith.constant 0 : index
    %c0_18 = arith.constant 0 : index
    %32 = vector.load %arg1[%c0_16, %c0_17, %c0_18] : memref<1x32x256xf32, #tpu.memory_space<vmem>>, vector<1x32x256xf32>
    %33 = vector.shape_cast %32 : vector<1x32x256xf32> to vector<32x256xf32>
    %c17_i32 = arith.constant 17 : i32
    %34 = tpu.dynamic_rotate %33 by %c17_i32 dim 1 : vector<32x256xf32>, i32 -> vector<32x256xf32>
    %35 = arith.mulf %34, %3 : vector<32x256xf32>
    %36 = arith.truncf %35 : vector<32x256xf32> to vector<32x256xbf16>
    %c0_19 = arith.constant 0 : index
    %c0_20 = arith.constant 0 : index
    %37 = vector.load %arg8[%c0_19, %c0_20] : memref<288x256xbf16, #tpu.memory_space<vmem>>, vector<32x256xbf16>
    tpu.vector_store %arg8[%c0_19, %c0_20], %36 {strides = array<i32>} : memref<288x256xbf16, #tpu.memory_space<vmem>>, vector<32x256xbf16>,
    %c16_i32 = arith.constant 16 : i32
    %38 = tpu.dynamic_rotate %33 by %c16_i32 dim 1 : vector<32x256xf32>, i32 -> vector<32x256xf32>
    %39 = arith.mulf %38, %7 : vector<32x256xf32>
    %40 = arith.truncf %39 : vector<32x256xf32> to vector<32x256xbf16>
    %c32 = arith.constant 32 : index
    %c0_21 = arith.constant 0 : index
    %41 = vector.load %arg8[%c32, %c0_21] : memref<288x256xbf16, #tpu.memory_space<vmem>>, vector<32x256xbf16>
    tpu.vector_store %arg8[%c32, %c0_21], %40 {strides = array<i32>} : memref<288x256xbf16, #tpu.memory_space<vmem>>, vector<32x256xbf16>,
    %c15_i32 = arith.constant 15 : i32
    %42 = tpu.dynamic_rotate %33 by %c15_i32 dim 1 : vector<32x256xf32>, i32 -> vector<32x256xf32>
    %43 = arith.mulf %42, %11 : vector<32x256xf32>
    %44 = arith.truncf %43 : vector<32x256xf32> to vector<32x256xbf16>
    %c64 = arith.constant 64 : index
    %c0_22 = arith.constant 0 : index
    %45 = vector.load %arg8[%c64, %c0_22] : memref<288x256xbf16, #tpu.memory_space<vmem>>, vector<32x256xbf16>
    tpu.vector_store %arg8[%c64, %c0_22], %44 {strides = array<i32>} : memref<288x256xbf16, #tpu.memory_space<vmem>>, vector<32x256xbf16>,
    %c1_i32 = arith.constant 1 : i32
    %46 = tpu.dynamic_rotate %33 by %c1_i32 dim 1 : vector<32x256xf32>, i32 -> vector<32x256xf32>
    %47 = arith.mulf %46, %15 : vector<32x256xf32>
    %48 = arith.truncf %47 : vector<32x256xf32> to vector<32x256xbf16>
    %c96 = arith.constant 96 : index
    %c0_23 = arith.constant 0 : index
    %49 = vector.load %arg8[%c96, %c0_23] : memref<288x256xbf16, #tpu.memory_space<vmem>>, vector<32x256xbf16>
    tpu.vector_store %arg8[%c96, %c0_23], %48 {strides = array<i32>} : memref<288x256xbf16, #tpu.memory_space<vmem>>, vector<32x256xbf16>,
    %50 = arith.truncf %33 : vector<32x256xf32> to vector<32x256xbf16>
    %c128 = arith.constant 128 : index
    %c0_24 = arith.constant 0 : index
    %51 = vector.load %arg8[%c128, %c0_24] : memref<288x256xbf16, #tpu.memory_space<vmem>>, vector<32x256xbf16>
    tpu.vector_store %arg8[%c128, %c0_24], %50 {strides = array<i32>} : memref<288x256xbf16, #tpu.memory_space<vmem>>, vector<32x256xbf16>,
    %c255_i32 = arith.constant 255 : i32
    %52 = tpu.dynamic_rotate %33 by %c255_i32 dim 1 : vector<32x256xf32>, i32 -> vector<32x256xf32>
    %53 = arith.mulf %52, %19 : vector<32x256xf32>
    %54 = arith.truncf %53 : vector<32x256xf32> to vector<32x256xbf16>
    %c160 = arith.constant 160 : index
    %c0_25 = arith.constant 0 : index
    %55 = vector.load %arg8[%c160, %c0_25] : memref<288x256xbf16, #tpu.memory_space<vmem>>, vector<32x256xbf16>
    tpu.vector_store %arg8[%c160, %c0_25], %54 {strides = array<i32>} : memref<288x256xbf16, #tpu.memory_space<vmem>>, vector<32x256xbf16>,
    %c241_i32 = arith.constant 241 : i32
    %56 = tpu.dynamic_rotate %33 by %c241_i32 dim 1 : vector<32x256xf32>, i32 -> vector<32x256xf32>
    %57 = arith.mulf %56, %23 : vector<32x256xf32>
    %58 = arith.truncf %57 : vector<32x256xf32> to vector<32x256xbf16>
    %c192 = arith.constant 192 : index
    %c0_26 = arith.constant 0 : index
    %59 = vector.load %arg8[%c192, %c0_26] : memref<288x256xbf16, #tpu.memory_space<vmem>>, vector<32x256xbf16>
    tpu.vector_store %arg8[%c192, %c0_26], %58 {strides = array<i32>} : memref<288x256xbf16, #tpu.memory_space<vmem>>, vector<32x256xbf16>,
    %c240_i32 = arith.constant 240 : i32
    %60 = tpu.dynamic_rotate %33 by %c240_i32 dim 1 : vector<32x256xf32>, i32 -> vector<32x256xf32>
    %61 = arith.mulf %60, %27 : vector<32x256xf32>
    %62 = arith.truncf %61 : vector<32x256xf32> to vector<32x256xbf16>
    %c224 = arith.constant 224 : index
    %c0_27 = arith.constant 0 : index
    %63 = vector.load %arg8[%c224, %c0_27] : memref<288x256xbf16, #tpu.memory_space<vmem>>, vector<32x256xbf16>
    tpu.vector_store %arg8[%c224, %c0_27], %62 {strides = array<i32>} : memref<288x256xbf16, #tpu.memory_space<vmem>>, vector<32x256xbf16>,
    %c239_i32 = arith.constant 239 : i32
    %64 = tpu.dynamic_rotate %33 by %c239_i32 dim 1 : vector<32x256xf32>, i32 -> vector<32x256xf32>
    %65 = arith.mulf %64, %31 : vector<32x256xf32>
    %66 = arith.truncf %65 : vector<32x256xf32> to vector<32x256xbf16>
    %c256 = arith.constant 256 : index
    %c0_28 = arith.constant 0 : index
    %67 = vector.load %arg8[%c256, %c0_28] : memref<288x256xbf16, #tpu.memory_space<vmem>>, vector<32x256xbf16>
    tpu.vector_store %arg8[%c256, %c0_28], %66 {strides = array<i32>} : memref<288x256xbf16, #tpu.memory_space<vmem>>, vector<32x256xbf16>,
    %c0_29 = arith.constant 0 : index
    %c0_30 = arith.constant 0 : index
    %c0_31 = arith.constant 0 : index
    %68 = vector.load %arg2[%c0_29, %c0_30, %c0_31] : memref<5x32x288xbf16, #tpu.memory_space<vmem>>, vector<1x32x288xbf16>
    %69 = vector.shape_cast %68 : vector<1x32x288xbf16> to vector<32x288xbf16>
    %c0_32 = arith.constant 0 : index
    %c0_33 = arith.constant 0 : index
    %70 = vector.load %arg8[%c0_32, %c0_33] : memref<288x256xbf16, #tpu.memory_space<vmem>>, vector<288x256xbf16>
    %cst = arith.constant dense<0.000000e+00> : vector<32x256xf32>
    %71 = tpu.matmul %69, %70, %cst {dimension_numbers = #tpu.dot_dimension_numbers<[1], [0], [0], [1], [0, 0, 1, 1], [], []>} : vector<32x288xbf16>, vector<288x256xbf16>, vector<32x256xf32> -> vector<32x256xf32>
    %c0_34 = arith.constant 0 : index
    %c0_35 = arith.constant 0 : index
    %c0_36 = arith.constant 0 : index
    %72 = vector.load %arg3[%c0_34, %c0_35, %c0_36] : memref<5x32x1xf32, #tpu.memory_space<vmem>>, vector<1x32x1xf32>
    %73 = vector.shape_cast %72 : vector<1x32x1xf32> to vector<32x1xf32>
    %74 = vector.broadcast %73 : vector<32x1xf32> to vector<32x256xf32>
    %75 = arith.addf %71, %74 : vector<32x256xf32>
    %cst_37 = arith.constant 0.000000e+00 : f32
    %76 = vector.broadcast %cst_37 : f32 to vector<32x256xf32>
    %77 = arith.maximumf %75, %76 : vector<32x256xf32>
    %c17_i32_38 = arith.constant 17 : i32
    %78 = tpu.dynamic_rotate %77 by %c17_i32_38 dim 1 : vector<32x256xf32>, i32 -> vector<32x256xf32>
    %79 = arith.mulf %78, %3 : vector<32x256xf32>
    %80 = arith.truncf %79 : vector<32x256xf32> to vector<32x256xbf16>
    %c0_39 = arith.constant 0 : index
    %c0_40 = arith.constant 0 : index
    %81 = vector.load %arg8[%c0_39, %c0_40] : memref<288x256xbf16, #tpu.memory_space<vmem>>, vector<32x256xbf16>
    tpu.vector_store %arg8[%c0_39, %c0_40], %80 {strides = array<i32>} : memref<288x256xbf16, #tpu.memory_space<vmem>>, vector<32x256xbf16>,
    %c16_i32_41 = arith.constant 16 : i32
    %82 = tpu.dynamic_rotate %77 by %c16_i32_41 dim 1 : vector<32x256xf32>, i32 -> vector<32x256xf32>
    %83 = arith.mulf %82, %7 : vector<32x256xf32>
    %84 = arith.truncf %83 : vector<32x256xf32> to vector<32x256xbf16>
    %c32_42 = arith.constant 32 : index
    %c0_43 = arith.constant 0 : index
    %85 = vector.load %arg8[%c32_42, %c0_43] : memref<288x256xbf16, #tpu.memory_space<vmem>>, vector<32x256xbf16>
    tpu.vector_store %arg8[%c32_42, %c0_43], %84 {strides = array<i32>} : memref<288x256xbf16, #tpu.memory_space<vmem>>, vector<32x256xbf16>,
    %c15_i32_44 = arith.constant 15 : i32
    %86 = tpu.dynamic_rotate %77 by %c15_i32_44 dim 1 : vector<32x256xf32>, i32 -> vector<32x256xf32>
    %87 = arith.mulf %86, %11 : vector<32x256xf32>
    %88 = arith.truncf %87 : vector<32x256xf32> to vector<32x256xbf16>
    %c64_45 = arith.constant 64 : index
    %c0_46 = arith.constant 0 : index
    %89 = vector.load %arg8[%c64_45, %c0_46] : memref<288x256xbf16, #tpu.memory_space<vmem>>, vector<32x256xbf16>
    tpu.vector_store %arg8[%c64_45, %c0_46], %88 {strides = array<i32>} : memref<288x256xbf16, #tpu.memory_space<vmem>>, vector<32x256xbf16>,
    %c1_i32_47 = arith.constant 1 : i32
    %90 = tpu.dynamic_rotate %77 by %c1_i32_47 dim 1 : vector<32x256xf32>, i32 -> vector<32x256xf32>
    %91 = arith.mulf %90, %15 : vector<32x256xf32>
    %92 = arith.truncf %91 : vector<32x256xf32> to vector<32x256xbf16>
    %c96_48 = arith.constant 96 : index
    %c0_49 = arith.constant 0 : index
    %93 = vector.load %arg8[%c96_48, %c0_49] : memref<288x256xbf16, #tpu.memory_space<vmem>>, vector<32x256xbf16>
    tpu.vector_store %arg8[%c96_48, %c0_49], %92 {strides = array<i32>} : memref<288x256xbf16, #tpu.memory_space<vmem>>, vector<32x256xbf16>,
    %94 = arith.truncf %77 : vector<32x256xf32> to vector<32x256xbf16>
    %c128_50 = arith.constant 128 : index
    %c0_51 = arith.constant 0 : index
    %95 = vector.load %arg8[%c128_50, %c0_51] : memref<288x256xbf16, #tpu.memory_space<vmem>>, vector<32x256xbf16>
    tpu.vector_store %arg8[%c128_50, %c0_51], %94 {strides = array<i32>} : memref<288x256xbf16, #tpu.memory_space<vmem>>, vector<32x256xbf16>,
    %c255_i32_52 = arith.constant 255 : i32
    %96 = tpu.dynamic_rotate %77 by %c255_i32_52 dim 1 : vector<32x256xf32>, i32 -> vector<32x256xf32>
    %97 = arith.mulf %96, %19 : vector<32x256xf32>
    %98 = arith.truncf %97 : vector<32x256xf32> to vector<32x256xbf16>
    %c160_53 = arith.constant 160 : index
    %c0_54 = arith.constant 0 : index
    %99 = vector.load %arg8[%c160_53, %c0_54] : memref<288x256xbf16, #tpu.memory_space<vmem>>, vector<32x256xbf16>
    tpu.vector_store %arg8[%c160_53, %c0_54], %98 {strides = array<i32>} : memref<288x256xbf16, #tpu.memory_space<vmem>>, vector<32x256xbf16>,
    %c241_i32_55 = arith.constant 241 : i32
    %100 = tpu.dynamic_rotate %77 by %c241_i32_55 dim 1 : vector<32x256xf32>, i32 -> vector<32x256xf32>
    %101 = arith.mulf %100, %23 : vector<32x256xf32>
    %102 = arith.truncf %101 : vector<32x256xf32> to vector<32x256xbf16>
    %c192_56 = arith.constant 192 : index
    %c0_57 = arith.constant 0 : index
    %103 = vector.load %arg8[%c192_56, %c0_57] : memref<288x256xbf16, #tpu.memory_space<vmem>>, vector<32x256xbf16>
    tpu.vector_store %arg8[%c192_56, %c0_57], %102 {strides = array<i32>} : memref<288x256xbf16, #tpu.memory_space<vmem>>, vector<32x256xbf16>,
    %c240_i32_58 = arith.constant 240 : i32
    %104 = tpu.dynamic_rotate %77 by %c240_i32_58 dim 1 : vector<32x256xf32>, i32 -> vector<32x256xf32>
    %105 = arith.mulf %104, %27 : vector<32x256xf32>
    %106 = arith.truncf %105 : vector<32x256xf32> to vector<32x256xbf16>
    %c224_59 = arith.constant 224 : index
    %c0_60 = arith.constant 0 : index
    %107 = vector.load %arg8[%c224_59, %c0_60] : memref<288x256xbf16, #tpu.memory_space<vmem>>, vector<32x256xbf16>
    tpu.vector_store %arg8[%c224_59, %c0_60], %106 {strides = array<i32>} : memref<288x256xbf16, #tpu.memory_space<vmem>>, vector<32x256xbf16>,
    %c239_i32_61 = arith.constant 239 : i32
    %108 = tpu.dynamic_rotate %77 by %c239_i32_61 dim 1 : vector<32x256xf32>, i32 -> vector<32x256xf32>
    %109 = arith.mulf %108, %31 : vector<32x256xf32>
    %110 = arith.truncf %109 : vector<32x256xf32> to vector<32x256xbf16>
    %c256_62 = arith.constant 256 : index
    %c0_63 = arith.constant 0 : index
    %111 = vector.load %arg8[%c256_62, %c0_63] : memref<288x256xbf16, #tpu.memory_space<vmem>>, vector<32x256xbf16>
    tpu.vector_store %arg8[%c256_62, %c0_63], %110 {strides = array<i32>} : memref<288x256xbf16, #tpu.memory_space<vmem>>, vector<32x256xbf16>,
    %c1_64 = arith.constant 1 : index
    %c0_65 = arith.constant 0 : index
    %c0_66 = arith.constant 0 : index
    %112 = vector.load %arg2[%c1_64, %c0_65, %c0_66] : memref<5x32x288xbf16, #tpu.memory_space<vmem>>, vector<1x32x288xbf16>
    %113 = vector.shape_cast %112 : vector<1x32x288xbf16> to vector<32x288xbf16>
    %c0_67 = arith.constant 0 : index
    %c0_68 = arith.constant 0 : index
    %114 = vector.load %arg8[%c0_67, %c0_68] : memref<288x256xbf16, #tpu.memory_space<vmem>>, vector<288x256xbf16>
    %cst_69 = arith.constant dense<0.000000e+00> : vector<32x256xf32>
    %115 = tpu.matmul %113, %114, %cst_69 {dimension_numbers = #tpu.dot_dimension_numbers<[1], [0], [0], [1], [0, 0, 1, 1], [], []>} : vector<32x288xbf16>, vector<288x256xbf16>, vector<32x256xf32> -> vector<32x256xf32>
    %c1_70 = arith.constant 1 : index
    %c0_71 = arith.constant 0 : index
    %c0_72 = arith.constant 0 : index
    %116 = vector.load %arg3[%c1_70, %c0_71, %c0_72] : memref<5x32x1xf32, #tpu.memory_space<vmem>>, vector<1x32x1xf32>
    %117 = vector.shape_cast %116 : vector<1x32x1xf32> to vector<32x1xf32>
    %118 = vector.broadcast %117 : vector<32x1xf32> to vector<32x256xf32>
    %119 = arith.addf %115, %118 : vector<32x256xf32>
    %cst_73 = arith.constant 0.000000e+00 : f32
    %120 = vector.broadcast %cst_73 : f32 to vector<32x256xf32>
    %121 = arith.maximumf %119, %120 : vector<32x256xf32>
    %c17_i32_74 = arith.constant 17 : i32
    %122 = tpu.dynamic_rotate %121 by %c17_i32_74 dim 1 : vector<32x256xf32>, i32 -> vector<32x256xf32>
    %123 = arith.mulf %122, %3 : vector<32x256xf32>
    %124 = arith.truncf %123 : vector<32x256xf32> to vector<32x256xbf16>
    %c0_75 = arith.constant 0 : index
    %c0_76 = arith.constant 0 : index
    %125 = vector.load %arg8[%c0_75, %c0_76] : memref<288x256xbf16, #tpu.memory_space<vmem>>, vector<32x256xbf16>
    tpu.vector_store %arg8[%c0_75, %c0_76], %124 {strides = array<i32>} : memref<288x256xbf16, #tpu.memory_space<vmem>>, vector<32x256xbf16>,
    %c16_i32_77 = arith.constant 16 : i32
    %126 = tpu.dynamic_rotate %121 by %c16_i32_77 dim 1 : vector<32x256xf32>, i32 -> vector<32x256xf32>
    %127 = arith.mulf %126, %7 : vector<32x256xf32>
    %128 = arith.truncf %127 : vector<32x256xf32> to vector<32x256xbf16>
    %c32_78 = arith.constant 32 : index
    %c0_79 = arith.constant 0 : index
    %129 = vector.load %arg8[%c32_78, %c0_79] : memref<288x256xbf16, #tpu.memory_space<vmem>>, vector<32x256xbf16>
    tpu.vector_store %arg8[%c32_78, %c0_79], %128 {strides = array<i32>} : memref<288x256xbf16, #tpu.memory_space<vmem>>, vector<32x256xbf16>,
    %c15_i32_80 = arith.constant 15 : i32
    %130 = tpu.dynamic_rotate %121 by %c15_i32_80 dim 1 : vector<32x256xf32>, i32 -> vector<32x256xf32>
    %131 = arith.mulf %130, %11 : vector<32x256xf32>
    %132 = arith.truncf %131 : vector<32x256xf32> to vector<32x256xbf16>
    %c64_81 = arith.constant 64 : index
    %c0_82 = arith.constant 0 : index
    %133 = vector.load %arg8[%c64_81, %c0_82] : memref<288x256xbf16, #tpu.memory_space<vmem>>, vector<32x256xbf16>
    tpu.vector_store %arg8[%c64_81, %c0_82], %132 {strides = array<i32>} : memref<288x256xbf16, #tpu.memory_space<vmem>>, vector<32x256xbf16>,
    %c1_i32_83 = arith.constant 1 : i32
    %134 = tpu.dynamic_rotate %121 by %c1_i32_83 dim 1 : vector<32x256xf32>, i32 -> vector<32x256xf32>
    %135 = arith.mulf %134, %15 : vector<32x256xf32>
    %136 = arith.truncf %135 : vector<32x256xf32> to vector<32x256xbf16>
    %c96_84 = arith.constant 96 : index
    %c0_85 = arith.constant 0 : index
    %137 = vector.load %arg8[%c96_84, %c0_85] : memref<288x256xbf16, #tpu.memory_space<vmem>>, vector<32x256xbf16>
    tpu.vector_store %arg8[%c96_84, %c0_85], %136 {strides = array<i32>} : memref<288x256xbf16, #tpu.memory_space<vmem>>, vector<32x256xbf16>,
    %138 = arith.truncf %121 : vector<32x256xf32> to vector<32x256xbf16>
    %c128_86 = arith.constant 128 : index
    %c0_87 = arith.constant 0 : index
    %139 = vector.load %arg8[%c128_86, %c0_87] : memref<288x256xbf16, #tpu.memory_space<vmem>>, vector<32x256xbf16>
    tpu.vector_store %arg8[%c128_86, %c0_87], %138 {strides = array<i32>} : memref<288x256xbf16, #tpu.memory_space<vmem>>, vector<32x256xbf16>,
    %c255_i32_88 = arith.constant 255 : i32
    %140 = tpu.dynamic_rotate %121 by %c255_i32_88 dim 1 : vector<32x256xf32>, i32 -> vector<32x256xf32>
    %141 = arith.mulf %140, %19 : vector<32x256xf32>
    %142 = arith.truncf %141 : vector<32x256xf32> to vector<32x256xbf16>
    %c160_89 = arith.constant 160 : index
    %c0_90 = arith.constant 0 : index
    %143 = vector.load %arg8[%c160_89, %c0_90] : memref<288x256xbf16, #tpu.memory_space<vmem>>, vector<32x256xbf16>
    tpu.vector_store %arg8[%c160_89, %c0_90], %142 {strides = array<i32>} : memref<288x256xbf16, #tpu.memory_space<vmem>>, vector<32x256xbf16>,
    %c241_i32_91 = arith.constant 241 : i32
    %144 = tpu.dynamic_rotate %121 by %c241_i32_91 dim 1 : vector<32x256xf32>, i32 -> vector<32x256xf32>
    %145 = arith.mulf %144, %23 : vector<32x256xf32>
    %146 = arith.truncf %145 : vector<32x256xf32> to vector<32x256xbf16>
    %c192_92 = arith.constant 192 : index
    %c0_93 = arith.constant 0 : index
    %147 = vector.load %arg8[%c192_92, %c0_93] : memref<288x256xbf16, #tpu.memory_space<vmem>>, vector<32x256xbf16>
    tpu.vector_store %arg8[%c192_92, %c0_93], %146 {strides = array<i32>} : memref<288x256xbf16, #tpu.memory_space<vmem>>, vector<32x256xbf16>,
    %c240_i32_94 = arith.constant 240 : i32
    %148 = tpu.dynamic_rotate %121 by %c240_i32_94 dim 1 : vector<32x256xf32>, i32 -> vector<32x256xf32>
    %149 = arith.mulf %148, %27 : vector<32x256xf32>
    %150 = arith.truncf %149 : vector<32x256xf32> to vector<32x256xbf16>
    %c224_95 = arith.constant 224 : index
    %c0_96 = arith.constant 0 : index
    %151 = vector.load %arg8[%c224_95, %c0_96] : memref<288x256xbf16, #tpu.memory_space<vmem>>, vector<32x256xbf16>
    tpu.vector_store %arg8[%c224_95, %c0_96], %150 {strides = array<i32>} : memref<288x256xbf16, #tpu.memory_space<vmem>>, vector<32x256xbf16>,
    %c239_i32_97 = arith.constant 239 : i32
    %152 = tpu.dynamic_rotate %121 by %c239_i32_97 dim 1 : vector<32x256xf32>, i32 -> vector<32x256xf32>
    %153 = arith.mulf %152, %31 : vector<32x256xf32>
    %154 = arith.truncf %153 : vector<32x256xf32> to vector<32x256xbf16>
    %c256_98 = arith.constant 256 : index
    %c0_99 = arith.constant 0 : index
    %155 = vector.load %arg8[%c256_98, %c0_99] : memref<288x256xbf16, #tpu.memory_space<vmem>>, vector<32x256xbf16>
    tpu.vector_store %arg8[%c256_98, %c0_99], %154 {strides = array<i32>} : memref<288x256xbf16, #tpu.memory_space<vmem>>, vector<32x256xbf16>,
    %c2_100 = arith.constant 2 : index
    %c0_101 = arith.constant 0 : index
    %c0_102 = arith.constant 0 : index
    %156 = vector.load %arg2[%c2_100, %c0_101, %c0_102] : memref<5x32x288xbf16, #tpu.memory_space<vmem>>, vector<1x32x288xbf16>
    %157 = vector.shape_cast %156 : vector<1x32x288xbf16> to vector<32x288xbf16>
    %c0_103 = arith.constant 0 : index
    %c0_104 = arith.constant 0 : index
    %158 = vector.load %arg8[%c0_103, %c0_104] : memref<288x256xbf16, #tpu.memory_space<vmem>>, vector<288x256xbf16>
    %cst_105 = arith.constant dense<0.000000e+00> : vector<32x256xf32>
    %159 = tpu.matmul %157, %158, %cst_105 {dimension_numbers = #tpu.dot_dimension_numbers<[1], [0], [0], [1], [0, 0, 1, 1], [], []>} : vector<32x288xbf16>, vector<288x256xbf16>, vector<32x256xf32> -> vector<32x256xf32>
    %c2_106 = arith.constant 2 : index
    %c0_107 = arith.constant 0 : index
    %c0_108 = arith.constant 0 : index
    %160 = vector.load %arg3[%c2_106, %c0_107, %c0_108] : memref<5x32x1xf32, #tpu.memory_space<vmem>>, vector<1x32x1xf32>
    %161 = vector.shape_cast %160 : vector<1x32x1xf32> to vector<32x1xf32>
    %162 = vector.broadcast %161 : vector<32x1xf32> to vector<32x256xf32>
    %163 = arith.addf %159, %162 : vector<32x256xf32>
    %cst_109 = arith.constant 0.000000e+00 : f32
    %164 = vector.broadcast %cst_109 : f32 to vector<32x256xf32>
    %165 = arith.maximumf %163, %164 : vector<32x256xf32>
    %c17_i32_110 = arith.constant 17 : i32
    %166 = tpu.dynamic_rotate %165 by %c17_i32_110 dim 1 : vector<32x256xf32>, i32 -> vector<32x256xf32>
    %167 = arith.mulf %166, %3 : vector<32x256xf32>
    %168 = arith.truncf %167 : vector<32x256xf32> to vector<32x256xbf16>
    %c0_111 = arith.constant 0 : index
    %c0_112 = arith.constant 0 : index
    %169 = vector.load %arg8[%c0_111, %c0_112] : memref<288x256xbf16, #tpu.memory_space<vmem>>, vector<32x256xbf16>
    tpu.vector_store %arg8[%c0_111, %c0_112], %168 {strides = array<i32>} : memref<288x256xbf16, #tpu.memory_space<vmem>>, vector<32x256xbf16>,
    %c16_i32_113 = arith.constant 16 : i32
    %170 = tpu.dynamic_rotate %165 by %c16_i32_113 dim 1 : vector<32x256xf32>, i32 -> vector<32x256xf32>
    %171 = arith.mulf %170, %7 : vector<32x256xf32>
    %172 = arith.truncf %171 : vector<32x256xf32> to vector<32x256xbf16>
    %c32_114 = arith.constant 32 : index
    %c0_115 = arith.constant 0 : index
    %173 = vector.load %arg8[%c32_114, %c0_115] : memref<288x256xbf16, #tpu.memory_space<vmem>>, vector<32x256xbf16>
    tpu.vector_store %arg8[%c32_114, %c0_115], %172 {strides = array<i32>} : memref<288x256xbf16, #tpu.memory_space<vmem>>, vector<32x256xbf16>,
    %c15_i32_116 = arith.constant 15 : i32
    %174 = tpu.dynamic_rotate %165 by %c15_i32_116 dim 1 : vector<32x256xf32>, i32 -> vector<32x256xf32>
    %175 = arith.mulf %174, %11 : vector<32x256xf32>
    %176 = arith.truncf %175 : vector<32x256xf32> to vector<32x256xbf16>
    %c64_117 = arith.constant 64 : index
    %c0_118 = arith.constant 0 : index
    %177 = vector.load %arg8[%c64_117, %c0_118] : memref<288x256xbf16, #tpu.memory_space<vmem>>, vector<32x256xbf16>
    tpu.vector_store %arg8[%c64_117, %c0_118], %176 {strides = array<i32>} : memref<288x256xbf16, #tpu.memory_space<vmem>>, vector<32x256xbf16>,
    %c1_i32_119 = arith.constant 1 : i32
    %178 = tpu.dynamic_rotate %165 by %c1_i32_119 dim 1 : vector<32x256xf32>, i32 -> vector<32x256xf32>
    %179 = arith.mulf %178, %15 : vector<32x256xf32>
    %180 = arith.truncf %179 : vector<32x256xf32> to vector<32x256xbf16>
    %c96_120 = arith.constant 96 : index
    %c0_121 = arith.constant 0 : index
    %181 = vector.load %arg8[%c96_120, %c0_121] : memref<288x256xbf16, #tpu.memory_space<vmem>>, vector<32x256xbf16>
    tpu.vector_store %arg8[%c96_120, %c0_121], %180 {strides = array<i32>} : memref<288x256xbf16, #tpu.memory_space<vmem>>, vector<32x256xbf16>,
    %182 = arith.truncf %165 : vector<32x256xf32> to vector<32x256xbf16>
    %c128_122 = arith.constant 128 : index
    %c0_123 = arith.constant 0 : index
    %183 = vector.load %arg8[%c128_122, %c0_123] : memref<288x256xbf16, #tpu.memory_space<vmem>>, vector<32x256xbf16>
    tpu.vector_store %arg8[%c128_122, %c0_123], %182 {strides = array<i32>} : memref<288x256xbf16, #tpu.memory_space<vmem>>, vector<32x256xbf16>,
    %c255_i32_124 = arith.constant 255 : i32
    %184 = tpu.dynamic_rotate %165 by %c255_i32_124 dim 1 : vector<32x256xf32>, i32 -> vector<32x256xf32>
    %185 = arith.mulf %184, %19 : vector<32x256xf32>
    %186 = arith.truncf %185 : vector<32x256xf32> to vector<32x256xbf16>
    %c160_125 = arith.constant 160 : index
    %c0_126 = arith.constant 0 : index
    %187 = vector.load %arg8[%c160_125, %c0_126] : memref<288x256xbf16, #tpu.memory_space<vmem>>, vector<32x256xbf16>
    tpu.vector_store %arg8[%c160_125, %c0_126], %186 {strides = array<i32>} : memref<288x256xbf16, #tpu.memory_space<vmem>>, vector<32x256xbf16>,
    %c241_i32_127 = arith.constant 241 : i32
    %188 = tpu.dynamic_rotate %165 by %c241_i32_127 dim 1 : vector<32x256xf32>, i32 -> vector<32x256xf32>
    %189 = arith.mulf %188, %23 : vector<32x256xf32>
    %190 = arith.truncf %189 : vector<32x256xf32> to vector<32x256xbf16>
    %c192_128 = arith.constant 192 : index
    %c0_129 = arith.constant 0 : index
    %191 = vector.load %arg8[%c192_128, %c0_129] : memref<288x256xbf16, #tpu.memory_space<vmem>>, vector<32x256xbf16>
    tpu.vector_store %arg8[%c192_128, %c0_129], %190 {strides = array<i32>} : memref<288x256xbf16, #tpu.memory_space<vmem>>, vector<32x256xbf16>,
    %c240_i32_130 = arith.constant 240 : i32
    %192 = tpu.dynamic_rotate %165 by %c240_i32_130 dim 1 : vector<32x256xf32>, i32 -> vector<32x256xf32>
    %193 = arith.mulf %192, %27 : vector<32x256xf32>
    %194 = arith.truncf %193 : vector<32x256xf32> to vector<32x256xbf16>
    %c224_131 = arith.constant 224 : index
    %c0_132 = arith.constant 0 : index
    %195 = vector.load %arg8[%c224_131, %c0_132] : memref<288x256xbf16, #tpu.memory_space<vmem>>, vector<32x256xbf16>
    tpu.vector_store %arg8[%c224_131, %c0_132], %194 {strides = array<i32>} : memref<288x256xbf16, #tpu.memory_space<vmem>>, vector<32x256xbf16>,
    %c239_i32_133 = arith.constant 239 : i32
    %196 = tpu.dynamic_rotate %165 by %c239_i32_133 dim 1 : vector<32x256xf32>, i32 -> vector<32x256xf32>
    %197 = arith.mulf %196, %31 : vector<32x256xf32>
    %198 = arith.truncf %197 : vector<32x256xf32> to vector<32x256xbf16>
    %c256_134 = arith.constant 256 : index
    %c0_135 = arith.constant 0 : index
    %199 = vector.load %arg8[%c256_134, %c0_135] : memref<288x256xbf16, #tpu.memory_space<vmem>>, vector<32x256xbf16>
    tpu.vector_store %arg8[%c256_134, %c0_135], %198 {strides = array<i32>} : memref<288x256xbf16, #tpu.memory_space<vmem>>, vector<32x256xbf16>,
    %c3_136 = arith.constant 3 : index
    %c0_137 = arith.constant 0 : index
    %c0_138 = arith.constant 0 : index
    %200 = vector.load %arg2[%c3_136, %c0_137, %c0_138] : memref<5x32x288xbf16, #tpu.memory_space<vmem>>, vector<1x32x288xbf16>
    %201 = vector.shape_cast %200 : vector<1x32x288xbf16> to vector<32x288xbf16>
    %c0_139 = arith.constant 0 : index
    %c0_140 = arith.constant 0 : index
    %202 = vector.load %arg8[%c0_139, %c0_140] : memref<288x256xbf16, #tpu.memory_space<vmem>>, vector<288x256xbf16>
    %cst_141 = arith.constant dense<0.000000e+00> : vector<32x256xf32>
    %203 = tpu.matmul %201, %202, %cst_141 {dimension_numbers = #tpu.dot_dimension_numbers<[1], [0], [0], [1], [0, 0, 1, 1], [], []>} : vector<32x288xbf16>, vector<288x256xbf16>, vector<32x256xf32> -> vector<32x256xf32>
    %c3_142 = arith.constant 3 : index
    %c0_143 = arith.constant 0 : index
    %c0_144 = arith.constant 0 : index
    %204 = vector.load %arg3[%c3_142, %c0_143, %c0_144] : memref<5x32x1xf32, #tpu.memory_space<vmem>>, vector<1x32x1xf32>
    %205 = vector.shape_cast %204 : vector<1x32x1xf32> to vector<32x1xf32>
    %206 = vector.broadcast %205 : vector<32x1xf32> to vector<32x256xf32>
    %207 = arith.addf %203, %206 : vector<32x256xf32>
    %cst_145 = arith.constant 0.000000e+00 : f32
    %208 = vector.broadcast %cst_145 : f32 to vector<32x256xf32>
    %209 = arith.maximumf %207, %208 : vector<32x256xf32>
    %c17_i32_146 = arith.constant 17 : i32
    %210 = tpu.dynamic_rotate %209 by %c17_i32_146 dim 1 : vector<32x256xf32>, i32 -> vector<32x256xf32>
    %211 = arith.mulf %210, %3 : vector<32x256xf32>
    %212 = arith.truncf %211 : vector<32x256xf32> to vector<32x256xbf16>
    %c0_147 = arith.constant 0 : index
    %c0_148 = arith.constant 0 : index
    %213 = vector.load %arg8[%c0_147, %c0_148] : memref<288x256xbf16, #tpu.memory_space<vmem>>, vector<32x256xbf16>
    tpu.vector_store %arg8[%c0_147, %c0_148], %212 {strides = array<i32>} : memref<288x256xbf16, #tpu.memory_space<vmem>>, vector<32x256xbf16>,
    %c16_i32_149 = arith.constant 16 : i32
    %214 = tpu.dynamic_rotate %209 by %c16_i32_149 dim 1 : vector<32x256xf32>, i32 -> vector<32x256xf32>
    %215 = arith.mulf %214, %7 : vector<32x256xf32>
    %216 = arith.truncf %215 : vector<32x256xf32> to vector<32x256xbf16>
    %c32_150 = arith.constant 32 : index
    %c0_151 = arith.constant 0 : index
    %217 = vector.load %arg8[%c32_150, %c0_151] : memref<288x256xbf16, #tpu.memory_space<vmem>>, vector<32x256xbf16>
    tpu.vector_store %arg8[%c32_150, %c0_151], %216 {strides = array<i32>} : memref<288x256xbf16, #tpu.memory_space<vmem>>, vector<32x256xbf16>,
    %c15_i32_152 = arith.constant 15 : i32
    %218 = tpu.dynamic_rotate %209 by %c15_i32_152 dim 1 : vector<32x256xf32>, i32 -> vector<32x256xf32>
    %219 = arith.mulf %218, %11 : vector<32x256xf32>
    %220 = arith.truncf %219 : vector<32x256xf32> to vector<32x256xbf16>
    %c64_153 = arith.constant 64 : index
    %c0_154 = arith.constant 0 : index
    %221 = vector.load %arg8[%c64_153, %c0_154] : memref<288x256xbf16, #tpu.memory_space<vmem>>, vector<32x256xbf16>
    tpu.vector_store %arg8[%c64_153, %c0_154], %220 {strides = array<i32>} : memref<288x256xbf16, #tpu.memory_space<vmem>>, vector<32x256xbf16>,
    %c1_i32_155 = arith.constant 1 : i32
    %222 = tpu.dynamic_rotate %209 by %c1_i32_155 dim 1 : vector<32x256xf32>, i32 -> vector<32x256xf32>
    %223 = arith.mulf %222, %15 : vector<32x256xf32>
    %224 = arith.truncf %223 : vector<32x256xf32> to vector<32x256xbf16>
    %c96_156 = arith.constant 96 : index
    %c0_157 = arith.constant 0 : index
    %225 = vector.load %arg8[%c96_156, %c0_157] : memref<288x256xbf16, #tpu.memory_space<vmem>>, vector<32x256xbf16>
    tpu.vector_store %arg8[%c96_156, %c0_157], %224 {strides = array<i32>} : memref<288x256xbf16, #tpu.memory_space<vmem>>, vector<32x256xbf16>,
    %226 = arith.truncf %209 : vector<32x256xf32> to vector<32x256xbf16>
    %c128_158 = arith.constant 128 : index
    %c0_159 = arith.constant 0 : index
    %227 = vector.load %arg8[%c128_158, %c0_159] : memref<288x256xbf16, #tpu.memory_space<vmem>>, vector<32x256xbf16>
    tpu.vector_store %arg8[%c128_158, %c0_159], %226 {strides = array<i32>} : memref<288x256xbf16, #tpu.memory_space<vmem>>, vector<32x256xbf16>,
    %c255_i32_160 = arith.constant 255 : i32
    %228 = tpu.dynamic_rotate %209 by %c255_i32_160 dim 1 : vector<32x256xf32>, i32 -> vector<32x256xf32>
    %229 = arith.mulf %228, %19 : vector<32x256xf32>
    %230 = arith.truncf %229 : vector<32x256xf32> to vector<32x256xbf16>
    %c160_161 = arith.constant 160 : index
    %c0_162 = arith.constant 0 : index
    %231 = vector.load %arg8[%c160_161, %c0_162] : memref<288x256xbf16, #tpu.memory_space<vmem>>, vector<32x256xbf16>
    tpu.vector_store %arg8[%c160_161, %c0_162], %230 {strides = array<i32>} : memref<288x256xbf16, #tpu.memory_space<vmem>>, vector<32x256xbf16>,
    %c241_i32_163 = arith.constant 241 : i32
    %232 = tpu.dynamic_rotate %209 by %c241_i32_163 dim 1 : vector<32x256xf32>, i32 -> vector<32x256xf32>
    %233 = arith.mulf %232, %23 : vector<32x256xf32>
    %234 = arith.truncf %233 : vector<32x256xf32> to vector<32x256xbf16>
    %c192_164 = arith.constant 192 : index
    %c0_165 = arith.constant 0 : index
    %235 = vector.load %arg8[%c192_164, %c0_165] : memref<288x256xbf16, #tpu.memory_space<vmem>>, vector<32x256xbf16>
    tpu.vector_store %arg8[%c192_164, %c0_165], %234 {strides = array<i32>} : memref<288x256xbf16, #tpu.memory_space<vmem>>, vector<32x256xbf16>,
    %c240_i32_166 = arith.constant 240 : i32
    %236 = tpu.dynamic_rotate %209 by %c240_i32_166 dim 1 : vector<32x256xf32>, i32 -> vector<32x256xf32>
    %237 = arith.mulf %236, %27 : vector<32x256xf32>
    %238 = arith.truncf %237 : vector<32x256xf32> to vector<32x256xbf16>
    %c224_167 = arith.constant 224 : index
    %c0_168 = arith.constant 0 : index
    %239 = vector.load %arg8[%c224_167, %c0_168] : memref<288x256xbf16, #tpu.memory_space<vmem>>, vector<32x256xbf16>
    tpu.vector_store %arg8[%c224_167, %c0_168], %238 {strides = array<i32>} : memref<288x256xbf16, #tpu.memory_space<vmem>>, vector<32x256xbf16>,
    %c239_i32_169 = arith.constant 239 : i32
    %240 = tpu.dynamic_rotate %209 by %c239_i32_169 dim 1 : vector<32x256xf32>, i32 -> vector<32x256xf32>
    %241 = arith.mulf %240, %31 : vector<32x256xf32>
    %242 = arith.truncf %241 : vector<32x256xf32> to vector<32x256xbf16>
    %c256_170 = arith.constant 256 : index
    %c0_171 = arith.constant 0 : index
    %243 = vector.load %arg8[%c256_170, %c0_171] : memref<288x256xbf16, #tpu.memory_space<vmem>>, vector<32x256xbf16>
    tpu.vector_store %arg8[%c256_170, %c0_171], %242 {strides = array<i32>} : memref<288x256xbf16, #tpu.memory_space<vmem>>, vector<32x256xbf16>,
    %c4 = arith.constant 4 : index
    %c0_172 = arith.constant 0 : index
    %c0_173 = arith.constant 0 : index
    %244 = vector.load %arg2[%c4, %c0_172, %c0_173] : memref<5x32x288xbf16, #tpu.memory_space<vmem>>, vector<1x32x288xbf16>
    %245 = vector.shape_cast %244 : vector<1x32x288xbf16> to vector<32x288xbf16>
    %c0_174 = arith.constant 0 : index
    %c0_175 = arith.constant 0 : index
    %246 = vector.load %arg8[%c0_174, %c0_175] : memref<288x256xbf16, #tpu.memory_space<vmem>>, vector<288x256xbf16>
    %cst_176 = arith.constant dense<0.000000e+00> : vector<32x256xf32>
    %247 = tpu.matmul %245, %246, %cst_176 {dimension_numbers = #tpu.dot_dimension_numbers<[1], [0], [0], [1], [0, 0, 1, 1], [], []>} : vector<32x288xbf16>, vector<288x256xbf16>, vector<32x256xf32> -> vector<32x256xf32>
    %c4_177 = arith.constant 4 : index
    %c0_178 = arith.constant 0 : index
    %c0_179 = arith.constant 0 : index
    %248 = vector.load %arg3[%c4_177, %c0_178, %c0_179] : memref<5x32x1xf32, #tpu.memory_space<vmem>>, vector<1x32x1xf32>
    %249 = vector.shape_cast %248 : vector<1x32x1xf32> to vector<32x1xf32>
    %250 = vector.broadcast %249 : vector<32x1xf32> to vector<32x256xf32>
    %251 = arith.addf %247, %250 : vector<32x256xf32>
    %cst_180 = arith.constant 0.000000e+00 : f32
    %252 = vector.broadcast %cst_180 : f32 to vector<32x256xf32>
    %253 = arith.maximumf %251, %252 : vector<32x256xf32>
    %c0_181 = arith.constant 0 : index
    %c0_182 = arith.constant 0 : index
    %254 = vector.load %arg4[%c0_181, %c0_182] : memref<3x32xbf16, #tpu.memory_space<vmem>>, vector<3x32xbf16>
    %255 = arith.truncf %253 : vector<32x256xf32> to vector<32x256xbf16>
    %cst_183 = arith.constant dense<0.000000e+00> : vector<3x256xf32>
    %256 = tpu.matmul %254, %255, %cst_183 {dimension_numbers = #tpu.dot_dimension_numbers<[1], [0], [0], [1], [0, 0, 1, 1], [], []>} : vector<3x32xbf16>, vector<32x256xbf16>, vector<3x256xf32> -> vector<3x256xf32>
    %c0_184 = arith.constant 0 : index
    %c0_185 = arith.constant 0 : index
    %257 = vector.load %arg5[%c0_184, %c0_185] : memref<3x1xf32, #tpu.memory_space<vmem>>, vector<3x1xf32>
    %258 = vector.broadcast %257 : vector<3x1xf32> to vector<3x256xf32>
    %259 = arith.addf %256, %258 : vector<3x256xf32>
    %c0_186 = arith.constant 0 : index
    %c0_187 = arith.constant 0 : index
    %c0_188 = arith.constant 0 : index
    %260 = vector.load %arg7[%c0_186, %c0_187, %c0_188] : memref<1x3x256xf32, #tpu.memory_space<vmem>>, vector<1x3x256xf32>
    %261 = vector.shape_cast %260 : vector<1x3x256xf32> to vector<3x256xf32>
    %262 = vector.shape_cast %259 : vector<3x256xf32> to vector<1x3x256xf32>
    tpu.vector_store %arg7[%c0_186, %c0_187, %c0_188], %262 {strides = array<i32>} : memref<1x3x256xf32, #tpu.memory_space<vmem>>, vector<1x3x256xf32>,
    return
  }
  func.func @transform_0(%arg0: i32) -> (i32, i32, i32) {
    %c0_i32 = arith.constant 0 : i32
    %c0_i32_0 = arith.constant 0 : i32
    %c0_i32_1 = arith.constant 0 : i32
    return %arg0, %c0_i32, %c0_i32_0 : i32, i32, i32
  }
  func.func @transform_1(%arg0: i32) -> (i32, i32, i32) {
    %c0_i32 = arith.constant 0 : i32
    %c0_i32_0 = arith.constant 0 : i32
    %c0_i32_1 = arith.constant 0 : i32
    %c0_i32_2 = arith.constant 0 : i32
    return %c0_i32, %c0_i32_0, %c0_i32_1 : i32, i32, i32
  }
  func.func @transform_2(%arg0: i32) -> (i32, i32, i32) {
    %c0_i32 = arith.constant 0 : i32
    %c0_i32_0 = arith.constant 0 : i32
    %c0_i32_1 = arith.constant 0 : i32
    %c0_i32_2 = arith.constant 0 : i32
    return %c0_i32, %c0_i32_0, %c0_i32_1 : i32, i32, i32
  }
  func.func @transform_3(%arg0: i32) -> (i32, i32) {
    %c0_i32 = arith.constant 0 : i32
    %c0_i32_0 = arith.constant 0 : i32
    %c0_i32_1 = arith.constant 0 : i32
    return %c0_i32, %c0_i32_0 : i32, i32
  }
  func.func @transform_4(%arg0: i32) -> (i32, i32) {
    %c0_i32 = arith.constant 0 : i32
    %c0_i32_0 = arith.constant 0 : i32
    %c0_i32_1 = arith.constant 0 : i32
    return %c0_i32, %c0_i32_0 : i32, i32
  }
  func.func @transform_5(%arg0: i32) -> (i32, i32, i32) {
    %c0_i32 = arith.constant 0 : i32
    %c0_i32_0 = arith.constant 0 : i32
    %c0_i32_1 = arith.constant 0 : i32
    %c0_i32_2 = arith.constant 0 : i32
    return %c0_i32, %c0_i32_0, %c0_i32_1 : i32, i32, i32
  }
  func.func @transform_6(%arg0: i32) -> (i32, i32, i32) {
    %c0_i32 = arith.constant 0 : i32
    %c0_i32_0 = arith.constant 0 : i32
    %c0_i32_1 = arith.constant 0 : i32
    return %arg0, %c0_i32, %c0_i32_0 : i32, i32, i32
  }
}

</mosaic_0001>

<llo_original>
// kernel: wakey_fcn_forward.1
$region0: #{wakey_fcn_forward.1}
  #allocation0 [shape = 'u32[]', space=smem, size = 0x4, offset = 0x4, fixed_abs, tag = 'smem constant byte address 0x4 - core index']
  #allocation1 [shape = 'u32[144,128]{1,0:T(1,128)}', space=vmem, size = 0x12000, scoped, tag = 'internal scratch']
  #allocation2 [shape = 'bf16[288,256]{1,0:T(16,128)(2,1)}', space=vmem, size = 0x24000, scoped, tag = 'scratch operand']
  %s0 = inlined_call_operand.vmem [shape: f32[2,32,256], index: 0, kind: input, shape index: {}]
  %s1 = inlined_call_operand.vmem [shape: bf16[5,32,288], index: 1, kind: input, shape index: {}]
  %s2 = inlined_call_operand.vmem [shape: f32[5,32,1], index: 2, kind: input, shape index: {}]
  %s3 = inlined_call_operand.vmem [shape: bf16[3,32], index: 3, kind: input, shape index: {}]
  %s4 = inlined_call_operand.vmem [shape: f32[3,1], index: 4, kind: input, shape index: {}]
  %s5 = inlined_call_operand.vmem [shape: f32[9,1,256], index: 5, kind: input, shape index: {}]
  %s6 = inlined_call_operand.vmem [shape: f32[2,3,256], index: 6, kind: output, shape index: {}]
  %s7 = sld [smem:[#allocation0]]
  $region57: #{wakey_fcn_forward.1} parent=0
    _
  %s9 = ssub.s32 1, %s7
  %s10 = scalar_select 0, %s9, %s7
  loop: start=0, step=1, limit=4
  $region2: #{wakey_fcn_forward.1} parent=0 // loop_pre_header
    _
  $region3: #{wakey_fcn_forward.1} parent=0 // loop_header
    %s12 = sphi 0, %s16
    %p13 = scmp.ge.s32.totalorder %s12, 4
    %s22 = sphi 0, %s24
    %s25 = sphi 0, %s22
    %s26 = sphi 0, %s25
    %s42 = sphi 0, %s26
    %s46 = sphi 0, %s46
    %s48 = sphi 0, %s46
    %s49 = sphi 0, %s48
    %s63 = sphi 0, %s49
    %s67 = sphi 0, %s67
    %s69 = sphi 0, %s67
    %s70 = sphi 0, %s69
    %s84 = sphi 0, %s70
    %s88 = sphi 0, %s88
    %s90 = sphi 0, %s88
    %s91 = sphi 0, %s90
    %s105 = sphi 0, %s91
    %s109 = sphi 0, %s109
    %s111 = sphi 0, %s109
    %s112 = sphi 0, %s111
    %s126 = sphi 0, %s112
    %s130 = sphi 0, %s130
    %s132 = sphi 0, %s130
    %s133 = sphi 0, %s132
    %s147 = sphi 0, %s133
    %s153 = sphi 0, %s155
    %s156 = sphi 0, %s153
    %s157 = sphi 0, %s156
    %s173 = sphi 0, %s157
  $region4: #{wakey_fcn_forward.1} parent=0 // loop_header_branch
    %15 = sbr.rel (%p13) target = $region8
  $region5: #{wakey_fcn_forward.1} parent=0 // loop_body
    %s17 = ssub.s32 %s12, 1
    %s18 = ssub.s32 %s12, 2
    %s19 = sadd.s32 %s12, 1
    %s20 = ssub.s32 %s12, %s19
    %p21 = scmp.eq.s32.totalorder %s20, 0
    %s23 = sadd.s32 %s22, 1
    %s24 = scalar_select %p21, %s22, %s23
    %p27 = pneg %p21
    %p28 = scmp.eq.s32.totalorder %s12, 1
    %p29 = por %p27, %p28
    %p30 = scmp.ne.s32.totalorder %s22, %s25
    %p31 = scmp.eq.s32.totalorder %s12, 0
    %p32 = por %p30, %p31
    %p33 = scmp.ne.s32.totalorder %s22, %s25
    %p34 = scmp.eq.s32.totalorder %s17, 1
    %p35 = por %p33, %p34
    %p36 = scmp.ne.s32.totalorder %s25, %s26
    %p37 = scmp.eq.s32.totalorder %s17, 0
    %p38 = por %p36, %p37
    %p39 = scmp.ne.s32.totalorder %s25, %s26
    %p40 = scmp.eq.s32.totalorder %s18, 1
    %p41 = por %p39, %p40
    %p43 = scmp.ne.s32.totalorder %s26, %s42
    %p44 = scmp.eq.s32.totalorder %s18, 0
    %p45 = por %p43, %p44
    %s47 = sadd.s32 %s46, 1
    %p50 = scmp.eq.s32.totalorder %s12, 1
    %p51 = scmp.ne.s32.totalorder %s46, %s48
    %p52 = scmp.eq.s32.totalorder %s12, 0
    %p53 = por %p51, %p52
    %p54 = scmp.ne.s32.totalorder %s46, %s48
    %p55 = scmp.eq.s32.totalorder %s17, 1
    %p56 = por %p54, %p55
    %p57 = scmp.ne.s32.totalorder %s48, %s49
    %p58 = scmp.eq.s32.totalorder %s17, 0
    %p59 = por %p57, %p58
    %p60 = scmp.ne.s32.totalorder %s48, %s49
    %p61 = scmp.eq.s32.totalorder %s18, 1
    %p62 = por %p60, %p61
    %p64 = scmp.ne.s32.totalorder %s49, %s63
    %p65 = scmp.eq.s32.totalorder %s18, 0
    %p66 = por %p64, %p65
    %s68 = sadd.s32 %s67, 1
    %p71 = scmp.eq.s32.totalorder %s12, 1
    %p72 = scmp.ne.s32.totalorder %s67, %s69
    %p73 = scmp.eq.s32.totalorder %s12, 0
    %p74 = por %p72, %p73
    %p75 = scmp.ne.s32.totalorder %s67, %s69
    %p76 = scmp.eq.s32.totalorder %s17, 1
    %p77 = por %p75, %p76
    %p78 = scmp.ne.s32.totalorder %s69, %s70
    %p79 = scmp.eq.s32.totalorder %s17, 0
    %p80 = por %p78, %p79
    %p81 = scmp.ne.s32.totalorder %s69, %s70
    %p82 = scmp.eq.s32.totalorder %s18, 1
    %p83 = por %p81, %p82
    %p85 = scmp.ne.s32.totalorder %s70, %s84
    %p86 = scmp.eq.s32.totalorder %s18, 0
    %p87 = por %p85, %p86
    %s89 = sadd.s32 %s88, 1
    %p92 = scmp.eq.s32.totalorder %s12, 1
    %p93 = scmp.ne.s32.totalorder %s88, %s90
    %p94 = scmp.eq.s32.totalorder %s12, 0
    %p95 = por %p93, %p94
    %p96 = scmp.ne.s32.totalorder %s88, %s90
    %p97 = scmp.eq.s32.totalorder %s17, 1
    %p98 = por %p96, %p97
    %p99 = scmp.ne.s32.totalorder %s90, %s91
    %p100 = scmp.eq.s32.totalorder %s17, 0
    %p101 = por %p99, %p100
    %p102 = scmp.ne.s32.totalorder %s90, %s91
    %p103 = scmp.eq.s32.totalorder %s18, 1
    %p104 = por %p102, %p103
    %p106 = scmp.ne.s32.totalorder %s91, %s105
    %p107 = scmp.eq.s32.totalorder %s18, 0
    %p108 = por %p106, %p107
    %s110 = sadd.s32 %s109, 1
    %p113 = scmp.eq.s32.totalorder %s12, 1
    %p114 = scmp.ne.s32.totalorder %s109, %s111
    %p115 = scmp.eq.s32.totalorder %s12, 0
    %p116 = por %p114, %p115
    %p117 = scmp.ne.s32.totalorder %s109, %s111
    %p118 = scmp.eq.s32.totalorder %s17, 1
    %p119 = por %p117, %p118
    %p120 = scmp.ne.s32.totalorder %s111, %s112
    %p121 = scmp.eq.s32.totalorder %s17, 0
    %p122 = por %p120, %p121
    %p123 = scmp.ne.s32.totalorder %s111, %s112
    %p124 = scmp.eq.s32.totalorder %s18, 1
    %p125 = por %p123, %p124
    %p127 = scmp.ne.s32.totalorder %s112, %s126
    %p128 = scmp.eq.s32.totalorder %s18, 0
    %p129 = por %p127, %p128
    %s131 = sadd.s32 %s130, 1
    %p134 = scmp.eq.s32.totalorder %s12, 1
    %p135 = scmp.ne.s32.totalorder %s130, %s132
    %p136 = scmp.eq.s32.totalorder %s12, 0
    %p137 = por %p135, %p136
    %p138 = scmp.ne.s32.totalorder %s130, %s132
    %p139 = scmp.eq.s32.totalorder %s17, 1
    %p140 = por %p138, %p139
    %p141 = scmp.ne.s32.totalorder %s132, %s133
    %p142 = scmp.eq.s32.totalorder %s17, 0
    %p143 = por %p141, %p142
    %p144 = scmp.ne.s32.totalorder %s132, %s133
    %p145 = scmp.eq.s32.totalorder %s18, 1
    %p146 = por %p144, %p145
    %p148 = scmp.ne.s32.totalorder %s133, %s147
    %p149 = scmp.eq.s32.totalorder %s18, 0
    %p150 = por %p148, %p149
    %s151 = ssub.s32 %s12, %s19
    %p152 = scmp.eq.s32.totalorder %s151, 0
    %s154 = sadd.s32 %s153, 1
    %s155 = scalar_select %p152, %s153, %s154
    %p158 = pneg %p152
    %p159 = scmp.eq.s32.totalorder %s12, 1
    %p160 = por %p158, %p159
    %p161 = scmp.ne.s32.totalorder %s153, %s156
    %p162 = scmp.eq.s32.totalorder %s12, 0
    %p163 = por %p161, %p162
    %p164 = scmp.ne.s32.totalorder %s153, %s156
    %p165 = scmp.eq.s32.totalorder %s17, 1
    %p166 = por %p164, %p165
    %p167 = scmp.ne.s32.totalorder %s156, %s157
    %p168 = scmp.eq.s32.totalorder %s17, 0
    %p169 = por %p167, %p168
    %p170 = scmp.ne.s32.totalorder %s156, %s157
    %p171 = scmp.eq.s32.totalorder %s18, 1
    %p172 = por %p170, %p171
    %p174 = scmp.ne.s32.totalorder %s157, %s173
    %p175 = scmp.eq.s32.totalorder %s18, 0
    %p176 = por %p174, %p175
    %p177 = scmp.le.s32.totalorder 1, %s12
    %p178 = scmp.lt.s32.totalorder %s12, 3
    %p179 = pnand %p177, %p178
    %p180 = pneg %p179
    // Predicated region
    $region9: #{wakey_fcn_forward.1} parent=5 // pred_check
      _
    $region10: #{wakey_fcn_forward.1} parent=5 // pred_check_branch
      %182 = sbr.rel (%p179) target = $region12
    $region11: #{wakey_fcn_forward.1} parent=5 // pred_region
      %s183 = ssub.s32 %s12, 1
      // Predicated region
      $region13: #{wakey_fcn_forward.1} parent=11 // pred_check
        %p184 = pneg %p59
      $region14: #{wakey_fcn_forward.1} parent=11 // pred_check_branch
        %186 = sbr.rel (%p184) target = $region16
      $region15: #{wakey_fcn_forward.1} parent=11 // pred_region
        _
      $region16: #{wakey_fcn_forward.1} parent=11 // pred_fallthru
        _
      // Predicated region
      $region17: #{wakey_fcn_forward.1} parent=11 // pred_check
        %p187 = pneg %p80
      $region18: #{wakey_fcn_forward.1} parent=11 // pred_check_branch
        %189 = sbr.rel (%p187) target = $region20
      $region19: #{wakey_fcn_forward.1} parent=11 // pred_region
        _
      $region20: #{wakey_fcn_forward.1} parent=11 // pred_fallthru
        _
      // Predicated region
      $region21: #{wakey_fcn_forward.1} parent=11 // pred_check
        %p190 = pneg %p101
      $region22: #{wakey_fcn_forward.1} parent=11 // pred_check_branch
        %192 = sbr.rel (%p190) target = $region24
      $region23: #{wakey_fcn_forward.1} parent=11 // pred_region
        _
      $region24: #{wakey_fcn_forward.1} parent=11 // pred_fallthru
        _
      // Predicated region
      $region25: #{wakey_fcn_forward.1} parent=11 // pred_check
        %p193 = pneg %p122
      $region26: #{wakey_fcn_forward.1} parent=11 // pred_check_branch
        %195 = sbr.rel (%p193) target = $region28
      $region27: #{wakey_fcn_forward.1} parent=11 // pred_region
        _
      $region28: #{wakey_fcn_forward.1} parent=11 // pred_fallthru
        _
      // Predicated region
      $region29: #{wakey_fcn_forward.1} parent=11 // pred_check
        %p196 = pneg %p143
      $region30: #{wakey_fcn_forward.1} parent=11 // pred_check_branch
        %198 = sbr.rel (%p196) target = $region32
      $region31: #{wakey_fcn_forward.1} parent=11 // pred_region
        _
      $region32: #{wakey_fcn_forward.1} parent=11 // pred_fallthru
        _
    $region12: #{wakey_fcn_forward.1} parent=5 // pred_fallthru
      _
    %p199 = scmp.lt.s32.totalorder %s12, 2
    // Predicated region
    $region33: #{wakey_fcn_forward.1} parent=5 // pred_check
      %p200 = pneg %p199
    $region34: #{wakey_fcn_forward.1} parent=5 // pred_check_branch
      %202 = sbr.rel (%p200) target = $region36
    $region35: #{wakey_fcn_forward.1} parent=5 // pred_region
      // Predicated region
      $region37: #{wakey_fcn_forward.1} parent=35 // pred_check
        %p203 = pneg %p32
      $region38: #{wakey_fcn_forward.1} parent=35 // pred_check_branch
        %205 = sbr.rel (%p203) target = $region40
      $region39: #{wakey_fcn_forward.1} parent=35 // pred_region
        %p206 = scmp.lt.s32.totalorder %s12, 1
        %s207 = scalar_select %p206, %s12, 1
        %s208 = smul.addr %s207, 8
        %s209 = smul.addr %s208, 8
        %s210 = scalar_lea.vmem %s0, %s209
      $region40: #{wakey_fcn_forward.1} parent=35 // pred_fallthru
        _
    $region36: #{wakey_fcn_forward.1} parent=5 // pred_fallthru
      _
    %p211 = scmp.le.s32.totalorder 1, %s12
    %p212 = scmp.lt.s32.totalorder %s12, 3
    %p213 = pnand %p211, %p212
    %p214 = pneg %p213
    // Predicated region
    $region41: #{wakey_fcn_forward.1} parent=5 // pred_check
      _
    $region42: #{wakey_fcn_forward.1} parent=5 // pred_check_branch
      %216 = sbr.rel (%p213) target = $region44
    $region43: #{wakey_fcn_forward.1} parent=5 // pred_region
      %s217 = ssub.s32 %s12, 1
      %p218 = scmp.lt.s32.totalorder %s17, 1
      %s219 = scalar_select %p218, %s17, 1
      %s220 = smul.addr %s219, 8
      %s221 = smul.addr %s220, 8
      %s222 = scalar_lea.vmem %s0, %s221
      %p223 = pneg %p38
      %p224 = pneg %p35
      %p225 = pneg %p59
      %p226 = pneg %p56
      %p227 = pneg %p80
      %p228 = pneg %p77
      %p229 = pneg %p101
      %p230 = pneg %p98
      %p231 = pneg %p122
      %p232 = pneg %p119
      %p233 = pneg %p143
      %p234 = pneg %p140
      %p235 = pneg %p169
      %p236 = pneg %p166
      %p237 = scmp.lt.s32.totalorder %s17, 1
      %s238 = scalar_select %p237, %s17, 1
      %s239 = smul.addr %s238, 2
      %s240 = smul.addr %s239, 4
      %s241 = scalar_lea.vmem %s6, %s240
      %p242 = scmp.lt.s32.totalorder %s17, 1
      %s243 = scalar_select %p242, %s17, 1
      %s244 = smul.addr %s243, 8
      %s245 = smul.addr %s244, 8
      %s246 = scalar_lea.vmem %s0, %s245
      %p247 = scmp.lt.s32.totalorder %s17, 1
      %s248 = scalar_select %p247, %s17, 1
      %s249 = smul.addr %s248, 2
      %s250 = smul.addr %s249, 4
      %s251 = scalar_lea.vmem %s6, %s250
      %v253 = vld [vmem:[%s5] sm:$0x3]
      %v255 = vlaneseq
      %v256 = vshrl.u32 %v255, 7
      %v257 = vsub.s32 0, %v256
      %v258 = vrot.slane %v253, %v257
      %v259 = vlaneseq
      %v260 = vshrl.u32 %v259, 7
      %v261 = vsub.s32 1, %v260
      %v262 = vrot.slane %v253, %v261
      %s265 = scalar_lea.vmem %s5, 2
      %v266 = vld [vmem:[%s265] sm:$0x3]
      %v268 = vlaneseq
      %v269 = vshrl.u32 %v268, 7
      %v270 = vsub.s32 0, %v269
      %v271 = vrot.slane %v266, %v270
      %v272 = vlaneseq
      %v273 = vshrl.u32 %v272, 7
      %v274 = vsub.s32 1, %v273
      %v275 = vrot.slane %v266, %v274
      %s278 = scalar_lea.vmem %s5, 4
      %v279 = vld [vmem:[%s278] sm:$0x3]
      %v281 = vlaneseq
      %v282 = vshrl.u32 %v281, 7
      %v283 = vsub.s32 0, %v282
      %v284 = vrot.slane %v279, %v283
      %v285 = vlaneseq
      %v286 = vshrl.u32 %v285, 7
      %v287 = vsub.s32 1, %v286
      %v288 = vrot.slane %v279, %v287
      %s291 = scalar_lea.vmem %s5, 6
      %v292 = vld [vmem:[%s291] sm:$0x3]
      %v294 = vlaneseq
      %v295 = vshrl.u32 %v294, 7
      %v296 = vsub.s32 0, %v295
      %v297 = vrot.slane %v292, %v296
      %v298 = vlaneseq
      %v299 = vshrl.u32 %v298, 7
      %v300 = vsub.s32 1, %v299
      %v301 = vrot.slane %v292, %v300
      %s304 = scalar_lea.vmem %s5, 10
      %v305 = vld [vmem:[%s304] sm:$0x3]
      %v307 = vlaneseq
      %v308 = vshrl.u32 %v307, 7
      %v309 = vsub.s32 0, %v308
      %v310 = vrot.slane %v305, %v309
      %v311 = vlaneseq
      %v312 = vshrl.u32 %v311, 7
      %v313 = vsub.s32 1, %v312
      %v314 = vrot.slane %v305, %v313
      %s317 = scalar_lea.vmem %s5, 12
      %v318 = vld [vmem:[%s317] sm:$0x3]
      %v320 = vlaneseq
      %v321 = vshrl.u32 %v320, 7
      %v322 = vsub.s32 0, %v321
      %v323 = vrot.slane %v318, %v322
      %v324 = vlaneseq
      %v325 = vshrl.u32 %v324, 7
      %v326 = vsub.s32 1, %v325
      %v327 = vrot.slane %v318, %v326
      %s330 = scalar_lea.vmem %s5, 14
      %v331 = vld [vmem:[%s330] sm:$0x3]
      %v333 = vlaneseq
      %v334 = vshrl.u32 %v333, 7
      %v335 = vsub.s32 0, %v334
      %v336 = vrot.slane %v331, %v335
      %v337 = vlaneseq
      %v338 = vshrl.u32 %v337, 7
      %v339 = vsub.s32 1, %v338
      %v340 = vrot.slane %v331, %v339
      %s343 = scalar_lea.vmem %s5, 16
      %v344 = vld [vmem:[%s343] sm:$0x3]
      %v346 = vlaneseq
      %v347 = vshrl.u32 %v346, 7
      %v348 = vsub.s32 0, %v347
      %v349 = vrot.slane %v344, %v348
      %v350 = vlaneseq
      %v351 = vshrl.u32 %v350, 7
      %v352 = vsub.s32 1, %v351
      %v353 = vrot.slane %v344, %v352
      %v356 = vld [vmem:[%s246] sm:$0xff]
      %v357 = vld [vmem:[%s246 + $0x8] sm:$0xff]
      %v358 = vld [vmem:[%s246 + $0x10] sm:$0xff]
      %v359 = vld [vmem:[%s246 + $0x18] sm:$0xff]
      %v360 = vld [vmem:[%s246 + $0x20] sm:$0xff]
      %v361 = vld [vmem:[%s246 + $0x28] sm:$0xff]
      %v362 = vld [vmem:[%s246 + $0x30] sm:$0xff]
      %v363 = vld [vmem:[%s246 + $0x38] sm:$0xff]
      %364 = vrot.lane.b32.xlu0 %v356, 17
      %v365 = vpop.permute.xlu0 %364
      %366 = vrot.lane.b32.xlu0 %v358, 17
      %v367 = vpop.permute.xlu0 %366
      %368 = vrot.lane.b32.xlu0 %v360, 17
      %v369 = vpop.permute.xlu0 %368
      %370 = vrot.lane.b32.xlu0 %v362, 17
      %v371 = vpop.permute.xlu0 %370
      %372 = vrot.lane.b32.xlu0 %v357, 17
      %v373 = vpop.permute.xlu0 %372
      %374 = vrot.lane.b32.xlu0 %v359, 17
      %v375 = vpop.permute.xlu0 %374
      %376 = vrot.lane.b32.xlu0 %v361, 17
      %v377 = vpop.permute.xlu0 %376
      %378 = vrot.lane.b32.xlu0 %v363, 17
      %v379 = vpop.permute.xlu0 %378
      %v380 = vlaneseq
      %v381 = vand.u32 %v380, 127
      %vm382 = vcmp.lt.s32.totalorder %v381, 17
      %v383 = vsel %vm382, %v365, %v373
      %v384 = vsel %vm382, %v367, %v375
      %v385 = vsel %vm382, %v369, %v377
      %v386 = vsel %vm382, %v371, %v379
      %v387 = vsel %vm382, %v373, %v365
      %v388 = vsel %vm382, %v375, %v367
      %v389 = vsel %vm382, %v377, %v369
      %v390 = vsel %vm382, %v379, %v371
      %v391 = vmul.f32 %v387, %v258
      %v392 = vmul.f32 %v383, %v262
      %v393 = vmul.f32 %v388, %v258
      %v394 = vmul.f32 %v384, %v262
      %v395 = vmul.f32 %v389, %v258
      %v396 = vmul.f32 %v385, %v262
      %v397 = vmul.f32 %v390, %v258
      %v398 = vmul.f32 %v386, %v262
      %v399 = vpack.c.bf16 %v393, %v391
      %v400 = vpack.c.bf16 %v394, %v392
      %v401 = vpack.c.bf16 %v397, %v395
      %v402 = vpack.c.bf16 %v398, %v396
      %403 = vst [vmem:[#allocation2] sm:$0xff] %v399
      %404 = vst [vmem:[#allocation2 + $0x8] sm:$0xff] %v400
      %405 = vst [vmem:[#allocation2 + $0x10] sm:$0xff] %v401
      %406 = vst [vmem:[#allocation2 + $0x18] sm:$0xff] %v402
      %407 = vrot.lane.b32.xlu0 %v356, 16
      %v408 = vpop.permute.xlu0 %407
      %409 = vrot.lane.b32.xlu0 %v358, 16
      %v410 = vpop.permute.xlu0 %409
      %411 = vrot.lane.b32.xlu0 %v360, 16
      %v412 = vpop.permute.xlu0 %411
      %413 = vrot.lane.b32.xlu0 %v362, 16
      %v414 = vpop.permute.xlu0 %413
      %415 = vrot.lane.b32.xlu0 %v357, 16
      %v416 = vpop.permute.xlu0 %415
      %417 = vrot.lane.b32.xlu0 %v359, 16
      %v418 = vpop.permute.xlu0 %417
      %419 = vrot.lane.b32.xlu0 %v361, 16
      %v420 = vpop.permute.xlu0 %419
      %421 = vrot.lane.b32.xlu0 %v363, 16
      %v422 = vpop.permute.xlu0 %421
      %vm423 = vcmp.lt.s32.totalorder %v381, 16
      %v424 = vsel %vm423, %v408, %v416
      %v425 = vsel %vm423, %v410, %v418
      %v426 = vsel %vm423, %v412, %v420
      %v427 = vsel %vm423, %v414, %v422
      %v428 = vsel %vm423, %v416, %v408
      %v429 = vsel %vm423, %v418, %v410
      %v430 = vsel %vm423, %v420, %v412
      %v431 = vsel %vm423, %v422, %v414
      %v432 = vmul.f32 %v428, %v271
      %v433 = vmul.f32 %v424, %v275
      %v434 = vmul.f32 %v429, %v271
      %v435 = vmul.f32 %v425, %v275
      %v436 = vmul.f32 %v430, %v271
      %v437 = vmul.f32 %v426, %v275
      %v438 = vmul.f32 %v431, %v271
      %v439 = vmul.f32 %v427, %v275
      %v440 = vpack.c.bf16 %v434, %v432
      %v441 = vpack.c.bf16 %v435, %v433
      %v442 = vpack.c.bf16 %v438, %v436
      %v443 = vpack.c.bf16 %v439, %v437
      %444 = vst [vmem:[#allocation2 + $0x20] sm:$0xff] %v440
      %445 = vst [vmem:[#allocation2 + $0x28] sm:$0xff] %v441
      %446 = vst [vmem:[#allocation2 + $0x30] sm:$0xff] %v442
      %447 = vst [vmem:[#allocation2 + $0x38] sm:$0xff] %v443
      %448 = vrot.lane.b32.xlu0 %v356, 15
      %v449 = vpop.permute.xlu0 %448
      %450 = vrot.lane.b32.xlu0 %v358, 15
      %v451 = vpop.permute.xlu0 %450
      %452 = vrot.lane.b32.xlu0 %v360, 15
      %v453 = vpop.permute.xlu0 %452
      %454 = vrot.lane.b32.xlu0 %v362, 15
      %v455 = vpop.permute.xlu0 %454
      %456 = vrot.lane.b32.xlu0 %v357, 15
      %v457 = vpop.permute.xlu0 %456
      %458 = vrot.lane.b32.xlu0 %v359, 15
      %v459 = vpop.permute.xlu0 %458
      %460 = vrot.lane.b32.xlu0 %v361, 15
      %v461 = vpop.permute.xlu0 %460
      %462 = vrot.lane.b32.xlu0 %v363, 15
      %v463 = vpop.permute.xlu0 %462
      %vm464 = vcmp.lt.s32.totalorder %v381, 15
      %v465 = vsel %vm464, %v449, %v457
      %v466 = vsel %vm464, %v451, %v459
      %v467 = vsel %vm464, %v453, %v461
      %v468 = vsel %vm464, %v455, %v463
      %v469 = vsel %vm464, %v457, %v449
      %v470 = vsel %vm464, %v459, %v451
      %v471 = vsel %vm464, %v461, %v453
      %v472 = vsel %vm464, %v463, %v455
      %v473 = vmul.f32 %v469, %v284
      %v474 = vmul.f32 %v465, %v288
      %v475 = vmul.f32 %v470, %v284
      %v476 = vmul.f32 %v466, %v288
      %v477 = vmul.f32 %v471, %v284
      %v478 = vmul.f32 %v467, %v288
      %v479 = vmul.f32 %v472, %v284
      %v480 = vmul.f32 %v468, %v288
      %v481 = vpack.c.bf16 %v475, %v473
      %v482 = vpack.c.bf16 %v476, %v474
      %v483 = vpack.c.bf16 %v479, %v477
      %v484 = vpack.c.bf16 %v480, %v478
      %485 = vst [vmem:[#allocation2 + $0x40] sm:$0xff] %v481
      %486 = vst [vmem:[#allocation2 + $0x48] sm:$0xff] %v482
      %487 = vst [vmem:[#allocation2 + $0x50] sm:$0xff] %v483
      %488 = vst [vmem:[#allocation2 + $0x58] sm:$0xff] %v484
      %489 = vrot.lane.b32.xlu0 %v356, 1
      %v490 = vpop.permute.xlu0 %489
      %491 = vrot.lane.b32.xlu0 %v358, 1
      %v492 = vpop.permute.xlu0 %491
      %493 = vrot.lane.b32.xlu0 %v360, 1
      %v494 = vpop.permute.xlu0 %493
      %495 = vrot.lane.b32.xlu0 %v362, 1
      %v496 = vpop.permute.xlu0 %495
      %497 = vrot.lane.b32.xlu0 %v357, 1
      %v498 = vpop.permute.xlu0 %497
      %499 = vrot.lane.b32.xlu0 %v359, 1
      %v500 = vpop.permute.xlu0 %499
      %501 = vrot.lane.b32.xlu0 %v361, 1
      %v502 = vpop.permute.xlu0 %501
      %503 = vrot.lane.b32.xlu0 %v363, 1
      %v504 = vpop.permute.xlu0 %503
      %vm505 = vcmp.lt.s32.totalorder %v381, 1
      %v506 = vsel %vm505, %v490, %v498
      %v507 = vsel %vm505, %v492, %v500
      %v508 = vsel %vm505, %v494, %v502
      %v509 = vsel %vm505, %v496, %v504
      %v510 = vsel %vm505, %v498, %v490
      %v511 = vsel %vm505, %v500, %v492
      %v512 = vsel %vm505, %v502, %v494
      %v513 = vsel %vm505, %v504, %v496
      %v514 = vmul.f32 %v510, %v297
      %v515 = vmul.f32 %v506, %v301
      %v516 = vmul.f32 %v511, %v297
      %v517 = vmul.f32 %v507, %v301
      %v518 = vmul.f32 %v512, %v297
      %v519 = vmul.f32 %v508, %v301
      %v520 = vmul.f32 %v513, %v297
      %v521 = vmul.f32 %v509, %v301
      %v522 = vpack.c.bf16 %v516, %v514
      %v523 = vpack.c.bf16 %v517, %v515
      %v524 = vpack.c.bf16 %v520, %v518
      %v525 = vpack.c.bf16 %v521, %v519
      %526 = vst [vmem:[#allocation2 + $0x60] sm:$0xff] %v522
      %527 = vst [vmem:[#allocation2 + $0x68] sm:$0xff] %v523
      %528 = vst [vmem:[#allocation2 + $0x70] sm:$0xff] %v524
      %529 = vst [vmem:[#allocation2 + $0x78] sm:$0xff] %v525
      %v530 = vpack.c.bf16 %v358, %v356
      %v531 = vpack.c.bf16 %v359, %v357
      %v532 = vpack.c.bf16 %v362, %v360
      %v533 = vpack.c.bf16 %v363, %v361
      %534 = vst [vmem:[#allocation2 + $0x80] sm:$0xff] %v530
      %535 = vst [vmem:[#allocation2 + $0x88] sm:$0xff] %v531
      %536 = vst [vmem:[#allocation2 + $0x90] sm:$0xff] %v532
      %537 = vst [vmem:[#allocation2 + $0x98] sm:$0xff] %v533
      %538 = vrot.lane.b32.xlu0 %v356, 127
      %v539 = vpop.permute.xlu0 %538
      %540 = vrot.lane.b32.xlu0 %v358, 127
      %v541 = vpop.permute.xlu0 %540
      %542 = vrot.lane.b32.xlu0 %v360, 127
      %v543 = vpop.permute.xlu0 %542
      %544 = vrot.lane.b32.xlu0 %v362, 127
      %v545 = vpop.permute.xlu0 %544
      %546 = vrot.lane.b32.xlu0 %v357, 127
      %v547 = vpop.permute.xlu0 %546
      %548 = vrot.lane.b32.xlu0 %v359, 127
      %v549 = vpop.permute.xlu0 %548
      %550 = vrot.lane.b32.xlu0 %v361, 127
      %v551 = vpop.permute.xlu0 %550
      %552 = vrot.lane.b32.xlu0 %v363, 127
      %v553 = vpop.permute.xlu0 %552
      %vm554 = vcmp.lt.s32.totalorder %v381, 127
      %v555 = vsel %vm554, %v539, %v547
      %v556 = vsel %vm554, %v541, %v549
      %v557 = vsel %vm554, %v543, %v551
      %v558 = vsel %vm554, %v545, %v553
      %v559 = vsel %vm554, %v547, %v539
      %v560 = vsel %vm554, %v549, %v541
      %v561 = vsel %vm554, %v551, %v543
      %v562 = vsel %vm554, %v553, %v545
      %v563 = vmul.f32 %v555, %v310
      %v564 = vmul.f32 %v559, %v314
      %v565 = vmul.f32 %v556, %v310
      %v566 = vmul.f32 %v560, %v314
      %v567 = vmul.f32 %v557, %v310
      %v568 = vmul.f32 %v561, %v314
      %v569 = vmul.f32 %v558, %v310
      %v570 = vmul.f32 %v562, %v314
      %v571 = vpack.c.bf16 %v565, %v563
      %v572 = vpack.c.bf16 %v566, %v564
      %v573 = vpack.c.bf16 %v569, %v567
      %v574 = vpack.c.bf16 %v570, %v568
      %575 = vst [vmem:[#allocation2 + $0xa0] sm:$0xff] %v571
      %576 = vst [vmem:[#allocation2 + $0xa8] sm:$0xff] %v572
      %577 = vst [vmem:[#allocation2 + $0xb0] sm:$0xff] %v573
      %578 = vst [vmem:[#allocation2 + $0xb8] sm:$0xff] %v574
      %579 = vrot.lane.b32.xlu0 %v356, 113
      %v580 = vpop.permute.xlu0 %579
      %581 = vrot.lane.b32.xlu0 %v358, 113
      %v582 = vpop.permute.xlu0 %581
      %583 = vrot.lane.b32.xlu0 %v360, 113
      %v584 = vpop.permute.xlu0 %583
      %585 = vrot.lane.b32.xlu0 %v362, 113
      %v586 = vpop.permute.xlu0 %585
      %587 = vrot.lane.b32.xlu0 %v357, 113
      %v588 = vpop.permute.xlu0 %587
      %589 = vrot.lane.b32.xlu0 %v359, 113
      %v590 = vpop.permute.xlu0 %589
      %591 = vrot.lane.b32.xlu0 %v361, 113
      %v592 = vpop.permute.xlu0 %591
      %593 = vrot.lane.b32.xlu0 %v363, 113
      %v594 = vpop.permute.xlu0 %593
      %vm595 = vcmp.lt.s32.totalorder %v381, 113
      %v596 = vsel %vm595, %v580, %v588
      %v597 = vsel %vm595, %v582, %v590
      %v598 = vsel %vm595, %v584, %v592
      %v599 = vsel %vm595, %v586, %v594
      %v600 = vsel %vm595, %v588, %v580
      %v601 = vsel %vm595, %v590, %v582
      %v602 = vsel %vm595, %v592, %v584
      %v603 = vsel %vm595, %v594, %v586
      %v604 = vmul.f32 %v596, %v323
      %v605 = vmul.f32 %v600, %v327
      %v606 = vmul.f32 %v597, %v323
      %v607 = vmul.f32 %v601, %v327
      %v608 = vmul.f32 %v598, %v323
      %v609 = vmul.f32 %v602, %v327
      %v610 = vmul.f32 %v599, %v323
      %v611 = vmul.f32 %v603, %v327
      %v612 = vpack.c.bf16 %v606, %v604
      %v613 = vpack.c.bf16 %v607, %v605
      %v614 = vpack.c.bf16 %v610, %v608
      %v615 = vpack.c.bf16 %v611, %v609
      %616 = vst [vmem:[#allocation2 + $0xc0] sm:$0xff] %v612
      %617 = vst [vmem:[#allocation2 + $0xc8] sm:$0xff] %v613
      %618 = vst [vmem:[#allocation2 + $0xd0] sm:$0xff] %v614
      %619 = vst [vmem:[#allocation2 + $0xd8] sm:$0xff] %v615
      %620 = vrot.lane.b32.xlu0 %v356, 112
      %v621 = vpop.permute.xlu0 %620
      %622 = vrot.lane.b32.xlu0 %v358, 112
      %v623 = vpop.permute.xlu0 %622
      %624 = vrot.lane.b32.xlu0 %v360, 112
      %v625 = vpop.permute.xlu0 %624
      %626 = vrot.lane.b32.xlu0 %v362, 112
      %v627 = vpop.permute.xlu0 %626
      %628 = vrot.lane.b32.xlu0 %v357, 112
      %v629 = vpop.permute.xlu0 %628
      %630 = vrot.lane.b32.xlu0 %v359, 112
      %v631 = vpop.permute.xlu0 %630
      %632 = vrot.lane.b32.xlu0 %v361, 112
      %v633 = vpop.permute.xlu0 %632
      %634 = vrot.lane.b32.xlu0 %v363, 112
      %v635 = vpop.permute.xlu0 %634
      %vm636 = vcmp.lt.s32.totalorder %v381, 112
      %v637 = vsel %vm636, %v621, %v629
      %v638 = vsel %vm636, %v623, %v631
      %v639 = vsel %vm636, %v625, %v633
      %v640 = vsel %vm636, %v627, %v635
      %v641 = vsel %vm636, %v629, %v621
      %v642 = vsel %vm636, %v631, %v623
      %v643 = vsel %vm636, %v633, %v625
      %v644 = vsel %vm636, %v635, %v627
      %v645 = vmul.f32 %v637, %v336
      %v646 = vmul.f32 %v641, %v340
      %v647 = vmul.f32 %v638, %v336
      %v648 = vmul.f32 %v642, %v340
      %v649 = vmul.f32 %v639, %v336
      %v650 = vmul.f32 %v643, %v340
      %v651 = vmul.f32 %v640, %v336
      %v652 = vmul.f32 %v644, %v340
      %v653 = vpack.c.bf16 %v647, %v645
      %v654 = vpack.c.bf16 %v648, %v646
      %v655 = vpack.c.bf16 %v651, %v649
      %v656 = vpack.c.bf16 %v652, %v650
      %657 = vst [vmem:[#allocation2 + $0xe0] sm:$0xff] %v653
      %658 = vst [vmem:[#allocation2 + $0xe8] sm:$0xff] %v654
      %659 = vst [vmem:[#allocation2 + $0xf0] sm:$0xff] %v655
      %660 = vst [vmem:[#allocation2 + $0xf8] sm:$0xff] %v656
      %661 = vrot.lane.b32.xlu0 %v356, 111
      %v662 = vpop.permute.xlu0 %661
      %663 = vrot.lane.b32.xlu0 %v358, 111
      %v664 = vpop.permute.xlu0 %663
      %665 = vrot.lane.b32.xlu0 %v360, 111
      %v666 = vpop.permute.xlu0 %665
      %667 = vrot.lane.b32.xlu0 %v362, 111
      %v668 = vpop.permute.xlu0 %667
      %669 = vrot.lane.b32.xlu0 %v357, 111
      %v670 = vpop.permute.xlu0 %669
      %671 = vrot.lane.b32.xlu0 %v359, 111
      %v672 = vpop.permute.xlu0 %671
      %673 = vrot.lane.b32.xlu0 %v361, 111
      %v674 = vpop.permute.xlu0 %673
      %675 = vrot.lane.b32.xlu0 %v363, 111
      %v676 = vpop.permute.xlu0 %675
      %vm677 = vcmp.lt.s32.totalorder %v381, 111
      %v678 = vsel %vm677, %v662, %v670
      %v679 = vsel %vm677, %v664, %v672
      %v680 = vsel %vm677, %v666, %v674
      %v681 = vsel %vm677, %v668, %v676
      %v682 = vsel %vm677, %v670, %v662
      %v683 = vsel %vm677, %v672, %v664
      %v684 = vsel %vm677, %v674, %v666
      %v685 = vsel %vm677, %v676, %v668
      %v686 = vmul.f32 %v678, %v349
      %v687 = vmul.f32 %v682, %v353
      %v688 = vmul.f32 %v679, %v349
      %v689 = vmul.f32 %v683, %v353
      %v690 = vmul.f32 %v680, %v349
      %v691 = vmul.f32 %v684, %v353
      %v692 = vmul.f32 %v681, %v349
      %v693 = vmul.f32 %v685, %v353
      %v694 = vpack.c.bf16 %v688, %v686
      %v695 = vpack.c.bf16 %v689, %v687
      %v696 = vpack.c.bf16 %v692, %v690
      %v697 = vpack.c.bf16 %v693, %v691
      %698 = vst [vmem:[#allocation2 + $0x100] sm:$0xff] %v694
      %699 = vst [vmem:[#allocation2 + $0x108] sm:$0xff] %v695
      %700 = vst [vmem:[#allocation2 + $0x110] sm:$0xff] %v696
      %701 = vst [vmem:[#allocation2 + $0x118] sm:$0xff] %v697
      %v702 = vld [vmem:[%s1] sm:$0xff]
      %v703 = vld [vmem:[%s1 + $0x8] sm:$0xf]
      %v704 = vld [vmem:[%s1 + $0xc] sm:$0xff]
      %v705 = vld [vmem:[%s1 + $0x14] sm:$0xf]
      %v706 = vld [vmem:[%s1 + $0x18] sm:$0xff]
      %v707 = vld [vmem:[%s1 + $0x20] sm:$0xf]
      %v708 = vld [vmem:[%s1 + $0x24] sm:$0xff]
      %v709 = vld [vmem:[%s1 + $0x2c] sm:$0xf]
      %v710 = vld [vmem:[#allocation2] sm:$0xff]
      %v711 = vld [vmem:[#allocation2 + $0x8] sm:$0xff]
      %v712 = vld [vmem:[#allocation2 + $0x10] sm:$0xff]
      %v713 = vld [vmem:[#allocation2 + $0x18] sm:$0xff]
      %v714 = vld [vmem:[#allocation2 + $0x20] sm:$0xff]
      %v715 = vld [vmem:[#allocation2 + $0x28] sm:$0xff]
      %v716 = vld [vmem:[#allocation2 + $0x30] sm:$0xff]
      %v717 = vld [vmem:[#allocation2 + $0x38] sm:$0xff]
      %v718 = vld [vmem:[#allocation2 + $0x40] sm:$0xff]
      %v719 = vld [vmem:[#allocation2 + $0x48] sm:$0xff]
      %v720 = vld [vmem:[#allocation2 + $0x50] sm:$0xff]
      %v721 = vld [vmem:[#allocation2 + $0x58] sm:$0xff]
      %v722 = vld [vmem:[#allocation2 + $0x60] sm:$0xff]
      %v723 = vld [vmem:[#allocation2 + $0x68] sm:$0xff]
      %v724 = vld [vmem:[#allocation2 + $0x70] sm:$0xff]
      %v725 = vld [vmem:[#allocation2 + $0x78] sm:$0xff]
      %v726 = vld [vmem:[#allocation2 + $0x80] sm:$0xff]
      %v727 = vld [vmem:[#allocation2 + $0x88] sm:$0xff]
      %v728 = vld [vmem:[#allocation2 + $0x90] sm:$0xff]
      %v729 = vld [vmem:[#allocation2 + $0x98] sm:$0xff]
      %v730 = vld [vmem:[#allocation2 + $0xa0] sm:$0xff]
      %v731 = vld [vmem:[#allocation2 + $0xa8] sm:$0xff]
      %v732 = vld [vmem:[#allocation2 + $0xb0] sm:$0xff]
      %v733 = vld [vmem:[#allocation2 + $0xb8] sm:$0xff]
      %v734 = vld [vmem:[#allocation2 + $0xc0] sm:$0xff]
      %v735 = vld [vmem:[#allocation2 + $0xc8] sm:$0xff]
      %v736 = vld [vmem:[#allocation2 + $0xd0] sm:$0xff]
      %v737 = vld [vmem:[#allocation2 + $0xd8] sm:$0xff]
      %v738 = vld [vmem:[#allocation2 + $0xe0] sm:$0xff]
      %v739 = vld [vmem:[#allocation2 + $0xe8] sm:$0xff]
      %v740 = vld [vmem:[#allocation2 + $0xf0] sm:$0xff]
      %v741 = vld [vmem:[#allocation2 + $0xf8] sm:$0xff]
      %v742 = vld [vmem:[#allocation2 + $0x100] sm:$0xff]
      %v743 = vld [vmem:[#allocation2 + $0x108] sm:$0xff]
      %v744 = vld [vmem:[#allocation2 + $0x110] sm:$0xff]
      %v745 = vld [vmem:[#allocation2 + $0x118] sm:$0xff]
      %v746 = vld [vmem:[%s2] sm:$0xff]
      %v747 = vld [vmem:[%s2 + $0x8] sm:$0xff]
      %v748 = vld [vmem:[%s2 + $0x10] sm:$0xff]
      %v749 = vld [vmem:[%s2 + $0x18] sm:$0xff]
      %751 = vset.pattern.permute.xlu0 0
      %752 = vperm.xlu0 %751, %v746
      %v753 = vpop.permute.xlu0 %752
      %756 = vset.pattern.permute.xlu0 0
      %757 = vperm.xlu0 %756, %v747
      %v758 = vpop.permute.xlu0 %757
      %761 = vset.pattern.permute.xlu0 0
      %762 = vperm.xlu0 %761, %v748
      %v763 = vpop.permute.xlu0 %762
      %766 = vset.pattern.permute.xlu0 0
      %767 = vperm.xlu0 %766, %v749
      %v768 = vpop.permute.xlu0 %767
      %v778 = vunpack.c.l.b16 %v702
      %v779 = vunpack.c.h.b16 %v702
      %v780 = vunpack.c.l.b16 %v703
      %v781 = vunpack.c.l.b16 %v704
      %v782 = vunpack.c.h.b16 %v704
      %v783 = vunpack.c.l.b16 %v705
      %v784 = vunpack.c.l.b16 %v706
      %v785 = vunpack.c.h.b16 %v706
      %v786 = vunpack.c.l.b16 %v707
      %v787 = vunpack.c.l.b16 %v708
      %v788 = vunpack.c.h.b16 %v708
      %v789 = vunpack.c.l.b16 %v709
      %v790 = vpack.c.b16 %v781, %v778
      %v791 = vpack.c.b16 %v782, %v779
      %v792 = vpack.c.b16 %v783, %v780
      %v793 = vpack.c.b16 %v787, %v784
      %v794 = vpack.c.b16 %v788, %v785
      %v795 = vpack.c.b16 %v789, %v786
      %vm800 = vcmask 261120
      %v802 = vsel %vm800, %v792, 0
      %v805 = vsel %vm800, %v795, 0
      %807 = vmatprep.subr.bf16.mxu0 %v711
      %808 = vmatpush1.bf16.msra.mxu0 %v710
      %809 = vmatprep.subr.bf16.mxu0 %v713
      %810 = vmatpush1.bf16.msra.mxu0 %v712
      %811 = vmatprep.subr.bf16.mxu0 %v715
      %812 = vmatpush1.bf16.msra.mxu0 %v714
      %813 = vmatprep.subr.bf16.mxu0 %v717
      %814 = vmatpush1.bf16.msra.mxu0 %v716
      %815 = vmatprep.subr.bf16.mxu0 %v719
      %816 = vmatpush1.bf16.msra.mxu0 %v718
      %817 = vmatprep.subr.bf16.mxu0 %v721
      %818 = vmatpush1.bf16.msra.mxu0 %v720
      %819 = vmatprep.subr.bf16.mxu0 %v723
      %820 = vmatpush1.bf16.msra.mxu0 %v722
      %821 = vmatprep.subr.bf16.mxu0 %v725
      %822 = vmatpush1.bf16.msra.mxu0 %v724
      %823 = vmatprep.subr.bf16.mxu0 %v727
      %824 = vmatpush1.bf16.msra.mxu0 %v726
      %825 = vmatprep.subr.bf16.mxu0 %v729
      %826 = vmatpush1.bf16.msra.mxu0 %v728
      %827 = vmatprep.subr.bf16.mxu0 %v731
      %828 = vmatpush1.bf16.msra.mxu0 %v730
      %829 = vmatprep.subr.bf16.mxu0 %v733
      %830 = vmatpush1.bf16.msra.mxu0 %v732
      %831 = vmatprep.subr.bf16.mxu0 %v735
      %832 = vmatpush1.bf16.msra.mxu0 %v734
      %833 = vmatprep.subr.bf16.mxu0 %v737
      %834 = vmatpush1.bf16.msra.mxu0 %v736
      %835 = vmatprep.subr.bf16.mxu0 %v739
      %836 = vmatpush1.bf16.msra.mxu0 %v738
      %837 = vmatprep.subr.bf16.mxu0 %v741
      %838 = vmatpush1.bf16.msra.mxu0 %v740
      %839 = vmatprep.mubr.bf16.mxu0 %v791
      %840 = vmatmul.mubr.bf16.gmra.mrb[0].mxu0 %v790
      %v841 = vpop.f32.mrb[0].mxu0
      %v842 = vadd.f32 %v753, %v841
      %v843 = vpop.f32.mrb[0].mxu0
      %v844 = vadd.f32 %v753, %v843
      %v845 = vpop.f32.mrb[0].mxu0
      %v846 = vadd.f32 %v758, %v845
      %v847 = vpop.f32.mrb[0].mxu0
      %v848 = vadd.f32 %v758, %v847
      %849 = vmatprep.mubr.bf16.mxu0 %v794
      %850 = vmatmul.mubr.bf16.gmra.mrb[0].mxu0 %v793
      %v851 = vpop.f32.mrb[0].mxu0
      %v852 = vadd.f32 %v763, %v851
      %v853 = vpop.f32.mrb[0].mxu0
      %v854 = vadd.f32 %v763, %v853
      %v855 = vpop.f32.mrb[0].mxu0
      %v856 = vadd.f32 %v768, %v855
      %v857 = vpop.f32.mrb[0].mxu0
      %v858 = vadd.f32 %v768, %v857
      %859 = vdwg.mxu0
      %860 = vmatprep.subr.bf16.mxu0 %v743
      %861 = vmatpush1.bf16.msra.mxu0 %v742
      %862 = vmatprep.subr.bf16.mxu0 %v745
      %863 = vmatpush1.bf16.msra.mxu0 %v744
      %864 = vmatprep.subr.bf16.mxu0 0
      %865 = vmatpush1.bf16.msra.mxu0 0
      %866 = vmatprep.subr.bf16.mxu0 0
      %867 = vmatpush1.bf16.msra.mxu0 0
      %868 = vmatprep.subr.bf16.mxu0 0
      %869 = vmatpush1.bf16.msra.mxu0 0
      %870 = vmatprep.subr.bf16.mxu0 0
      %871 = vmatpush1.bf16.msra.mxu0 0
      %872 = vmatprep.subr.bf16.mxu0 0
      %873 = vmatpush1.bf16.msra.mxu0 0
      %874 = vmatprep.subr.bf16.mxu0 0
      %875 = vmatpush1.bf16.msra.mxu0 0
      %876 = vmatprep.subr.bf16.mxu0 0
      %877 = vmatpush1.bf16.msra.mxu0 0
      %878 = vmatprep.subr.bf16.mxu0 0
      %879 = vmatpush1.bf16.msra.mxu0 0
      %880 = vmatprep.subr.bf16.mxu0 0
      %881 = vmatpush1.bf16.msra.mxu0 0
      %882 = vmatprep.subr.bf16.mxu0 0
      %883 = vmatpush1.bf16.msra.mxu0 0
      %884 = vmatprep.subr.bf16.mxu0 0
      %885 = vmatpush1.bf16.msra.mxu0 0
      %886 = vmatprep.subr.bf16.mxu0 0
      %887 = vmatpush1.bf16.msra.mxu0 0
      %888 = vmatprep.subr.bf16.mxu0 0
      %889 = vmatpush1.bf16.msra.mxu0 0
      %890 = vmatprep.subr.bf16.mxu0 0
      %891 = vmatpush1.bf16.msra.mxu0 0
      %892 = vmatprep.mubr.bf16.mxu0 0
      %893 = vmatmul.mubr.bf16.gmra.mrb[0].mxu0 %v802
      %v894 = vpop.f32.mrb[0].mxu0
      %v895 = vadd.f32 %v842, %v894
      %v896 = vpop.f32.mrb[0].mxu0
      %v897 = vadd.f32 %v844, %v896
      %v898 = vpop.f32.mrb[0].mxu0
      %v899 = vadd.f32 %v846, %v898
      %v900 = vpop.f32.mrb[0].mxu0
      %v901 = vadd.f32 %v848, %v900
      %902 = vmatprep.mubr.bf16.mxu0 0
      %903 = vmatmul.mubr.bf16.gmra.mrb[0].mxu0 %v805
      %v904 = vpop.f32.mrb[0].mxu0
      %v905 = vadd.f32 %v852, %v904
      %v906 = vpop.f32.mrb[0].mxu0
      %v907 = vadd.f32 %v854, %v906
      %v908 = vpop.f32.mrb[0].mxu0
      %v909 = vadd.f32 %v856, %v908
      %v910 = vpop.f32.mrb[0].mxu0
      %v911 = vadd.f32 %v858, %v910
      %912 = vdwg.mxu0
      %v913 = vmax.f32 %v895, 0.0
      %v914 = vmax.f32 %v897, 0.0
      %v915 = vmax.f32 %v899, 0.0
      %v916 = vmax.f32 %v901, 0.0
      %v917 = vmax.f32 %v905, 0.0
      %v918 = vmax.f32 %v907, 0.0
      %v919 = vmax.f32 %v909, 0.0
      %v920 = vmax.f32 %v911, 0.0
      %921 = vrot.lane.b32.xlu0 %v913, 17
      %v922 = vpop.permute.xlu0 %921
      %923 = vrot.lane.b32.xlu0 %v915, 17
      %v924 = vpop.permute.xlu0 %923
      %925 = vrot.lane.b32.xlu0 %v917, 17
      %v926 = vpop.permute.xlu0 %925
      %927 = vrot.lane.b32.xlu0 %v919, 17
      %v928 = vpop.permute.xlu0 %927
      %929 = vrot.lane.b32.xlu0 %v914, 17
      %v930 = vpop.permute.xlu0 %929
      %931 = vrot.lane.b32.xlu0 %v916, 17
      %v932 = vpop.permute.xlu0 %931
      %933 = vrot.lane.b32.xlu0 %v918, 17
      %v934 = vpop.permute.xlu0 %933
      %935 = vrot.lane.b32.xlu0 %v920, 17
      %v936 = vpop.permute.xlu0 %935
      %v937 = vsel %vm382, %v922, %v930
      %v938 = vsel %vm382, %v924, %v932
      %v939 = vsel %vm382, %v926, %v934
      %v940 = vsel %vm382, %v928, %v936
      %v941 = vsel %vm382, %v930, %v922
      %v942 = vsel %vm382, %v932, %v924
      %v943 = vsel %vm382, %v934, %v926
      %v944 = vsel %vm382, %v936, %v928
      %v945 = vmul.f32 %v941, %v258
      %v946 = vmul.f32 %v937, %v262
      %v947 = vmul.f32 %v942, %v258
      %v948 = vmul.f32 %v938, %v262
      %v949 = vmul.f32 %v943, %v258
      %v950 = vmul.f32 %v939, %v262
      %v951 = vmul.f32 %v944, %v258
      %v952 = vmul.f32 %v940, %v262
      %v953 = vpack.c.bf16 %v947, %v945
      %v954 = vpack.c.bf16 %v948, %v946
      %v955 = vpack.c.bf16 %v951, %v949
      %v956 = vpack.c.bf16 %v952, %v950
      %957 = vst [vmem:[#allocation2] sm:$0xff] %v953
      %958 = vst [vmem:[#allocation2 + $0x8] sm:$0xff] %v954
      %959 = vst [vmem:[#allocation2 + $0x10] sm:$0xff] %v955
      %960 = vst [vmem:[#allocation2 + $0x18] sm:$0xff] %v956
      %961 = vrot.lane.b32.xlu0 %v913, 16
      %v962 = vpop.permute.xlu0 %961
      %963 = vrot.lane.b32.xlu0 %v915, 16
      %v964 = vpop.permute.xlu0 %963
      %965 = vrot.lane.b32.xlu0 %v917, 16
      %v966 = vpop.permute.xlu0 %965
      %967 = vrot.lane.b32.xlu0 %v919, 16
      %v968 = vpop.permute.xlu0 %967
      %969 = vrot.lane.b32.xlu0 %v914, 16
      %v970 = vpop.permute.xlu0 %969
      %971 = vrot.lane.b32.xlu0 %v916, 16
      %v972 = vpop.permute.xlu0 %971
      %973 = vrot.lane.b32.xlu0 %v918, 16
      %v974 = vpop.permute.xlu0 %973
      %975 = vrot.lane.b32.xlu0 %v920, 16
      %v976 = vpop.permute.xlu0 %975
      %v977 = vsel %vm423, %v962, %v970
      %v978 = vsel %vm423, %v964, %v972
      %v979 = vsel %vm423, %v966, %v974
      %v980 = vsel %vm423, %v968, %v976
      %v981 = vsel %vm423, %v970, %v962
      %v982 = vsel %vm423, %v972, %v964
      %v983 = vsel %vm423, %v974, %v966
      %v984 = vsel %vm423, %v976, %v968
      %v985 = vmul.f32 %v981, %v271
      %v986 = vmul.f32 %v977, %v275
      %v987 = vmul.f32 %v982, %v271
      %v988 = vmul.f32 %v978, %v275
      %v989 = vmul.f32 %v983, %v271
      %v990 = vmul.f32 %v979, %v275
      %v991 = vmul.f32 %v984, %v271
      %v992 = vmul.f32 %v980, %v275
      %v993 = vpack.c.bf16 %v987, %v985
      %v994 = vpack.c.bf16 %v988, %v986
      %v995 = vpack.c.bf16 %v991, %v989
      %v996 = vpack.c.bf16 %v992, %v990
      %997 = vst [vmem:[#allocation2 + $0x20] sm:$0xff] %v993
      %998 = vst [vmem:[#allocation2 + $0x28] sm:$0xff] %v994
      %999 = vst [vmem:[#allocation2 + $0x30] sm:$0xff] %v995
      %1000 = vst [vmem:[#allocation2 + $0x38] sm:$0xff] %v996
      %1001 = vrot.lane.b32.xlu0 %v913, 15
      %v1002 = vpop.permute.xlu0 %1001
      %1003 = vrot.lane.b32.xlu0 %v915, 15
      %v1004 = vpop.permute.xlu0 %1003
      %1005 = vrot.lane.b32.xlu0 %v917, 15
      %v1006 = vpop.permute.xlu0 %1005
      %1007 = vrot.lane.b32.xlu0 %v919, 15
      %v1008 = vpop.permute.xlu0 %1007
      %1009 = vrot.lane.b32.xlu0 %v914, 15
      %v1010 = vpop.permute.xlu0 %1009
      %1011 = vrot.lane.b32.xlu0 %v916, 15
      %v1012 = vpop.permute.xlu0 %1011
      %1013 = vrot.lane.b32.xlu0 %v918, 15
      %v1014 = vpop.permute.xlu0 %1013
      %1015 = vrot.lane.b32.xlu0 %v920, 15
      %v1016 = vpop.permute.xlu0 %1015
      %v1017 = vsel %vm464, %v1002, %v1010
      %v1018 = vsel %vm464, %v1004, %v1012
      %v1019 = vsel %vm464, %v1006, %v1014
      %v1020 = vsel %vm464, %v1008, %v1016
      %v1021 = vsel %vm464, %v1010, %v1002
      %v1022 = vsel %vm464, %v1012, %v1004
      %v1023 = vsel %vm464, %v1014, %v1006
      %v1024 = vsel %vm464, %v1016, %v1008
      %v1025 = vmul.f32 %v1021, %v284
      %v1026 = vmul.f32 %v1017, %v288
      %v1027 = vmul.f32 %v1022, %v284
      %v1028 = vmul.f32 %v1018, %v288
      %v1029 = vmul.f32 %v1023, %v284
      %v1030 = vmul.f32 %v1019, %v288
      %v1031 = vmul.f32 %v1024, %v284
      %v1032 = vmul.f32 %v1020, %v288
      %v1033 = vpack.c.bf16 %v1027, %v1025
      %v1034 = vpack.c.bf16 %v1028, %v1026
      %v1035 = vpack.c.bf16 %v1031, %v1029
      %v1036 = vpack.c.bf16 %v1032, %v1030
      %1037 = vst [vmem:[#allocation2 + $0x40] sm:$0xff] %v1033
      %1038 = vst [vmem:[#allocation2 + $0x48] sm:$0xff] %v1034
      %1039 = vst [vmem:[#allocation2 + $0x50] sm:$0xff] %v1035
      %1040 = vst [vmem:[#allocation2 + $0x58] sm:$0xff] %v1036
      %1041 = vrot.lane.b32.xlu0 %v913, 1
      %v1042 = vpop.permute.xlu0 %1041
      %1043 = vrot.lane.b32.xlu0 %v915, 1
      %v1044 = vpop.permute.xlu0 %1043
      %1045 = vrot.lane.b32.xlu0 %v917, 1
      %v1046 = vpop.permute.xlu0 %1045
      %1047 = vrot.lane.b32.xlu0 %v919, 1
      %v1048 = vpop.permute.xlu0 %1047
      %1049 = vrot.lane.b32.xlu0 %v914, 1
      %v1050 = vpop.permute.xlu0 %1049
      %1051 = vrot.lane.b32.xlu0 %v916, 1
      %v1052 = vpop.permute.xlu0 %1051
      %1053 = vrot.lane.b32.xlu0 %v918, 1
      %v1054 = vpop.permute.xlu0 %1053
      %1055 = vrot.lane.b32.xlu0 %v920, 1
      %v1056 = vpop.permute.xlu0 %1055
      %v1057 = vsel %vm505, %v1042, %v1050
      %v1058 = vsel %vm505, %v1044, %v1052
      %v1059 = vsel %vm505, %v1046, %v1054
      %v1060 = vsel %vm505, %v1048, %v1056
      %v1061 = vsel %vm505, %v1050, %v1042
      %v1062 = vsel %vm505, %v1052, %v1044
      %v1063 = vsel %vm505, %v1054, %v1046
      %v1064 = vsel %vm505, %v1056, %v1048
      %v1065 = vmul.f32 %v1061, %v297
      %v1066 = vmul.f32 %v1057, %v301
      %v1067 = vmul.f32 %v1062, %v297
      %v1068 = vmul.f32 %v1058, %v301
      %v1069 = vmul.f32 %v1063, %v297
      %v1070 = vmul.f32 %v1059, %v301
      %v1071 = vmul.f32 %v1064, %v297
      %v1072 = vmul.f32 %v1060, %v301
      %v1073 = vpack.c.bf16 %v1067, %v1065
      %v1074 = vpack.c.bf16 %v1068, %v1066
      %v1075 = vpack.c.bf16 %v1071, %v1069
      %v1076 = vpack.c.bf16 %v1072, %v1070
      %1077 = vst [vmem:[#allocation2 + $0x60] sm:$0xff] %v1073
      %1078 = vst [vmem:[#allocation2 + $0x68] sm:$0xff] %v1074
      %1079 = vst [vmem:[#allocation2 + $0x70] sm:$0xff] %v1075
      %1080 = vst [vmem:[#allocation2 + $0x78] sm:$0xff] %v1076
      %v1081 = vpack.c.bf16 %v915, %v913
      %v1082 = vpack.c.bf16 %v916, %v914
      %v1083 = vpack.c.bf16 %v919, %v917
      %v1084 = vpack.c.bf16 %v920, %v918
      %1085 = vst [vmem:[#allocation2 + $0x80] sm:$0xff] %v1081
      %1086 = vst [vmem:[#allocation2 + $0x88] sm:$0xff] %v1082
      %1087 = vst [vmem:[#allocation2 + $0x90] sm:$0xff] %v1083
      %1088 = vst [vmem:[#allocation2 + $0x98] sm:$0xff] %v1084
      %1089 = vrot.lane.b32.xlu0 %v913, 127
      %v1090 = vpop.permute.xlu0 %1089
      %1091 = vrot.lane.b32.xlu0 %v915, 127
      %v1092 = vpop.permute.xlu0 %1091
      %1093 = vrot.lane.b32.xlu0 %v917, 127
      %v1094 = vpop.permute.xlu0 %1093
      %1095 = vrot.lane.b32.xlu0 %v919, 127
      %v1096 = vpop.permute.xlu0 %1095
      %1097 = vrot.lane.b32.xlu0 %v914, 127
      %v1098 = vpop.permute.xlu0 %1097
      %1099 = vrot.lane.b32.xlu0 %v916, 127
      %v1100 = vpop.permute.xlu0 %1099
      %1101 = vrot.lane.b32.xlu0 %v918, 127
      %v1102 = vpop.permute.xlu0 %1101
      %1103 = vrot.lane.b32.xlu0 %v920, 127
      %v1104 = vpop.permute.xlu0 %1103
      %v1105 = vsel %vm554, %v1090, %v1098
      %v1106 = vsel %vm554, %v1092, %v1100
      %v1107 = vsel %vm554, %v1094, %v1102
      %v1108 = vsel %vm554, %v1096, %v1104
      %v1109 = vsel %vm554, %v1098, %v1090
      %v1110 = vsel %vm554, %v1100, %v1092
      %v1111 = vsel %vm554, %v1102, %v1094
      %v1112 = vsel %vm554, %v1104, %v1096
      %v1113 = vmul.f32 %v1105, %v310
      %v1114 = vmul.f32 %v1109, %v314
      %v1115 = vmul.f32 %v1106, %v310
      %v1116 = vmul.f32 %v1110, %v314
      %v1117 = vmul.f32 %v1107, %v310
      %v1118 = vmul.f32 %v1111, %v314
      %v1119 = vmul.f32 %v1108, %v310
      %v1120 = vmul.f32 %v1112, %v314
      %v1121 = vpack.c.bf16 %v1115, %v1113
      %v1122 = vpack.c.bf16 %v1116, %v1114
      %v1123 = vpack.c.bf16 %v1119, %v1117
      %v1124 = vpack.c.bf16 %v1120, %v1118
      %1125 = vst [vmem:[#allocation2 + $0xa0] sm:$0xff] %v1121
      %1126 = vst [vmem:[#allocation2 + $0xa8] sm:$0xff] %v1122
      %1127 = vst [vmem:[#allocation2 + $0xb0] sm:$0xff] %v1123
      %1128 = vst [vmem:[#allocation2 + $0xb8] sm:$0xff] %v1124
      %1129 = vrot.lane.b32.xlu0 %v913, 113
      %v1130 = vpop.permute.xlu0 %1129
      %1131 = vrot.lane.b32.xlu0 %v915, 113
      %v1132 = vpop.permute.xlu0 %1131
      %1133 = vrot.lane.b32.xlu0 %v917, 113
      %v1134 = vpop.permute.xlu0 %1133
      %1135 = vrot.lane.b32.xlu0 %v919, 113
      %v1136 = vpop.permute.xlu0 %1135
      %1137 = vrot.lane.b32.xlu0 %v914, 113
      %v1138 = vpop.permute.xlu0 %1137
      %1139 = vrot.lane.b32.xlu0 %v916, 113
      %v1140 = vpop.permute.xlu0 %1139
      %1141 = vrot.lane.b32.xlu0 %v918, 113
      %v1142 = vpop.permute.xlu0 %1141
      %1143 = vrot.lane.b32.xlu0 %v920, 113
      %v1144 = vpop.permute.xlu0 %1143
      %v1145 = vsel %vm595, %v1130, %v1138
      %v1146 = vsel %vm595, %v1132, %v1140
      %v1147 = vsel %vm595, %v1134, %v1142
      %v1148 = vsel %vm595, %v1136, %v1144
      %v1149 = vsel %vm595, %v1138, %v1130
      %v1150 = vsel %vm595, %v1140, %v1132
      %v1151 = vsel %vm595, %v1142, %v1134
      %v1152 = vsel %vm595, %v1144, %v1136
      %v1153 = vmul.f32 %v1145, %v323
      %v1154 = vmul.f32 %v1149, %v327
      %v1155 = vmul.f32 %v1146, %v323
      %v1156 = vmul.f32 %v1150, %v327
      %v1157 = vmul.f32 %v1147, %v323
      %v1158 = vmul.f32 %v1151, %v327
      %v1159 = vmul.f32 %v1148, %v323
      %v1160 = vmul.f32 %v1152, %v327
      %v1161 = vpack.c.bf16 %v1155, %v1153
      %v1162 = vpack.c.bf16 %v1156, %v1154
      %v1163 = vpack.c.bf16 %v1159, %v1157
      %v1164 = vpack.c.bf16 %v1160, %v1158
      %1165 = vst [vmem:[#allocation2 + $0xc0] sm:$0xff] %v1161
      %1166 = vst [vmem:[#allocation2 + $0xc8] sm:$0xff] %v1162
      %1167 = vst [vmem:[#allocation2 + $0xd0] sm:$0xff] %v1163
      %1168 = vst [vmem:[#allocation2 + $0xd8] sm:$0xff] %v1164
      %1169 = vrot.lane.b32.xlu0 %v913, 112
      %v1170 = vpop.permute.xlu0 %1169
      %1171 = vrot.lane.b32.xlu0 %v915, 112
      %v1172 = vpop.permute.xlu0 %1171
      %1173 = vrot.lane.b32.xlu0 %v917, 112
      %v1174 = vpop.permute.xlu0 %1173
      %1175 = vrot.lane.b32.xlu0 %v919, 112
      %v1176 = vpop.permute.xlu0 %1175
      %1177 = vrot.lane.b32.xlu0 %v914, 112
      %v1178 = vpop.permute.xlu0 %1177
      %1179 = vrot.lane.b32.xlu0 %v916, 112
      %v1180 = vpop.permute.xlu0 %1179
      %1181 = vrot.lane.b32.xlu0 %v918, 112
      %v1182 = vpop.permute.xlu0 %1181
      %1183 = vrot.lane.b32.xlu0 %v920, 112
      %v1184 = vpop.permute.xlu0 %1183
      %v1185 = vsel %vm636, %v1170, %v1178
      %v1186 = vsel %vm636, %v1172, %v1180
      %v1187 = vsel %vm636, %v1174, %v1182
      %v1188 = vsel %vm636, %v1176, %v1184
      %v1189 = vsel %vm636, %v1178, %v1170
      %v1190 = vsel %vm636, %v1180, %v1172
      %v1191 = vsel %vm636, %v1182, %v1174
      %v1192 = vsel %vm636, %v1184, %v1176
      %v1193 = vmul.f32 %v1185, %v336
      %v1194 = vmul.f32 %v1189, %v340
      %v1195 = vmul.f32 %v1186, %v336
      %v1196 = vmul.f32 %v1190, %v340
      %v1197 = vmul.f32 %v1187, %v336
      %v1198 = vmul.f32 %v1191, %v340
      %v1199 = vmul.f32 %v1188, %v336
      %v1200 = vmul.f32 %v1192, %v340
      %v1201 = vpack.c.bf16 %v1195, %v1193
      %v1202 = vpack.c.bf16 %v1196, %v1194
      %v1203 = vpack.c.bf16 %v1199, %v1197
      %v1204 = vpack.c.bf16 %v1200, %v1198
      %1205 = vst [vmem:[#allocation2 + $0xe0] sm:$0xff] %v1201
      %1206 = vst [vmem:[#allocation2 + $0xe8] sm:$0xff] %v1202
      %1207 = vst [vmem:[#allocation2 + $0xf0] sm:$0xff] %v1203
      %1208 = vst [vmem:[#allocation2 + $0xf8] sm:$0xff] %v1204
      %1209 = vrot.lane.b32.xlu0 %v913, 111
      %v1210 = vpop.permute.xlu0 %1209
      %1211 = vrot.lane.b32.xlu0 %v915, 111
      %v1212 = vpop.permute.xlu0 %1211
      %1213 = vrot.lane.b32.xlu0 %v917, 111
      %v1214 = vpop.permute.xlu0 %1213
      %1215 = vrot.lane.b32.xlu0 %v919, 111
      %v1216 = vpop.permute.xlu0 %1215
      %1217 = vrot.lane.b32.xlu0 %v914, 111
      %v1218 = vpop.permute.xlu0 %1217
      %1219 = vrot.lane.b32.xlu0 %v916, 111
      %v1220 = vpop.permute.xlu0 %1219
      %1221 = vrot.lane.b32.xlu0 %v918, 111
      %v1222 = vpop.permute.xlu0 %1221
      %1223 = vrot.lane.b32.xlu0 %v920, 111
      %v1224 = vpop.permute.xlu0 %1223
      %v1225 = vsel %vm677, %v1210, %v1218
      %v1226 = vsel %vm677, %v1212, %v1220
      %v1227 = vsel %vm677, %v1214, %v1222
      %v1228 = vsel %vm677, %v1216, %v1224
      %v1229 = vsel %vm677, %v1218, %v1210
      %v1230 = vsel %vm677, %v1220, %v1212
      %v1231 = vsel %vm677, %v1222, %v1214
      %v1232 = vsel %vm677, %v1224, %v1216
      %v1233 = vmul.f32 %v1225, %v349
      %v1234 = vmul.f32 %v1229, %v353
      %v1235 = vmul.f32 %v1226, %v349
      %v1236 = vmul.f32 %v1230, %v353
      %v1237 = vmul.f32 %v1227, %v349
      %v1238 = vmul.f32 %v1231, %v353
      %v1239 = vmul.f32 %v1228, %v349
      %v1240 = vmul.f32 %v1232, %v353
      %v1241 = vpack.c.bf16 %v1235, %v1233
      %v1242 = vpack.c.bf16 %v1236, %v1234
      %v1243 = vpack.c.bf16 %v1239, %v1237
      %v1244 = vpack.c.bf16 %v1240, %v1238
      %1245 = vst [vmem:[#allocation2 + $0x100] sm:$0xff] %v1241
      %1246 = vst [vmem:[#allocation2 + $0x108] sm:$0xff] %v1242
      %1247 = vst [vmem:[#allocation2 + $0x110] sm:$0xff] %v1243
      %1248 = vst [vmem:[#allocation2 + $0x118] sm:$0xff] %v1244
      %s1249 = scalar_lea.vmem %s1, 48
      %v1250 = vld [vmem:[%s1249] sm:$0xff]
      %v1251 = vld [vmem:[%s1249 + $0x8] sm:$0xf]
      %v1252 = vld [vmem:[%s1249 + $0xc] sm:$0xff]
      %v1253 = vld [vmem:[%s1249 + $0x14] sm:$0xf]
      %v1254 = vld [vmem:[%s1249 + $0x18] sm:$0xff]
      %v1255 = vld [vmem:[%s1249 + $0x20] sm:$0xf]
      %v1256 = vld [vmem:[%s1249 + $0x24] sm:$0xff]
      %v1257 = vld [vmem:[%s1249 + $0x2c] sm:$0xf]
      %v1258 = vld [vmem:[#allocation2] sm:$0xff]
      %v1259 = vld [vmem:[#allocation2 + $0x8] sm:$0xff]
      %v1260 = vld [vmem:[#allocation2 + $0x10] sm:$0xff]
      %v1261 = vld [vmem:[#allocation2 + $0x18] sm:$0xff]
      %v1262 = vld [vmem:[#allocation2 + $0x20] sm:$0xff]
      %v1263 = vld [vmem:[#allocation2 + $0x28] sm:$0xff]
      %v1264 = vld [vmem:[#allocation2 + $0x30] sm:$0xff]
      %v1265 = vld [vmem:[#allocation2 + $0x38] sm:$0xff]
      %v1266 = vld [vmem:[#allocation2 + $0x40] sm:$0xff]
      %v1267 = vld [vmem:[#allocation2 + $0x48] sm:$0xff]
      %v1268 = vld [vmem:[#allocation2 + $0x50] sm:$0xff]
      %v1269 = vld [vmem:[#allocation2 + $0x58] sm:$0xff]
      %v1270 = vld [vmem:[#allocation2 + $0x60] sm:$0xff]
      %v1271 = vld [vmem:[#allocation2 + $0x68] sm:$0xff]
      %v1272 = vld [vmem:[#allocation2 + $0x70] sm:$0xff]
      %v1273 = vld [vmem:[#allocation2 + $0x78] sm:$0xff]
      %v1274 = vld [vmem:[#allocation2 + $0x80] sm:$0xff]
      %v1275 = vld [vmem:[#allocation2 + $0x88] sm:$0xff]
      %v1276 = vld [vmem:[#allocation2 + $0x90] sm:$0xff]
      %v1277 = vld [vmem:[#allocation2 + $0x98] sm:$0xff]
      %v1278 = vld [vmem:[#allocation2 + $0xa0] sm:$0xff]
      %v1279 = vld [vmem:[#allocation2 + $0xa8] sm:$0xff]
      %v1280 = vld [vmem:[#allocation2 + $0xb0] sm:$0xff]
      %v1281 = vld [vmem:[#allocation2 + $0xb8] sm:$0xff]
      %v1282 = vld [vmem:[#allocation2 + $0xc0] sm:$0xff]
      %v1283 = vld [vmem:[#allocation2 + $0xc8] sm:$0xff]
      %v1284 = vld [vmem:[#allocation2 + $0xd0] sm:$0xff]
      %v1285 = vld [vmem:[#allocation2 + $0xd8] sm:$0xff]
      %v1286 = vld [vmem:[#allocation2 + $0xe0] sm:$0xff]
      %v1287 = vld [vmem:[#allocation2 + $0xe8] sm:$0xff]
      %v1288 = vld [vmem:[#allocation2 + $0xf0] sm:$0xff]
      %v1289 = vld [vmem:[#allocation2 + $0xf8] sm:$0xff]
      %v1290 = vld [vmem:[#allocation2 + $0x100] sm:$0xff]
      %v1291 = vld [vmem:[#allocation2 + $0x108] sm:$0xff]
      %v1292 = vld [vmem:[#allocation2 + $0x110] sm:$0xff]
      %v1293 = vld [vmem:[#allocation2 + $0x118] sm:$0xff]
      %s1294 = scalar_lea.vmem %s2, 32
      %v1295 = vld [vmem:[%s1294] sm:$0xff]
      %v1296 = vld [vmem:[%s1294 + $0x8] sm:$0xff]
      %v1297 = vld [vmem:[%s1294 + $0x10] sm:$0xff]
      %v1298 = vld [vmem:[%s1294 + $0x18] sm:$0xff]
      %1300 = vset.pattern.permute.xlu0 0
      %1301 = vperm.xlu0 %1300, %v1295
      %v1302 = vpop.permute.xlu0 %1301
      %1305 = vset.pattern.permute.xlu0 0
      %1306 = vperm.xlu0 %1305, %v1296
      %v1307 = vpop.permute.xlu0 %1306
      %1310 = vset.pattern.permute.xlu0 0
      %1311 = vperm.xlu0 %1310, %v1297
      %v1312 = vpop.permute.xlu0 %1311
      %1315 = vset.pattern.permute.xlu0 0
      %1316 = vperm.xlu0 %1315, %v1298
      %v1317 = vpop.permute.xlu0 %1316
      %v1327 = vunpack.c.l.b16 %v1250
      %v1328 = vunpack.c.h.b16 %v1250
      %v1329 = vunpack.c.l.b16 %v1251
      %v1330 = vunpack.c.l.b16 %v1252
      %v1331 = vunpack.c.h.b16 %v1252
      %v1332 = vunpack.c.l.b16 %v1253
      %v1333 = vunpack.c.l.b16 %v1254
      %v1334 = vunpack.c.h.b16 %v1254
      %v1335 = vunpack.c.l.b16 %v1255
      %v1336 = vunpack.c.l.b16 %v1256
      %v1337 = vunpack.c.h.b16 %v1256
      %v1338 = vunpack.c.l.b16 %v1257
      %v1339 = vpack.c.b16 %v1330, %v1327
      %v1340 = vpack.c.b16 %v1331, %v1328
      %v1341 = vpack.c.b16 %v1332, %v1329
      %v1342 = vpack.c.b16 %v1336, %v1333
      %v1343 = vpack.c.b16 %v1337, %v1334
      %v1344 = vpack.c.b16 %v1338, %v1335
      %v1350 = vsel %vm800, %v1341, 0
      %v1353 = vsel %vm800, %v1344, 0
      %1355 = vmatprep.subr.bf16.mxu0 %v1259
      %1356 = vmatpush1.bf16.msra.mxu0 %v1258
      %1357 = vmatprep.subr.bf16.mxu0 %v1261
      %1358 = vmatpush1.bf16.msra.mxu0 %v1260
      %1359 = vmatprep.subr.bf16.mxu0 %v1263
      %1360 = vmatpush1.bf16.msra.mxu0 %v1262
      %1361 = vmatprep.subr.bf16.mxu0 %v1265
      %1362 = vmatpush1.bf16.msra.mxu0 %v1264
      %1363 = vmatprep.subr.bf16.mxu0 %v1267
      %1364 = vmatpush1.bf16.msra.mxu0 %v1266
      %1365 = vmatprep.subr.bf16.mxu0 %v1269
      %1366 = vmatpush1.bf16.msra.mxu0 %v1268
      %1367 = vmatprep.subr.bf16.mxu0 %v1271
      %1368 = vmatpush1.bf16.msra.mxu0 %v1270
      %1369 = vmatprep.subr.bf16.mxu0 %v1273
      %1370 = vmatpush1.bf16.msra.mxu0 %v1272
      %1371 = vmatprep.subr.bf16.mxu0 %v1275
      %1372 = vmatpush1.bf16.msra.mxu0 %v1274
      %1373 = vmatprep.subr.bf16.mxu0 %v1277
      %1374 = vmatpush1.bf16.msra.mxu0 %v1276
      %1375 = vmatprep.subr.bf16.mxu0 %v1279
      %1376 = vmatpush1.bf16.msra.mxu0 %v1278
      %1377 = vmatprep.subr.bf16.mxu0 %v1281
      %1378 = vmatpush1.bf16.msra.mxu0 %v1280
      %1379 = vmatprep.subr.bf16.mxu0 %v1283
      %1380 = vmatpush1.bf16.msra.mxu0 %v1282
      %1381 = vmatprep.subr.bf16.mxu0 %v1285
      %1382 = vmatpush1.bf16.msra.mxu0 %v1284
      %1383 = vmatprep.subr.bf16.mxu0 %v1287
      %1384 = vmatpush1.bf16.msra.mxu0 %v1286
      %1385 = vmatprep.subr.bf16.mxu0 %v1289
      %1386 = vmatpush1.bf16.msra.mxu0 %v1288
      %1387 = vmatprep.mubr.bf16.mxu0 %v1340
      %1388 = vmatmul.mubr.bf16.gmra.mrb[0].mxu0 %v1339
      %v1389 = vpop.f32.mrb[0].mxu0
      %v1390 = vadd.f32 %v1302, %v1389
      %v1391 = vpop.f32.mrb[0].mxu0
      %v1392 = vadd.f32 %v1302, %v1391
      %v1393 = vpop.f32.mrb[0].mxu0
      %v1394 = vadd.f32 %v1307, %v1393
      %v1395 = vpop.f32.mrb[0].mxu0
      %v1396 = vadd.f32 %v1307, %v1395
      %1397 = vmatprep.mubr.bf16.mxu0 %v1343
      %1398 = vmatmul.mubr.bf16.gmra.mrb[0].mxu0 %v1342
      %v1399 = vpop.f32.mrb[0].mxu0
      %v1400 = vadd.f32 %v1312, %v1399
      %v1401 = vpop.f32.mrb[0].mxu0
      %v1402 = vadd.f32 %v1312, %v1401
      %v1403 = vpop.f32.mrb[0].mxu0
      %v1404 = vadd.f32 %v1317, %v1403
      %v1405 = vpop.f32.mrb[0].mxu0
      %v1406 = vadd.f32 %v1317, %v1405
      %1407 = vdwg.mxu0
      %1408 = vmatprep.subr.bf16.mxu0 %v1291
      %1409 = vmatpush1.bf16.msra.mxu0 %v1290
      %1410 = vmatprep.subr.bf16.mxu0 %v1293
      %1411 = vmatpush1.bf16.msra.mxu0 %v1292
      %1412 = vmatprep.subr.bf16.mxu0 0
      %1413 = vmatpush1.bf16.msra.mxu0 0
      %1414 = vmatprep.subr.bf16.mxu0 0
      %1415 = vmatpush1.bf16.msra.mxu0 0
      %1416 = vmatprep.subr.bf16.mxu0 0
      %1417 = vmatpush1.bf16.msra.mxu0 0
      %1418 = vmatprep.subr.bf16.mxu0 0
      %1419 = vmatpush1.bf16.msra.mxu0 0
      %1420 = vmatprep.subr.bf16.mxu0 0
      %1421 = vmatpush1.bf16.msra.mxu0 0
      %1422 = vmatprep.subr.bf16.mxu0 0
      %1423 = vmatpush1.bf16.msra.mxu0 0
      %1424 = vmatprep.subr.bf16.mxu0 0
      %1425 = vmatpush1.bf16.msra.mxu0 0
      %1426 = vmatprep.subr.bf16.mxu0 0
      %1427 = vmatpush1.bf16.msra.mxu0 0
      %1428 = vmatprep.subr.bf16.mxu0 0
      %1429 = vmatpush1.bf16.msra.mxu0 0
      %1430 = vmatprep.subr.bf16.mxu0 0
      %1431 = vmatpush1.bf16.msra.mxu0 0
      %1432 = vmatprep.subr.bf16.mxu0 0
      %1433 = vmatpush1.bf16.msra.mxu0 0
      %1434 = vmatprep.subr.bf16.mxu0 0
      %1435 = vmatpush1.bf16.msra.mxu0 0
      %1436 = vmatprep.subr.bf16.mxu0 0
      %1437 = vmatpush1.bf16.msra.mxu0 0
      %1438 = vmatprep.subr.bf16.mxu0 0
      %1439 = vmatpush1.bf16.msra.mxu0 0
      %1440 = vmatprep.mubr.bf16.mxu0 0
      %1441 = vmatmul.mubr.bf16.gmra.mrb[0].mxu0 %v1350
      %v1442 = vpop.f32.mrb[0].mxu0
      %v1443 = vadd.f32 %v1390, %v1442
      %v1444 = vpop.f32.mrb[0].mxu0
      %v1445 = vadd.f32 %v1392, %v1444
      %v1446 = vpop.f32.mrb[0].mxu0
      %v1447 = vadd.f32 %v1394, %v1446
      %v1448 = vpop.f32.mrb[0].mxu0
      %v1449 = vadd.f32 %v1396, %v1448
      %1450 = vmatprep.mubr.bf16.mxu0 0
      %1451 = vmatmul.mubr.bf16.gmra.mrb[0].mxu0 %v1353
      %v1452 = vpop.f32.mrb[0].mxu0
      %v1453 = vadd.f32 %v1400, %v1452
      %v1454 = vpop.f32.mrb[0].mxu0
      %v1455 = vadd.f32 %v1402, %v1454
      %v1456 = vpop.f32.mrb[0].mxu0
      %v1457 = vadd.f32 %v1404, %v1456
      %v1458 = vpop.f32.mrb[0].mxu0
      %v1459 = vadd.f32 %v1406, %v1458
      %1460 = vdwg.mxu0
      %v1461 = vmax.f32 %v1443, 0.0
      %v1462 = vmax.f32 %v1445, 0.0
      %v1463 = vmax.f32 %v1447, 0.0
      %v1464 = vmax.f32 %v1449, 0.0
      %v1465 = vmax.f32 %v1453, 0.0
      %v1466 = vmax.f32 %v1455, 0.0
      %v1467 = vmax.f32 %v1457, 0.0
      %v1468 = vmax.f32 %v1459, 0.0
      %1469 = vrot.lane.b32.xlu0 %v1461, 17
      %v1470 = vpop.permute.xlu0 %1469
      %1471 = vrot.lane.b32.xlu0 %v1463, 17
      %v1472 = vpop.permute.xlu0 %1471
      %1473 = vrot.lane.b32.xlu0 %v1465, 17
      %v1474 = vpop.permute.xlu0 %1473
      %1475 = vrot.lane.b32.xlu0 %v1467, 17
      %v1476 = vpop.permute.xlu0 %1475
      %1477 = vrot.lane.b32.xlu0 %v1462, 17
      %v1478 = vpop.permute.xlu0 %1477
      %1479 = vrot.lane.b32.xlu0 %v1464, 17
      %v1480 = vpop.permute.xlu0 %1479
      %1481 = vrot.lane.b32.xlu0 %v1466, 17
      %v1482 = vpop.permute.xlu0 %1481
      %1483 = vrot.lane.b32.xlu0 %v1468, 17
      %v1484 = vpop.permute.xlu0 %1483
      %v1485 = vsel %vm382, %v1470, %v1478
      %v1486 = vsel %vm382, %v1472, %v1480
      %v1487 = vsel %vm382, %v1474, %v1482
      %v1488 = vsel %vm382, %v1476, %v1484
      %v1489 = vsel %vm382, %v1478, %v1470
      %v1490 = vsel %vm382, %v1480, %v1472
      %v1491 = vsel %vm382, %v1482, %v1474
      %v1492 = vsel %vm382, %v1484, %v1476
      %v1493 = vmul.f32 %v1489, %v258
      %v1494 = vmul.f32 %v1485, %v262
      %v1495 = vmul.f32 %v1490, %v258
      %v1496 = vmul.f32 %v1486, %v262
      %v1497 = vmul.f32 %v1491, %v258
      %v1498 = vmul.f32 %v1487, %v262
      %v1499 = vmul.f32 %v1492, %v258
      %v1500 = vmul.f32 %v1488, %v262
      %v1501 = vpack.c.bf16 %v1495, %v1493
      %v1502 = vpack.c.bf16 %v1496, %v1494
      %v1503 = vpack.c.bf16 %v1499, %v1497
      %v1504 = vpack.c.bf16 %v1500, %v1498
      %1505 = vst [vmem:[#allocation2] sm:$0xff] %v1501
      %1506 = vst [vmem:[#allocation2 + $0x8] sm:$0xff] %v1502
      %1507 = vst [vmem:[#allocation2 + $0x10] sm:$0xff] %v1503
      %1508 = vst [vmem:[#allocation2 + $0x18] sm:$0xff] %v1504
      %1509 = vrot.lane.b32.xlu0 %v1461, 16
      %v1510 = vpop.permute.xlu0 %1509
      %1511 = vrot.lane.b32.xlu0 %v1463, 16
      %v1512 = vpop.permute.xlu0 %1511
      %1513 = vrot.lane.b32.xlu0 %v1465, 16
      %v1514 = vpop.permute.xlu0 %1513
      %1515 = vrot.lane.b32.xlu0 %v1467, 16
      %v1516 = vpop.permute.xlu0 %1515
      %1517 = vrot.lane.b32.xlu0 %v1462, 16
      %v1518 = vpop.permute.xlu0 %1517
      %1519 = vrot.lane.b32.xlu0 %v1464, 16
      %v1520 = vpop.permute.xlu0 %1519
      %1521 = vrot.lane.b32.xlu0 %v1466, 16
      %v1522 = vpop.permute.xlu0 %1521
      %1523 = vrot.lane.b32.xlu0 %v1468, 16
      %v1524 = vpop.permute.xlu0 %1523
      %v1525 = vsel %vm423, %v1510, %v1518
      %v1526 = vsel %vm423, %v1512, %v1520
      %v1527 = vsel %vm423, %v1514, %v1522
      %v1528 = vsel %vm423, %v1516, %v1524
      %v1529 = vsel %vm423, %v1518, %v1510
      %v1530 = vsel %vm423, %v1520, %v1512
      %v1531 = vsel %vm423, %v1522, %v1514
      %v1532 = vsel %vm423, %v1524, %v1516
      %v1533 = vmul.f32 %v1529, %v271
      %v1534 = vmul.f32 %v1525, %v275
      %v1535 = vmul.f32 %v1530, %v271
      %v1536 = vmul.f32 %v1526, %v275
      %v1537 = vmul.f32 %v1531, %v271
      %v1538 = vmul.f32 %v1527, %v275
      %v1539 = vmul.f32 %v1532, %v271
      %v1540 = vmul.f32 %v1528, %v275
      %v1541 = vpack.c.bf16 %v1535, %v1533
      %v1542 = vpack.c.bf16 %v1536, %v1534
      %v1543 = vpack.c.bf16 %v1539, %v1537
      %v1544 = vpack.c.bf16 %v1540, %v1538
      %1545 = vst [vmem:[#allocation2 + $0x20] sm:$0xff] %v1541
      %1546 = vst [vmem:[#allocation2 + $0x28] sm:$0xff] %v1542
      %1547 = vst [vmem:[#allocation2 + $0x30] sm:$0xff] %v1543
      %1548 = vst [vmem:[#allocation2 + $0x38] sm:$0xff] %v1544
      %1549 = vrot.lane.b32.xlu0 %v1461, 15
      %v1550 = vpop.permute.xlu0 %1549
      %1551 = vrot.lane.b32.xlu0 %v1463, 15
      %v1552 = vpop.permute.xlu0 %1551
      %1553 = vrot.lane.b32.xlu0 %v1465, 15
      %v1554 = vpop.permute.xlu0 %1553
      %1555 = vrot.lane.b32.xlu0 %v1467, 15
      %v1556 = vpop.permute.xlu0 %1555
      %1557 = vrot.lane.b32.xlu0 %v1462, 15
      %v1558 = vpop.permute.xlu0 %1557
      %1559 = vrot.lane.b32.xlu0 %v1464, 15
      %v1560 = vpop.permute.xlu0 %1559
      %1561 = vrot.lane.b32.xlu0 %v1466, 15
      %v1562 = vpop.permute.xlu0 %1561
      %1563 = vrot.lane.b32.xlu0 %v1468, 15
      %v1564 = vpop.permute.xlu0 %1563
      %v1565 = vsel %vm464, %v1550, %v1558
      %v1566 = vsel %vm464, %v1552, %v1560
      %v1567 = vsel %vm464, %v1554, %v1562
      %v1568 = vsel %vm464, %v1556, %v1564
      %v1569 = vsel %vm464, %v1558, %v1550
      %v1570 = vsel %vm464, %v1560, %v1552
      %v1571 = vsel %vm464, %v1562, %v1554
      %v1572 = vsel %vm464, %v1564, %v1556
      %v1573 = vmul.f32 %v1569, %v284
      %v1574 = vmul.f32 %v1565, %v288
      %v1575 = vmul.f32 %v1570, %v284
      %v1576 = vmul.f32 %v1566, %v288
      %v1577 = vmul.f32 %v1571, %v284
      %v1578 = vmul.f32 %v1567, %v288
      %v1579 = vmul.f32 %v1572, %v284
      %v1580 = vmul.f32 %v1568, %v288
      %v1581 = vpack.c.bf16 %v1575, %v1573
      %v1582 = vpack.c.bf16 %v1576, %v1574
      %v1583 = vpack.c.bf16 %v1579, %v1577
      %v1584 = vpack.c.bf16 %v1580, %v1578
      %1585 = vst [vmem:[#allocation2 + $0x40] sm:$0xff] %v1581
      %1586 = vst [vmem:[#allocation2 + $0x48] sm:$0xff] %v1582
      %1587 = vst [vmem:[#allocation2 + $0x50] sm:$0xff] %v1583
      %1588 = vst [vmem:[#allocation2 + $0x58] sm:$0xff] %v1584
      %1589 = vrot.lane.b32.xlu0 %v1461, 1
      %v1590 = vpop.permute.xlu0 %1589
      %1591 = vrot.lane.b32.xlu0 %v1463, 1
      %v1592 = vpop.permute.xlu0 %1591
      %1593 = vrot.lane.b32.xlu0 %v1465, 1
      %v1594 = vpop.permute.xlu0 %1593
      %1595 = vrot.lane.b32.xlu0 %v1467, 1
      %v1596 = vpop.permute.xlu0 %1595
      %1597 = vrot.lane.b32.xlu0 %v1462, 1
      %v1598 = vpop.permute.xlu0 %1597
      %1599 = vrot.lane.b32.xlu0 %v1464, 1
      %v1600 = vpop.permute.xlu0 %1599
      %1601 = vrot.lane.b32.xlu0 %v1466, 1
      %v1602 = vpop.permute.xlu0 %1601
      %1603 = vrot.lane.b32.xlu0 %v1468, 1
      %v1604 = vpop.permute.xlu0 %1603
      %v1605 = vsel %vm505, %v1590, %v1598
      %v1606 = vsel %vm505, %v1592, %v1600
      %v1607 = vsel %vm505, %v1594, %v1602
      %v1608 = vsel %vm505, %v1596, %v1604
      %v1609 = vsel %vm505, %v1598, %v1590
      %v1610 = vsel %vm505, %v1600, %v1592
      %v1611 = vsel %vm505, %v1602, %v1594
      %v1612 = vsel %vm505, %v1604, %v1596
      %v1613 = vmul.f32 %v1609, %v297
      %v1614 = vmul.f32 %v1605, %v301
      %v1615 = vmul.f32 %v1610, %v297
      %v1616 = vmul.f32 %v1606, %v301
      %v1617 = vmul.f32 %v1611, %v297
      %v1618 = vmul.f32 %v1607, %v301
      %v1619 = vmul.f32 %v1612, %v297
      %v1620 = vmul.f32 %v1608, %v301
      %v1621 = vpack.c.bf16 %v1615, %v1613
      %v1622 = vpack.c.bf16 %v1616, %v1614
      %v1623 = vpack.c.bf16 %v1619, %v1617
      %v1624 = vpack.c.bf16 %v1620, %v1618
      %1625 = vst [vmem:[#allocation2 + $0x60] sm:$0xff] %v1621
      %1626 = vst [vmem:[#allocation2 + $0x68] sm:$0xff] %v1622
      %1627 = vst [vmem:[#allocation2 + $0x70] sm:$0xff] %v1623
      %1628 = vst [vmem:[#allocation2 + $0x78] sm:$0xff] %v1624
      %v1629 = vpack.c.bf16 %v1463, %v1461
      %v1630 = vpack.c.bf16 %v1464, %v1462
      %v1631 = vpack.c.bf16 %v1467, %v1465
      %v1632 = vpack.c.bf16 %v1468, %v1466
      %1633 = vst [vmem:[#allocation2 + $0x80] sm:$0xff] %v1629
      %1634 = vst [vmem:[#allocation2 + $0x88] sm:$0xff] %v1630
      %1635 = vst [vmem:[#allocation2 + $0x90] sm:$0xff] %v1631
      %1636 = vst [vmem:[#allocation2 + $0x98] sm:$0xff] %v1632
      %1637 = vrot.lane.b32.xlu0 %v1461, 127
      %v1638 = vpop.permute.xlu0 %1637
      %1639 = vrot.lane.b32.xlu0 %v1463, 127
      %v1640 = vpop.permute.xlu0 %1639
      %1641 = vrot.lane.b32.xlu0 %v1465, 127
      %v1642 = vpop.permute.xlu0 %1641
      %1643 = vrot.lane.b32.xlu0 %v1467, 127
      %v1644 = vpop.permute.xlu0 %1643
      %1645 = vrot.lane.b32.xlu0 %v1462, 127
      %v1646 = vpop.permute.xlu0 %1645
      %1647 = vrot.lane.b32.xlu0 %v1464, 127
      %v1648 = vpop.permute.xlu0 %1647
      %1649 = vrot.lane.b32.xlu0 %v1466, 127
      %v1650 = vpop.permute.xlu0 %1649
      %1651 = vrot.lane.b32.xlu0 %v1468, 127
      %v1652 = vpop.permute.xlu0 %1651
      %v1653 = vsel %vm554, %v1638, %v1646
      %v1654 = vsel %vm554, %v1640, %v1648
      %v1655 = vsel %vm554, %v1642, %v1650
      %v1656 = vsel %vm554, %v1644, %v1652
      %v1657 = vsel %vm554, %v1646, %v1638
      %v1658 = vsel %vm554, %v1648, %v1640
      %v1659 = vsel %vm554, %v1650, %v1642
      %v1660 = vsel %vm554, %v1652, %v1644
      %v1661 = vmul.f32 %v1653, %v310
      %v1662 = vmul.f32 %v1657, %v314
      %v1663 = vmul.f32 %v1654, %v310
      %v1664 = vmul.f32 %v1658, %v314
      %v1665 = vmul.f32 %v1655, %v310
      %v1666 = vmul.f32 %v1659, %v314
      %v1667 = vmul.f32 %v1656, %v310
      %v1668 = vmul.f32 %v1660, %v314
      %v1669 = vpack.c.bf16 %v1663, %v1661
      %v1670 = vpack.c.bf16 %v1664, %v1662
      %v1671 = vpack.c.bf16 %v1667, %v1665
      %v1672 = vpack.c.bf16 %v1668, %v1666
      %1673 = vst [vmem:[#allocation2 + $0xa0] sm:$0xff] %v1669
      %1674 = vst [vmem:[#allocation2 + $0xa8] sm:$0xff] %v1670
      %1675 = vst [vmem:[#allocation2 + $0xb0] sm:$0xff] %v1671
      %1676 = vst [vmem:[#allocation2 + $0xb8] sm:$0xff] %v1672
      %1677 = vrot.lane.b32.xlu0 %v1461, 113
      %v1678 = vpop.permute.xlu0 %1677
      %1679 = vrot.lane.b32.xlu0 %v1463, 113
      %v1680 = vpop.permute.xlu0 %1679
      %1681 = vrot.lane.b32.xlu0 %v1465, 113
      %v1682 = vpop.permute.xlu0 %1681
      %1683 = vrot.lane.b32.xlu0 %v1467, 113
      %v1684 = vpop.permute.xlu0 %1683
      %1685 = vrot.lane.b32.xlu0 %v1462, 113
      %v1686 = vpop.permute.xlu0 %1685
      %1687 = vrot.lane.b32.xlu0 %v1464, 113
      %v1688 = vpop.permute.xlu0 %1687
      %1689 = vrot.lane.b32.xlu0 %v1466, 113
      %v1690 = vpop.permute.xlu0 %1689
      %1691 = vrot.lane.b32.xlu0 %v1468, 113
      %v1692 = vpop.permute.xlu0 %1691
      %v1693 = vsel %vm595, %v1678, %v1686
      %v1694 = vsel %vm595, %v1680, %v1688
      %v1695 = vsel %vm595, %v1682, %v1690
      %v1696 = vsel %vm595, %v1684, %v1692
      %v1697 = vsel %vm595, %v1686, %v1678
      %v1698 = vsel %vm595, %v1688, %v1680
      %v1699 = vsel %vm595, %v1690, %v1682
      %v1700 = vsel %vm595, %v1692, %v1684
      %v1701 = vmul.f32 %v1693, %v323
      %v1702 = vmul.f32 %v1697, %v327
      %v1703 = vmul.f32 %v1694, %v323
      %v1704 = vmul.f32 %v1698, %v327
      %v1705 = vmul.f32 %v1695, %v323
      %v1706 = vmul.f32 %v1699, %v327
      %v1707 = vmul.f32 %v1696, %v323
      %v1708 = vmul.f32 %v1700, %v327
      %v1709 = vpack.c.bf16 %v1703, %v1701
      %v1710 = vpack.c.bf16 %v1704, %v1702
      %v1711 = vpack.c.bf16 %v1707, %v1705
      %v1712 = vpack.c.bf16 %v1708, %v1706
      %1713 = vst [vmem:[#allocation2 + $0xc0] sm:$0xff] %v1709
      %1714 = vst [vmem:[#allocation2 + $0xc8] sm:$0xff] %v1710
      %1715 = vst [vmem:[#allocation2 + $0xd0] sm:$0xff] %v1711
      %1716 = vst [vmem:[#allocation2 + $0xd8] sm:$0xff] %v1712
      %1717 = vrot.lane.b32.xlu0 %v1461, 112
      %v1718 = vpop.permute.xlu0 %1717
      %1719 = vrot.lane.b32.xlu0 %v1463, 112
      %v1720 = vpop.permute.xlu0 %1719
      %1721 = vrot.lane.b32.xlu0 %v1465, 112
      %v1722 = vpop.permute.xlu0 %1721
      %1723 = vrot.lane.b32.xlu0 %v1467, 112
      %v1724 = vpop.permute.xlu0 %1723
      %1725 = vrot.lane.b32.xlu0 %v1462, 112
      %v1726 = vpop.permute.xlu0 %1725
      %1727 = vrot.lane.b32.xlu0 %v1464, 112
      %v1728 = vpop.permute.xlu0 %1727
      %1729 = vrot.lane.b32.xlu0 %v1466, 112
      %v1730 = vpop.permute.xlu0 %1729
      %1731 = vrot.lane.b32.xlu0 %v1468, 112
      %v1732 = vpop.permute.xlu0 %1731
      %v1733 = vsel %vm636, %v1718, %v1726
      %v1734 = vsel %vm636, %v1720, %v1728
      %v1735 = vsel %vm636, %v1722, %v1730
      %v1736 = vsel %vm636, %v1724, %v1732
      %v1737 = vsel %vm636, %v1726, %v1718
      %v1738 = vsel %vm636, %v1728, %v1720
      %v1739 = vsel %vm636, %v1730, %v1722
      %v1740 = vsel %vm636, %v1732, %v1724
      %v1741 = vmul.f32 %v1733, %v336
      %v1742 = vmul.f32 %v1737, %v340
      %v1743 = vmul.f32 %v1734, %v336
      %v1744 = vmul.f32 %v1738, %v340
      %v1745 = vmul.f32 %v1735, %v336
      %v1746 = vmul.f32 %v1739, %v340
      %v1747 = vmul.f32 %v1736, %v336
      %v1748 = vmul.f32 %v1740, %v340
      %v1749 = vpack.c.bf16 %v1743, %v1741
      %v1750 = vpack.c.bf16 %v1744, %v1742
      %v1751 = vpack.c.bf16 %v1747, %v1745
      %v1752 = vpack.c.bf16 %v1748, %v1746
      %1753 = vst [vmem:[#allocation2 + $0xe0] sm:$0xff] %v1749
      %1754 = vst [vmem:[#allocation2 + $0xe8] sm:$0xff] %v1750
      %1755 = vst [vmem:[#allocation2 + $0xf0] sm:$0xff] %v1751
      %1756 = vst [vmem:[#allocation2 + $0xf8] sm:$0xff] %v1752
      %1757 = vrot.lane.b32.xlu0 %v1461, 111
      %v1758 = vpop.permute.xlu0 %1757
      %1759 = vrot.lane.b32.xlu0 %v1463, 111
      %v1760 = vpop.permute.xlu0 %1759
      %1761 = vrot.lane.b32.xlu0 %v1465, 111
      %v1762 = vpop.permute.xlu0 %1761
      %1763 = vrot.lane.b32.xlu0 %v1467, 111
      %v1764 = vpop.permute.xlu0 %1763
      %1765 = vrot.lane.b32.xlu0 %v1462, 111
      %v1766 = vpop.permute.xlu0 %1765
      %1767 = vrot.lane.b32.xlu0 %v1464, 111
      %v1768 = vpop.permute.xlu0 %1767
      %1769 = vrot.lane.b32.xlu0 %v1466, 111
      %v1770 = vpop.permute.xlu0 %1769
      %1771 = vrot.lane.b32.xlu0 %v1468, 111
      %v1772 = vpop.permute.xlu0 %1771
      %v1773 = vsel %vm677, %v1758, %v1766
      %v1774 = vsel %vm677, %v1760, %v1768
      %v1775 = vsel %vm677, %v1762, %v1770
      %v1776 = vsel %vm677, %v1764, %v1772
      %v1777 = vsel %vm677, %v1766, %v1758
      %v1778 = vsel %vm677, %v1768, %v1760
      %v1779 = vsel %vm677, %v1770, %v1762
      %v1780 = vsel %vm677, %v1772, %v1764
      %v1781 = vmul.f32 %v1773, %v349
      %v1782 = vmul.f32 %v1777, %v353
      %v1783 = vmul.f32 %v1774, %v349
      %v1784 = vmul.f32 %v1778, %v353
      %v1785 = vmul.f32 %v1775, %v349
      %v1786 = vmul.f32 %v1779, %v353
      %v1787 = vmul.f32 %v1776, %v349
      %v1788 = vmul.f32 %v1780, %v353
      %v1789 = vpack.c.bf16 %v1783, %v1781
      %v1790 = vpack.c.bf16 %v1784, %v1782
      %v1791 = vpack.c.bf16 %v1787, %v1785
      %v1792 = vpack.c.bf16 %v1788, %v1786
      %1793 = vst [vmem:[#allocation2 + $0x100] sm:$0xff] %v1789
      %1794 = vst [vmem:[#allocation2 + $0x108] sm:$0xff] %v1790
      %1795 = vst [vmem:[#allocation2 + $0x110] sm:$0xff] %v1791
      %1796 = vst [vmem:[#allocation2 + $0x118] sm:$0xff] %v1792
      %s1797 = scalar_lea.vmem %s1, 96
      %v1798 = vld [vmem:[%s1797] sm:$0xff]
      %v1799 = vld [vmem:[%s1797 + $0x8] sm:$0xf]
      %v1800 = vld [vmem:[%s1797 + $0xc] sm:$0xff]
      %v1801 = vld [vmem:[%s1797 + $0x14] sm:$0xf]
      %v1802 = vld [vmem:[%s1797 + $0x18] sm:$0xff]
      %v1803 = vld [vmem:[%s1797 + $0x20] sm:$0xf]
      %v1804 = vld [vmem:[%s1797 + $0x24] sm:$0xff]
      %v1805 = vld [vmem:[%s1797 + $0x2c] sm:$0xf]
      %v1806 = vld [vmem:[#allocation2] sm:$0xff]
      %v1807 = vld [vmem:[#allocation2 + $0x8] sm:$0xff]
      %v1808 = vld [vmem:[#allocation2 + $0x10] sm:$0xff]
      %v1809 = vld [vmem:[#allocation2 + $0x18] sm:$0xff]
      %v1810 = vld [vmem:[#allocation2 + $0x20] sm:$0xff]
      %v1811 = vld [vmem:[#allocation2 + $0x28] sm:$0xff]
      %v1812 = vld [vmem:[#allocation2 + $0x30] sm:$0xff]
      %v1813 = vld [vmem:[#allocation2 + $0x38] sm:$0xff]
      %v1814 = vld [vmem:[#allocation2 + $0x40] sm:$0xff]
      %v1815 = vld [vmem:[#allocation2 + $0x48] sm:$0xff]
      %v1816 = vld [vmem:[#allocation2 + $0x50] sm:$0xff]
      %v1817 = vld [vmem:[#allocation2 + $0x58] sm:$0xff]
      %v1818 = vld [vmem:[#allocation2 + $0x60] sm:$0xff]
      %v1819 = vld [vmem:[#allocation2 + $0x68] sm:$0xff]
      %v1820 = vld [vmem:[#allocation2 + $0x70] sm:$0xff]
      %v1821 = vld [vmem:[#allocation2 + $0x78] sm:$0xff]
      %v1822 = vld [vmem:[#allocation2 + $0x80] sm:$0xff]
      %v1823 = vld [vmem:[#allocation2 + $0x88] sm:$0xff]
      %v1824 = vld [vmem:[#allocation2 + $0x90] sm:$0xff]
      %v1825 = vld [vmem:[#allocation2 + $0x98] sm:$0xff]
      %v1826 = vld [vmem:[#allocation2 + $0xa0] sm:$0xff]
      %v1827 = vld [vmem:[#allocation2 + $0xa8] sm:$0xff]
      %v1828 = vld [vmem:[#allocation2 + $0xb0] sm:$0xff]
      %v1829 = vld [vmem:[#allocation2 + $0xb8] sm:$0xff]
      %v1830 = vld [vmem:[#allocation2 + $0xc0] sm:$0xff]
      %v1831 = vld [vmem:[#allocation2 + $0xc8] sm:$0xff]
      %v1832 = vld [vmem:[#allocation2 + $0xd0] sm:$0xff]
      %v1833 = vld [vmem:[#allocation2 + $0xd8] sm:$0xff]
      %v1834 = vld [vmem:[#allocation2 + $0xe0] sm:$0xff]
      %v1835 = vld [vmem:[#allocation2 + $0xe8] sm:$0xff]
      %v1836 = vld [vmem:[#allocation2 + $0xf0] sm:$0xff]
      %v1837 = vld [vmem:[#allocation2 + $0xf8] sm:$0xff]
      %v1838 = vld [vmem:[#allocation2 + $0x100] sm:$0xff]
      %v1839 = vld [vmem:[#allocation2 + $0x108] sm:$0xff]
      %v1840 = vld [vmem:[#allocation2 + $0x110] sm:$0xff]
      %v1841 = vld [vmem:[#allocation2 + $0x118] sm:$0xff]
      %s1842 = scalar_lea.vmem %s2, 64
      %v1843 = vld [vmem:[%s1842] sm:$0xff]
      %v1844 = vld [vmem:[%s1842 + $0x8] sm:$0xff]
      %v1845 = vld [vmem:[%s1842 + $0x10] sm:$0xff]
      %v1846 = vld [vmem:[%s1842 + $0x18] sm:$0xff]
      %1848 = vset.pattern.permute.xlu0 0
      %1849 = vperm.xlu0 %1848, %v1843
      %v1850 = vpop.permute.xlu0 %1849
      %1853 = vset.pattern.permute.xlu0 0
      %1854 = vperm.xlu0 %1853, %v1844
      %v1855 = vpop.permute.xlu0 %1854
      %1858 = vset.pattern.permute.xlu0 0
      %1859 = vperm.xlu0 %1858, %v1845
      %v1860 = vpop.permute.xlu0 %1859
      %1863 = vset.pattern.permute.xlu0 0
      %1864 = vperm.xlu0 %1863, %v1846
      %v1865 = vpop.permute.xlu0 %1864
      %v1875 = vunpack.c.l.b16 %v1798
      %v1876 = vunpack.c.h.b16 %v1798
      %v1877 = vunpack.c.l.b16 %v1799
      %v1878 = vunpack.c.l.b16 %v1800
      %v1879 = vunpack.c.h.b16 %v1800
      %v1880 = vunpack.c.l.b16 %v1801
      %v1881 = vunpack.c.l.b16 %v1802
      %v1882 = vunpack.c.h.b16 %v1802
      %v1883 = vunpack.c.l.b16 %v1803
      %v1884 = vunpack.c.l.b16 %v1804
      %v1885 = vunpack.c.h.b16 %v1804
      %v1886 = vunpack.c.l.b16 %v1805
      %v1887 = vpack.c.b16 %v1878, %v1875
      %v1888 = vpack.c.b16 %v1879, %v1876
      %v1889 = vpack.c.b16 %v1880, %v1877
      %v1890 = vpack.c.b16 %v1884, %v1881
      %v1891 = vpack.c.b16 %v1885, %v1882
      %v1892 = vpack.c.b16 %v1886, %v1883
      %v1898 = vsel %vm800, %v1889, 0
      %v1901 = vsel %vm800, %v1892, 0
      %1903 = vmatprep.subr.bf16.mxu0 %v1807
      %1904 = vmatpush1.bf16.msra.mxu0 %v1806
      %1905 = vmatprep.subr.bf16.mxu0 %v1809
      %1906 = vmatpush1.bf16.msra.mxu0 %v1808
      %1907 = vmatprep.subr.bf16.mxu0 %v1811
      %1908 = vmatpush1.bf16.msra.mxu0 %v1810
      %1909 = vmatprep.subr.bf16.mxu0 %v1813
      %1910 = vmatpush1.bf16.msra.mxu0 %v1812
      %1911 = vmatprep.subr.bf16.mxu0 %v1815
      %1912 = vmatpush1.bf16.msra.mxu0 %v1814
      %1913 = vmatprep.subr.bf16.mxu0 %v1817
      %1914 = vmatpush1.bf16.msra.mxu0 %v1816
      %1915 = vmatprep.subr.bf16.mxu0 %v1819
      %1916 = vmatpush1.bf16.msra.mxu0 %v1818
      %1917 = vmatprep.subr.bf16.mxu0 %v1821
      %1918 = vmatpush1.bf16.msra.mxu0 %v1820
      %1919 = vmatprep.subr.bf16.mxu0 %v1823
      %1920 = vmatpush1.bf16.msra.mxu0 %v1822
      %1921 = vmatprep.subr.bf16.mxu0 %v1825
      %1922 = vmatpush1.bf16.msra.mxu0 %v1824
      %1923 = vmatprep.subr.bf16.mxu0 %v1827
      %1924 = vmatpush1.bf16.msra.mxu0 %v1826
      %1925 = vmatprep.subr.bf16.mxu0 %v1829
      %1926 = vmatpush1.bf16.msra.mxu0 %v1828
      %1927 = vmatprep.subr.bf16.mxu0 %v1831
      %1928 = vmatpush1.bf16.msra.mxu0 %v1830
      %1929 = vmatprep.subr.bf16.mxu0 %v1833
      %1930 = vmatpush1.bf16.msra.mxu0 %v1832
      %1931 = vmatprep.subr.bf16.mxu0 %v1835
      %1932 = vmatpush1.bf16.msra.mxu0 %v1834
      %1933 = vmatprep.subr.bf16.mxu0 %v1837
      %1934 = vmatpush1.bf16.msra.mxu0 %v1836
      %1935 = vmatprep.mubr.bf16.mxu0 %v1888
      %1936 = vmatmul.mubr.bf16.gmra.mrb[0].mxu0 %v1887
      %v1937 = vpop.f32.mrb[0].mxu0
      %v1938 = vadd.f32 %v1850, %v1937
      %v1939 = vpop.f32.mrb[0].mxu0
      %v1940 = vadd.f32 %v1850, %v1939
      %v1941 = vpop.f32.mrb[0].mxu0
      %v1942 = vadd.f32 %v1855, %v1941
      %v1943 = vpop.f32.mrb[0].mxu0
      %v1944 = vadd.f32 %v1855, %v1943
      %1945 = vmatprep.mubr.bf16.mxu0 %v1891
      %1946 = vmatmul.mubr.bf16.gmra.mrb[0].mxu0 %v1890
      %v1947 = vpop.f32.mrb[0].mxu0
      %v1948 = vadd.f32 %v1860, %v1947
      %v1949 = vpop.f32.mrb[0].mxu0
      %v1950 = vadd.f32 %v1860, %v1949
      %v1951 = vpop.f32.mrb[0].mxu0
      %v1952 = vadd.f32 %v1865, %v1951
      %v1953 = vpop.f32.mrb[0].mxu0
      %v1954 = vadd.f32 %v1865, %v1953
      %1955 = vdwg.mxu0
      %1956 = vmatprep.subr.bf16.mxu0 %v1839
      %1957 = vmatpush1.bf16.msra.mxu0 %v1838
      %1958 = vmatprep.subr.bf16.mxu0 %v1841
      %1959 = vmatpush1.bf16.msra.mxu0 %v1840
      %1960 = vmatprep.subr.bf16.mxu0 0
      %1961 = vmatpush1.bf16.msra.mxu0 0
      %1962 = vmatprep.subr.bf16.mxu0 0
      %1963 = vmatpush1.bf16.msra.mxu0 0
      %1964 = vmatprep.subr.bf16.mxu0 0
      %1965 = vmatpush1.bf16.msra.mxu0 0
      %1966 = vmatprep.subr.bf16.mxu0 0
      %1967 = vmatpush1.bf16.msra.mxu0 0
      %1968 = vmatprep.subr.bf16.mxu0 0
      %1969 = vmatpush1.bf16.msra.mxu0 0
      %1970 = vmatprep.subr.bf16.mxu0 0
      %1971 = vmatpush1.bf16.msra.mxu0 0
      %1972 = vmatprep.subr.bf16.mxu0 0
      %1973 = vmatpush1.bf16.msra.mxu0 0
      %1974 = vmatprep.subr.bf16.mxu0 0
      %1975 = vmatpush1.bf16.msra.mxu0 0
      %1976 = vmatprep.subr.bf16.mxu0 0
      %1977 = vmatpush1.bf16.msra.mxu0 0
      %1978 = vmatprep.subr.bf16.mxu0 0
      %1979 = vmatpush1.bf16.msra.mxu0 0
      %1980 = vmatprep.subr.bf16.mxu0 0
      %1981 = vmatpush1.bf16.msra.mxu0 0
      %1982 = vmatprep.subr.bf16.mxu0 0
      %1983 = vmatpush1.bf16.msra.mxu0 0
      %1984 = vmatprep.subr.bf16.mxu0 0
      %1985 = vmatpush1.bf16.msra.mxu0 0
      %1986 = vmatprep.subr.bf16.mxu0 0
      %1987 = vmatpush1.bf16.msra.mxu0 0
      %1988 = vmatprep.mubr.bf16.mxu0 0
      %1989 = vmatmul.mubr.bf16.gmra.mrb[0].mxu0 %v1898
      %v1990 = vpop.f32.mrb[0].mxu0
      %v1991 = vadd.f32 %v1938, %v1990
      %v1992 = vpop.f32.mrb[0].mxu0
      %v1993 = vadd.f32 %v1940, %v1992
      %v1994 = vpop.f32.mrb[0].mxu0
      %v1995 = vadd.f32 %v1942, %v1994
      %v1996 = vpop.f32.mrb[0].mxu0
      %v1997 = vadd.f32 %v1944, %v1996
      %1998 = vmatprep.mubr.bf16.mxu0 0
      %1999 = vmatmul.mubr.bf16.gmra.mrb[0].mxu0 %v1901
      %v2000 = vpop.f32.mrb[0].mxu0
      %v2001 = vadd.f32 %v1948, %v2000
      %v2002 = vpop.f32.mrb[0].mxu0
      %v2003 = vadd.f32 %v1950, %v2002
      %v2004 = vpop.f32.mrb[0].mxu0
      %v2005 = vadd.f32 %v1952, %v2004
      %v2006 = vpop.f32.mrb[0].mxu0
      %v2007 = vadd.f32 %v1954, %v2006
      %2008 = vdwg.mxu0
      %v2009 = vmax.f32 %v1991, 0.0
      %v2010 = vmax.f32 %v1993, 0.0
      %v2011 = vmax.f32 %v1995, 0.0
      %v2012 = vmax.f32 %v1997, 0.0
      %v2013 = vmax.f32 %v2001, 0.0
      %v2014 = vmax.f32 %v2003, 0.0
      %v2015 = vmax.f32 %v2005, 0.0
      %v2016 = vmax.f32 %v2007, 0.0
      %2017 = vrot.lane.b32.xlu0 %v2009, 17
      %v2018 = vpop.permute.xlu0 %2017
      %2019 = vrot.lane.b32.xlu0 %v2011, 17
      %v2020 = vpop.permute.xlu0 %2019
      %2021 = vrot.lane.b32.xlu0 %v2013, 17
      %v2022 = vpop.permute.xlu0 %2021
      %2023 = vrot.lane.b32.xlu0 %v2015, 17
      %v2024 = vpop.permute.xlu0 %2023
      %2025 = vrot.lane.b32.xlu0 %v2010, 17
      %v2026 = vpop.permute.xlu0 %2025
      %2027 = vrot.lane.b32.xlu0 %v2012, 17
      %v2028 = vpop.permute.xlu0 %2027
      %2029 = vrot.lane.b32.xlu0 %v2014, 17
      %v2030 = vpop.permute.xlu0 %2029
      %2031 = vrot.lane.b32.xlu0 %v2016, 17
      %v2032 = vpop.permute.xlu0 %2031
      %v2033 = vsel %vm382, %v2018, %v2026
      %v2034 = vsel %vm382, %v2020, %v2028
      %v2035 = vsel %vm382, %v2022, %v2030
      %v2036 = vsel %vm382, %v2024, %v2032
      %v2037 = vsel %vm382, %v2026, %v2018
      %v2038 = vsel %vm382, %v2028, %v2020
      %v2039 = vsel %vm382, %v2030, %v2022
      %v2040 = vsel %vm382, %v2032, %v2024
      %v2041 = vmul.f32 %v2037, %v258
      %v2042 = vmul.f32 %v2033, %v262
      %v2043 = vmul.f32 %v2038, %v258
      %v2044 = vmul.f32 %v2034, %v262
      %v2045 = vmul.f32 %v2039, %v258
      %v2046 = vmul.f32 %v2035, %v262
      %v2047 = vmul.f32 %v2040, %v258
      %v2048 = vmul.f32 %v2036, %v262
      %v2049 = vpack.c.bf16 %v2043, %v2041
      %v2050 = vpack.c.bf16 %v2044, %v2042
      %v2051 = vpack.c.bf16 %v2047, %v2045
      %v2052 = vpack.c.bf16 %v2048, %v2046
      %2053 = vst [vmem:[#allocation2] sm:$0xff] %v2049
      %2054 = vst [vmem:[#allocation2 + $0x8] sm:$0xff] %v2050
      %2055 = vst [vmem:[#allocation2 + $0x10] sm:$0xff] %v2051
      %2056 = vst [vmem:[#allocation2 + $0x18] sm:$0xff] %v2052
      %2057 = vrot.lane.b32.xlu0 %v2009, 16
      %v2058 = vpop.permute.xlu0 %2057
      %2059 = vrot.lane.b32.xlu0 %v2011, 16
      %v2060 = vpop.permute.xlu0 %2059
      %2061 = vrot.lane.b32.xlu0 %v2013, 16
      %v2062 = vpop.permute.xlu0 %2061
      %2063 = vrot.lane.b32.xlu0 %v2015, 16
      %v2064 = vpop.permute.xlu0 %2063
      %2065 = vrot.lane.b32.xlu0 %v2010, 16
      %v2066 = vpop.permute.xlu0 %2065
      %2067 = vrot.lane.b32.xlu0 %v2012, 16
      %v2068 = vpop.permute.xlu0 %2067
      %2069 = vrot.lane.b32.xlu0 %v2014, 16
      %v2070 = vpop.permute.xlu0 %2069
      %2071 = vrot.lane.b32.xlu0 %v2016, 16
      %v2072 = vpop.permute.xlu0 %2071
      %v2073 = vsel %vm423, %v2058, %v2066
      %v2074 = vsel %vm423, %v2060, %v2068
      %v2075 = vsel %vm423, %v2062, %v2070
      %v2076 = vsel %vm423, %v2064, %v2072
      %v2077 = vsel %vm423, %v2066, %v2058
      %v2078 = vsel %vm423, %v2068, %v2060
      %v2079 = vsel %vm423, %v2070, %v2062
      %v2080 = vsel %vm423, %v2072, %v2064
      %v2081 = vmul.f32 %v2077, %v271
      %v2082 = vmul.f32 %v2073, %v275
      %v2083 = vmul.f32 %v2078, %v271
      %v2084 = vmul.f32 %v2074, %v275
      %v2085 = vmul.f32 %v2079, %v271
      %v2086 = vmul.f32 %v2075, %v275
      %v2087 = vmul.f32 %v2080, %v271
      %v2088 = vmul.f32 %v2076, %v275
      %v2089 = vpack.c.bf16 %v2083, %v2081
      %v2090 = vpack.c.bf16 %v2084, %v2082
      %v2091 = vpack.c.bf16 %v2087, %v2085
      %v2092 = vpack.c.bf16 %v2088, %v2086
      %2093 = vst [vmem:[#allocation2 + $0x20] sm:$0xff] %v2089
      %2094 = vst [vmem:[#allocation2 + $0x28] sm:$0xff] %v2090
      %2095 = vst [vmem:[#allocation2 + $0x30] sm:$0xff] %v2091
      %2096 = vst [vmem:[#allocation2 + $0x38] sm:$0xff] %v2092
      %2097 = vrot.lane.b32.xlu0 %v2009, 15
      %v2098 = vpop.permute.xlu0 %2097
      %2099 = vrot.lane.b32.xlu0 %v2011, 15
      %v2100 = vpop.permute.xlu0 %2099
      %2101 = vrot.lane.b32.xlu0 %v2013, 15
      %v2102 = vpop.permute.xlu0 %2101
      %2103 = vrot.lane.b32.xlu0 %v2015, 15
      %v2104 = vpop.permute.xlu0 %2103
      %2105 = vrot.lane.b32.xlu0 %v2010, 15
      %v2106 = vpop.permute.xlu0 %2105
      %2107 = vrot.lane.b32.xlu0 %v2012, 15
      %v2108 = vpop.permute.xlu0 %2107
      %2109 = vrot.lane.b32.xlu0 %v2014, 15
      %v2110 = vpop.permute.xlu0 %2109
      %2111 = vrot.lane.b32.xlu0 %v2016, 15
      %v2112 = vpop.permute.xlu0 %2111
      %v2113 = vsel %vm464, %v2098, %v2106
      %v2114 = vsel %vm464, %v2100, %v2108
      %v2115 = vsel %vm464, %v2102, %v2110
      %v2116 = vsel %vm464, %v2104, %v2112
      %v2117 = vsel %vm464, %v2106, %v2098
      %v2118 = vsel %vm464, %v2108, %v2100
      %v2119 = vsel %vm464, %v2110, %v2102
      %v2120 = vsel %vm464, %v2112, %v2104
      %v2121 = vmul.f32 %v2117, %v284
      %v2122 = vmul.f32 %v2113, %v288
      %v2123 = vmul.f32 %v2118, %v284
      %v2124 = vmul.f32 %v2114, %v288
      %v2125 = vmul.f32 %v2119, %v284
      %v2126 = vmul.f32 %v2115, %v288
      %v2127 = vmul.f32 %v2120, %v284
      %v2128 = vmul.f32 %v2116, %v288
      %v2129 = vpack.c.bf16 %v2123, %v2121
      %v2130 = vpack.c.bf16 %v2124, %v2122
      %v2131 = vpack.c.bf16 %v2127, %v2125
      %v2132 = vpack.c.bf16 %v2128, %v2126
      %2133 = vst [vmem:[#allocation2 + $0x40] sm:$0xff] %v2129
      %2134 = vst [vmem:[#allocation2 + $0x48] sm:$0xff] %v2130
      %2135 = vst [vmem:[#allocation2 + $0x50] sm:$0xff] %v2131
      %2136 = vst [vmem:[#allocation2 + $0x58] sm:$0xff] %v2132
      %2137 = vrot.lane.b32.xlu0 %v2009, 1
      %v2138 = vpop.permute.xlu0 %2137
      %2139 = vrot.lane.b32.xlu0 %v2011, 1
      %v2140 = vpop.permute.xlu0 %2139
      %2141 = vrot.lane.b32.xlu0 %v2013, 1
      %v2142 = vpop.permute.xlu0 %2141
      %2143 = vrot.lane.b32.xlu0 %v2015, 1
      %v2144 = vpop.permute.xlu0 %2143
      %2145 = vrot.lane.b32.xlu0 %v2010, 1
      %v2146 = vpop.permute.xlu0 %2145
      %2147 = vrot.lane.b32.xlu0 %v2012, 1
      %v2148 = vpop.permute.xlu0 %2147
      %2149 = vrot.lane.b32.xlu0 %v2014, 1
      %v2150 = vpop.permute.xlu0 %2149
      %2151 = vrot.lane.b32.xlu0 %v2016, 1
      %v2152 = vpop.permute.xlu0 %2151
      %v2153 = vsel %vm505, %v2138, %v2146
      %v2154 = vsel %vm505, %v2140, %v2148
      %v2155 = vsel %vm505, %v2142, %v2150
      %v2156 = vsel %vm505, %v2144, %v2152
      %v2157 = vsel %vm505, %v2146, %v2138
      %v2158 = vsel %vm505, %v2148, %v2140
      %v2159 = vsel %vm505, %v2150, %v2142
      %v2160 = vsel %vm505, %v2152, %v2144
      %v2161 = vmul.f32 %v2157, %v297
      %v2162 = vmul.f32 %v2153, %v301
      %v2163 = vmul.f32 %v2158, %v297
      %v2164 = vmul.f32 %v2154, %v301
      %v2165 = vmul.f32 %v2159, %v297
      %v2166 = vmul.f32 %v2155, %v301
      %v2167 = vmul.f32 %v2160, %v297
      %v2168 = vmul.f32 %v2156, %v301
      %v2169 = vpack.c.bf16 %v2163, %v2161
      %v2170 = vpack.c.bf16 %v2164, %v2162
      %v2171 = vpack.c.bf16 %v2167, %v2165
      %v2172 = vpack.c.bf16 %v2168, %v2166
      %2173 = vst [vmem:[#allocation2 + $0x60] sm:$0xff] %v2169
      %2174 = vst [vmem:[#allocation2 + $0x68] sm:$0xff] %v2170
      %2175 = vst [vmem:[#allocation2 + $0x70] sm:$0xff] %v2171
      %2176 = vst [vmem:[#allocation2 + $0x78] sm:$0xff] %v2172
      %v2177 = vpack.c.bf16 %v2011, %v2009
      %v2178 = vpack.c.bf16 %v2012, %v2010
      %v2179 = vpack.c.bf16 %v2015, %v2013
      %v2180 = vpack.c.bf16 %v2016, %v2014
      %2181 = vst [vmem:[#allocation2 + $0x80] sm:$0xff] %v2177
      %2182 = vst [vmem:[#allocation2 + $0x88] sm:$0xff] %v2178
      %2183 = vst [vmem:[#allocation2 + $0x90] sm:$0xff] %v2179
      %2184 = vst [vmem:[#allocation2 + $0x98] sm:$0xff] %v2180
      %2185 = vrot.lane.b32.xlu0 %v2009, 127
      %v2186 = vpop.permute.xlu0 %2185
      %2187 = vrot.lane.b32.xlu0 %v2011, 127
      %v2188 = vpop.permute.xlu0 %2187
      %2189 = vrot.lane.b32.xlu0 %v2013, 127
      %v2190 = vpop.permute.xlu0 %2189
      %2191 = vrot.lane.b32.xlu0 %v2015, 127
      %v2192 = vpop.permute.xlu0 %2191
      %2193 = vrot.lane.b32.xlu0 %v2010, 127
      %v2194 = vpop.permute.xlu0 %2193
      %2195 = vrot.lane.b32.xlu0 %v2012, 127
      %v2196 = vpop.permute.xlu0 %2195
      %2197 = vrot.lane.b32.xlu0 %v2014, 127
      %v2198 = vpop.permute.xlu0 %2197
      %2199 = vrot.lane.b32.xlu0 %v2016, 127
      %v2200 = vpop.permute.xlu0 %2199
      %v2201 = vsel %vm554, %v2186, %v2194
      %v2202 = vsel %vm554, %v2188, %v2196
      %v2203 = vsel %vm554, %v2190, %v2198
      %v2204 = vsel %vm554, %v2192, %v2200
      %v2205 = vsel %vm554, %v2194, %v2186
      %v2206 = vsel %vm554, %v2196, %v2188
      %v2207 = vsel %vm554, %v2198, %v2190
      %v2208 = vsel %vm554, %v2200, %v2192
      %v2209 = vmul.f32 %v2201, %v310
      %v2210 = vmul.f32 %v2205, %v314
      %v2211 = vmul.f32 %v2202, %v310
      %v2212 = vmul.f32 %v2206, %v314
      %v2213 = vmul.f32 %v2203, %v310
      %v2214 = vmul.f32 %v2207, %v314
      %v2215 = vmul.f32 %v2204, %v310
      %v2216 = vmul.f32 %v2208, %v314
      %v2217 = vpack.c.bf16 %v2211, %v2209
      %v2218 = vpack.c.bf16 %v2212, %v2210
      %v2219 = vpack.c.bf16 %v2215, %v2213
      %v2220 = vpack.c.bf16 %v2216, %v2214
      %2221 = vst [vmem:[#allocation2 + $0xa0] sm:$0xff] %v2217
      %2222 = vst [vmem:[#allocation2 + $0xa8] sm:$0xff] %v2218
      %2223 = vst [vmem:[#allocation2 + $0xb0] sm:$0xff] %v2219
      %2224 = vst [vmem:[#allocation2 + $0xb8] sm:$0xff] %v2220
      %2225 = vrot.lane.b32.xlu0 %v2009, 113
      %v2226 = vpop.permute.xlu0 %2225
      %2227 = vrot.lane.b32.xlu0 %v2011, 113
      %v2228 = vpop.permute.xlu0 %2227
      %2229 = vrot.lane.b32.xlu0 %v2013, 113
      %v2230 = vpop.permute.xlu0 %2229
      %2231 = vrot.lane.b32.xlu0 %v2015, 113
      %v2232 = vpop.permute.xlu0 %2231
      %2233 = vrot.lane.b32.xlu0 %v2010, 113
      %v2234 = vpop.permute.xlu0 %2233
      %2235 = vrot.lane.b32.xlu0 %v2012, 113
      %v2236 = vpop.permute.xlu0 %2235
      %2237 = vrot.lane.b32.xlu0 %v2014, 113
      %v2238 = vpop.permute.xlu0 %2237
      %2239 = vrot.lane.b32.xlu0 %v2016, 113
      %v2240 = vpop.permute.xlu0 %2239
      %v2241 = vsel %vm595, %v2226, %v2234
      %v2242 = vsel %vm595, %v2228, %v2236
      %v2243 = vsel %vm595, %v2230, %v2238
      %v2244 = vsel %vm595, %v2232, %v2240
      %v2245 = vsel %vm595, %v2234, %v2226
      %v2246 = vsel %vm595, %v2236, %v2228
      %v2247 = vsel %vm595, %v2238, %v2230
      %v2248 = vsel %vm595, %v2240, %v2232
      %v2249 = vmul.f32 %v2241, %v323
      %v2250 = vmul.f32 %v2245, %v327
      %v2251 = vmul.f32 %v2242, %v323
      %v2252 = vmul.f32 %v2246, %v327
      %v2253 = vmul.f32 %v2243, %v323
      %v2254 = vmul.f32 %v2247, %v327
      %v2255 = vmul.f32 %v2244, %v323
      %v2256 = vmul.f32 %v2248, %v327
      %v2257 = vpack.c.bf16 %v2251, %v2249
      %v2258 = vpack.c.bf16 %v2252, %v2250
      %v2259 = vpack.c.bf16 %v2255, %v2253
      %v2260 = vpack.c.bf16 %v2256, %v2254
      %2261 = vst [vmem:[#allocation2 + $0xc0] sm:$0xff] %v2257
      %2262 = vst [vmem:[#allocation2 + $0xc8] sm:$0xff] %v2258
      %2263 = vst [vmem:[#allocation2 + $0xd0] sm:$0xff] %v2259
      %2264 = vst [vmem:[#allocation2 + $0xd8] sm:$0xff] %v2260
      %2265 = vrot.lane.b32.xlu0 %v2009, 112
      %v2266 = vpop.permute.xlu0 %2265
      %2267 = vrot.lane.b32.xlu0 %v2011, 112
      %v2268 = vpop.permute.xlu0 %2267
      %2269 = vrot.lane.b32.xlu0 %v2013, 112
      %v2270 = vpop.permute.xlu0 %2269
      %2271 = vrot.lane.b32.xlu0 %v2015, 112
      %v2272 = vpop.permute.xlu0 %2271
      %2273 = vrot.lane.b32.xlu0 %v2010, 112
      %v2274 = vpop.permute.xlu0 %2273
      %2275 = vrot.lane.b32.xlu0 %v2012, 112
      %v2276 = vpop.permute.xlu0 %2275
      %2277 = vrot.lane.b32.xlu0 %v2014, 112
      %v2278 = vpop.permute.xlu0 %2277
      %2279 = vrot.lane.b32.xlu0 %v2016, 112
      %v2280 = vpop.permute.xlu0 %2279
      %v2281 = vsel %vm636, %v2266, %v2274
      %v2282 = vsel %vm636, %v2268, %v2276
      %v2283 = vsel %vm636, %v2270, %v2278
      %v2284 = vsel %vm636, %v2272, %v2280
      %v2285 = vsel %vm636, %v2274, %v2266
      %v2286 = vsel %vm636, %v2276, %v2268
      %v2287 = vsel %vm636, %v2278, %v2270
      %v2288 = vsel %vm636, %v2280, %v2272
      %v2289 = vmul.f32 %v2281, %v336
      %v2290 = vmul.f32 %v2285, %v340
      %v2291 = vmul.f32 %v2282, %v336
      %v2292 = vmul.f32 %v2286, %v340
      %v2293 = vmul.f32 %v2283, %v336
      %v2294 = vmul.f32 %v2287, %v340
      %v2295 = vmul.f32 %v2284, %v336
      %v2296 = vmul.f32 %v2288, %v340
      %v2297 = vpack.c.bf16 %v2291, %v2289
      %v2298 = vpack.c.bf16 %v2292, %v2290
      %v2299 = vpack.c.bf16 %v2295, %v2293
      %v2300 = vpack.c.bf16 %v2296, %v2294
      %2301 = vst [vmem:[#allocation2 + $0xe0] sm:$0xff] %v2297
      %2302 = vst [vmem:[#allocation2 + $0xe8] sm:$0xff] %v2298
      %2303 = vst [vmem:[#allocation2 + $0xf0] sm:$0xff] %v2299
      %2304 = vst [vmem:[#allocation2 + $0xf8] sm:$0xff] %v2300
      %2305 = vrot.lane.b32.xlu0 %v2009, 111
      %v2306 = vpop.permute.xlu0 %2305
      %2307 = vrot.lane.b32.xlu0 %v2011, 111
      %v2308 = vpop.permute.xlu0 %2307
      %2309 = vrot.lane.b32.xlu0 %v2013, 111
      %v2310 = vpop.permute.xlu0 %2309
      %2311 = vrot.lane.b32.xlu0 %v2015, 111
      %v2312 = vpop.permute.xlu0 %2311
      %2313 = vrot.lane.b32.xlu0 %v2010, 111
      %v2314 = vpop.permute.xlu0 %2313
      %2315 = vrot.lane.b32.xlu0 %v2012, 111
      %v2316 = vpop.permute.xlu0 %2315
      %2317 = vrot.lane.b32.xlu0 %v2014, 111
      %v2318 = vpop.permute.xlu0 %2317
      %2319 = vrot.lane.b32.xlu0 %v2016, 111
      %v2320 = vpop.permute.xlu0 %2319
      %v2321 = vsel %vm677, %v2306, %v2314
      %v2322 = vsel %vm677, %v2308, %v2316
      %v2323 = vsel %vm677, %v2310, %v2318
      %v2324 = vsel %vm677, %v2312, %v2320
      %v2325 = vsel %vm677, %v2314, %v2306
      %v2326 = vsel %vm677, %v2316, %v2308
      %v2327 = vsel %vm677, %v2318, %v2310
      %v2328 = vsel %vm677, %v2320, %v2312
      %v2329 = vmul.f32 %v2321, %v349
      %v2330 = vmul.f32 %v2325, %v353
      %v2331 = vmul.f32 %v2322, %v349
      %v2332 = vmul.f32 %v2326, %v353
      %v2333 = vmul.f32 %v2323, %v349
      %v2334 = vmul.f32 %v2327, %v353
      %v2335 = vmul.f32 %v2324, %v349
      %v2336 = vmul.f32 %v2328, %v353
      %v2337 = vpack.c.bf16 %v2331, %v2329
      %v2338 = vpack.c.bf16 %v2332, %v2330
      %v2339 = vpack.c.bf16 %v2335, %v2333
      %v2340 = vpack.c.bf16 %v2336, %v2334
      %2341 = vst [vmem:[#allocation2 + $0x100] sm:$0xff] %v2337
      %2342 = vst [vmem:[#allocation2 + $0x108] sm:$0xff] %v2338
      %2343 = vst [vmem:[#allocation2 + $0x110] sm:$0xff] %v2339
      %2344 = vst [vmem:[#allocation2 + $0x118] sm:$0xff] %v2340
      %s2345 = scalar_lea.vmem %s1, 144
      %v2346 = vld [vmem:[%s2345] sm:$0xff]
      %v2347 = vld [vmem:[%s2345 + $0x8] sm:$0xf]
      %v2348 = vld [vmem:[%s2345 + $0xc] sm:$0xff]
      %v2349 = vld [vmem:[%s2345 + $0x14] sm:$0xf]
      %v2350 = vld [vmem:[%s2345 + $0x18] sm:$0xff]
      %v2351 = vld [vmem:[%s2345 + $0x20] sm:$0xf]
      %v2352 = vld [vmem:[%s2345 + $0x24] sm:$0xff]
      %v2353 = vld [vmem:[%s2345 + $0x2c] sm:$0xf]
      %v2354 = vld [vmem:[#allocation2] sm:$0xff]
      %v2355 = vld [vmem:[#allocation2 + $0x8] sm:$0xff]
      %v2356 = vld [vmem:[#allocation2 + $0x10] sm:$0xff]
      %v2357 = vld [vmem:[#allocation2 + $0x18] sm:$0xff]
      %v2358 = vld [vmem:[#allocation2 + $0x20] sm:$0xff]
      %v2359 = vld [vmem:[#allocation2 + $0x28] sm:$0xff]
      %v2360 = vld [vmem:[#allocation2 + $0x30] sm:$0xff]
      %v2361 = vld [vmem:[#allocation2 + $0x38] sm:$0xff]
      %v2362 = vld [vmem:[#allocation2 + $0x40] sm:$0xff]
      %v2363 = vld [vmem:[#allocation2 + $0x48] sm:$0xff]
      %v2364 = vld [vmem:[#allocation2 + $0x50] sm:$0xff]
      %v2365 = vld [vmem:[#allocation2 + $0x58] sm:$0xff]
      %v2366 = vld [vmem:[#allocation2 + $0x60] sm:$0xff]
      %v2367 = vld [vmem:[#allocation2 + $0x68] sm:$0xff]
      %v2368 = vld [vmem:[#allocation2 + $0x70] sm:$0xff]
      %v2369 = vld [vmem:[#allocation2 + $0x78] sm:$0xff]
      %v2370 = vld [vmem:[#allocation2 + $0x80] sm:$0xff]
      %v2371 = vld [vmem:[#allocation2 + $0x88] sm:$0xff]
      %v2372 = vld [vmem:[#allocation2 + $0x90] sm:$0xff]
      %v2373 = vld [vmem:[#allocation2 + $0x98] sm:$0xff]
      %v2374 = vld [vmem:[#allocation2 + $0xa0] sm:$0xff]
      %v2375 = vld [vmem:[#allocation2 + $0xa8] sm:$0xff]
      %v2376 = vld [vmem:[#allocation2 + $0xb0] sm:$0xff]
      %v2377 = vld [vmem:[#allocation2 + $0xb8] sm:$0xff]
      %v2378 = vld [vmem:[#allocation2 + $0xc0] sm:$0xff]
      %v2379 = vld [vmem:[#allocation2 + $0xc8] sm:$0xff]
      %v2380 = vld [vmem:[#allocation2 + $0xd0] sm:$0xff]
      %v2381 = vld [vmem:[#allocation2 + $0xd8] sm:$0xff]
      %v2382 = vld [vmem:[#allocation2 + $0xe0] sm:$0xff]
      %v2383 = vld [vmem:[#allocation2 + $0xe8] sm:$0xff]
      %v2384 = vld [vmem:[#allocation2 + $0xf0] sm:$0xff]
      %v2385 = vld [vmem:[#allocation2 + $0xf8] sm:$0xff]
      %v2386 = vld [vmem:[#allocation2 + $0x100] sm:$0xff]
      %v2387 = vld [vmem:[#allocation2 + $0x108] sm:$0xff]
      %v2388 = vld [vmem:[#allocation2 + $0x110] sm:$0xff]
      %v2389 = vld [vmem:[#allocation2 + $0x118] sm:$0xff]
      %s2390 = scalar_lea.vmem %s2, 96
      %v2391 = vld [vmem:[%s2390] sm:$0xff]
      %v2392 = vld [vmem:[%s2390 + $0x8] sm:$0xff]
      %v2393 = vld [vmem:[%s2390 + $0x10] sm:$0xff]
      %v2394 = vld [vmem:[%s2390 + $0x18] sm:$0xff]
      %2396 = vset.pattern.permute.xlu0 0
      %2397 = vperm.xlu0 %2396, %v2391
      %v2398 = vpop.permute.xlu0 %2397
      %2401 = vset.pattern.permute.xlu0 0
      %2402 = vperm.xlu0 %2401, %v2392
      %v2403 = vpop.permute.xlu0 %2402
      %2406 = vset.pattern.permute.xlu0 0
      %2407 = vperm.xlu0 %2406, %v2393
      %v2408 = vpop.permute.xlu0 %2407
      %2411 = vset.pattern.permute.xlu0 0
      %2412 = vperm.xlu0 %2411, %v2394
      %v2413 = vpop.permute.xlu0 %2412
      %v2423 = vunpack.c.l.b16 %v2346
      %v2424 = vunpack.c.h.b16 %v2346
      %v2425 = vunpack.c.l.b16 %v2347
      %v2426 = vunpack.c.l.b16 %v2348
      %v2427 = vunpack.c.h.b16 %v2348
      %v2428 = vunpack.c.l.b16 %v2349
      %v2429 = vunpack.c.l.b16 %v2350
      %v2430 = vunpack.c.h.b16 %v2350
      %v2431 = vunpack.c.l.b16 %v2351
      %v2432 = vunpack.c.l.b16 %v2352
      %v2433 = vunpack.c.h.b16 %v2352
      %v2434 = vunpack.c.l.b16 %v2353
      %v2435 = vpack.c.b16 %v2426, %v2423
      %v2436 = vpack.c.b16 %v2427, %v2424
      %v2437 = vpack.c.b16 %v2428, %v2425
      %v2438 = vpack.c.b16 %v2432, %v2429
      %v2439 = vpack.c.b16 %v2433, %v2430
      %v2440 = vpack.c.b16 %v2434, %v2431
      %v2446 = vsel %vm800, %v2437, 0
      %v2449 = vsel %vm800, %v2440, 0
      %2451 = vmatprep.subr.bf16.mxu0 %v2355
      %2452 = vmatpush1.bf16.msra.mxu0 %v2354
      %2453 = vmatprep.subr.bf16.mxu0 %v2357
      %2454 = vmatpush1.bf16.msra.mxu0 %v2356
      %2455 = vmatprep.subr.bf16.mxu0 %v2359
      %2456 = vmatpush1.bf16.msra.mxu0 %v2358
      %2457 = vmatprep.subr.bf16.mxu0 %v2361
      %2458 = vmatpush1.bf16.msra.mxu0 %v2360
      %2459 = vmatprep.subr.bf16.mxu0 %v2363
      %2460 = vmatpush1.bf16.msra.mxu0 %v2362
      %2461 = vmatprep.subr.bf16.mxu0 %v2365
      %2462 = vmatpush1.bf16.msra.mxu0 %v2364
      %2463 = vmatprep.subr.bf16.mxu0 %v2367
      %2464 = vmatpush1.bf16.msra.mxu0 %v2366
      %2465 = vmatprep.subr.bf16.mxu0 %v2369
      %2466 = vmatpush1.bf16.msra.mxu0 %v2368
      %2467 = vmatprep.subr.bf16.mxu0 %v2371
      %2468 = vmatpush1.bf16.msra.mxu0 %v2370
      %2469 = vmatprep.subr.bf16.mxu0 %v2373
      %2470 = vmatpush1.bf16.msra.mxu0 %v2372
      %2471 = vmatprep.subr.bf16.mxu0 %v2375
      %2472 = vmatpush1.bf16.msra.mxu0 %v2374
      %2473 = vmatprep.subr.bf16.mxu0 %v2377
      %2474 = vmatpush1.bf16.msra.mxu0 %v2376
      %2475 = vmatprep.subr.bf16.mxu0 %v2379
      %2476 = vmatpush1.bf16.msra.mxu0 %v2378
      %2477 = vmatprep.subr.bf16.mxu0 %v2381
      %2478 = vmatpush1.bf16.msra.mxu0 %v2380
      %2479 = vmatprep.subr.bf16.mxu0 %v2383
      %2480 = vmatpush1.bf16.msra.mxu0 %v2382
      %2481 = vmatprep.subr.bf16.mxu0 %v2385
      %2482 = vmatpush1.bf16.msra.mxu0 %v2384
      %2483 = vmatprep.mubr.bf16.mxu0 %v2436
      %2484 = vmatmul.mubr.bf16.gmra.mrb[0].mxu0 %v2435
      %v2485 = vpop.f32.mrb[0].mxu0
      %v2486 = vadd.f32 %v2398, %v2485
      %v2487 = vpop.f32.mrb[0].mxu0
      %v2488 = vadd.f32 %v2398, %v2487
      %v2489 = vpop.f32.mrb[0].mxu0
      %v2490 = vadd.f32 %v2403, %v2489
      %v2491 = vpop.f32.mrb[0].mxu0
      %v2492 = vadd.f32 %v2403, %v2491
      %2493 = vmatprep.mubr.bf16.mxu0 %v2439
      %2494 = vmatmul.mubr.bf16.gmra.mrb[0].mxu0 %v2438
      %v2495 = vpop.f32.mrb[0].mxu0
      %v2496 = vadd.f32 %v2408, %v2495
      %v2497 = vpop.f32.mrb[0].mxu0
      %v2498 = vadd.f32 %v2408, %v2497
      %v2499 = vpop.f32.mrb[0].mxu0
      %v2500 = vadd.f32 %v2413, %v2499
      %v2501 = vpop.f32.mrb[0].mxu0
      %v2502 = vadd.f32 %v2413, %v2501
      %2503 = vdwg.mxu0
      %2504 = vmatprep.subr.bf16.mxu0 %v2387
      %2505 = vmatpush1.bf16.msra.mxu0 %v2386
      %2506 = vmatprep.subr.bf16.mxu0 %v2389
      %2507 = vmatpush1.bf16.msra.mxu0 %v2388
      %2508 = vmatprep.subr.bf16.mxu0 0
      %2509 = vmatpush1.bf16.msra.mxu0 0
      %2510 = vmatprep.subr.bf16.mxu0 0
      %2511 = vmatpush1.bf16.msra.mxu0 0
      %2512 = vmatprep.subr.bf16.mxu0 0
      %2513 = vmatpush1.bf16.msra.mxu0 0
      %2514 = vmatprep.subr.bf16.mxu0 0
      %2515 = vmatpush1.bf16.msra.mxu0 0
      %2516 = vmatprep.subr.bf16.mxu0 0
      %2517 = vmatpush1.bf16.msra.mxu0 0
      %2518 = vmatprep.subr.bf16.mxu0 0
      %2519 = vmatpush1.bf16.msra.mxu0 0
      %2520 = vmatprep.subr.bf16.mxu0 0
      %2521 = vmatpush1.bf16.msra.mxu0 0
      %2522 = vmatprep.subr.bf16.mxu0 0
      %2523 = vmatpush1.bf16.msra.mxu0 0
      %2524 = vmatprep.subr.bf16.mxu0 0
      %2525 = vmatpush1.bf16.msra.mxu0 0
      %2526 = vmatprep.subr.bf16.mxu0 0
      %2527 = vmatpush1.bf16.msra.mxu0 0
      %2528 = vmatprep.subr.bf16.mxu0 0
      %2529 = vmatpush1.bf16.msra.mxu0 0
      %2530 = vmatprep.subr.bf16.mxu0 0
      %2531 = vmatpush1.bf16.msra.mxu0 0
      %2532 = vmatprep.subr.bf16.mxu0 0
      %2533 = vmatpush1.bf16.msra.mxu0 0
      %2534 = vmatprep.subr.bf16.mxu0 0
      %2535 = vmatpush1.bf16.msra.mxu0 0
      %2536 = vmatprep.mubr.bf16.mxu0 0
      %2537 = vmatmul.mubr.bf16.gmra.mrb[0].mxu0 %v2446
      %v2538 = vpop.f32.mrb[0].mxu0
      %v2539 = vadd.f32 %v2486, %v2538
      %v2540 = vpop.f32.mrb[0].mxu0
      %v2541 = vadd.f32 %v2488, %v2540
      %v2542 = vpop.f32.mrb[0].mxu0
      %v2543 = vadd.f32 %v2490, %v2542
      %v2544 = vpop.f32.mrb[0].mxu0
      %v2545 = vadd.f32 %v2492, %v2544
      %2546 = vmatprep.mubr.bf16.mxu0 0
      %2547 = vmatmul.mubr.bf16.gmra.mrb[0].mxu0 %v2449
      %v2548 = vpop.f32.mrb[0].mxu0
      %v2549 = vadd.f32 %v2496, %v2548
      %v2550 = vpop.f32.mrb[0].mxu0
      %v2551 = vadd.f32 %v2498, %v2550
      %v2552 = vpop.f32.mrb[0].mxu0
      %v2553 = vadd.f32 %v2500, %v2552
      %v2554 = vpop.f32.mrb[0].mxu0
      %v2555 = vadd.f32 %v2502, %v2554
      %2556 = vdwg.mxu0
      %v2557 = vmax.f32 %v2539, 0.0
      %v2558 = vmax.f32 %v2541, 0.0
      %v2559 = vmax.f32 %v2543, 0.0
      %v2560 = vmax.f32 %v2545, 0.0
      %v2561 = vmax.f32 %v2549, 0.0
      %v2562 = vmax.f32 %v2551, 0.0
      %v2563 = vmax.f32 %v2553, 0.0
      %v2564 = vmax.f32 %v2555, 0.0
      %2565 = vrot.lane.b32.xlu0 %v2557, 17
      %v2566 = vpop.permute.xlu0 %2565
      %2567 = vrot.lane.b32.xlu0 %v2559, 17
      %v2568 = vpop.permute.xlu0 %2567
      %2569 = vrot.lane.b32.xlu0 %v2561, 17
      %v2570 = vpop.permute.xlu0 %2569
      %2571 = vrot.lane.b32.xlu0 %v2563, 17
      %v2572 = vpop.permute.xlu0 %2571
      %2573 = vrot.lane.b32.xlu0 %v2558, 17
      %v2574 = vpop.permute.xlu0 %2573
      %2575 = vrot.lane.b32.xlu0 %v2560, 17
      %v2576 = vpop.permute.xlu0 %2575
      %2577 = vrot.lane.b32.xlu0 %v2562, 17
      %v2578 = vpop.permute.xlu0 %2577
      %2579 = vrot.lane.b32.xlu0 %v2564, 17
      %v2580 = vpop.permute.xlu0 %2579
      %v2581 = vsel %vm382, %v2566, %v2574
      %v2582 = vsel %vm382, %v2568, %v2576
      %v2583 = vsel %vm382, %v2570, %v2578
      %v2584 = vsel %vm382, %v2572, %v2580
      %v2585 = vsel %vm382, %v2574, %v2566
      %v2586 = vsel %vm382, %v2576, %v2568
      %v2587 = vsel %vm382, %v2578, %v2570
      %v2588 = vsel %vm382, %v2580, %v2572
      %v2589 = vmul.f32 %v2585, %v258
      %v2590 = vmul.f32 %v2581, %v262
      %v2591 = vmul.f32 %v2586, %v258
      %v2592 = vmul.f32 %v2582, %v262
      %v2593 = vmul.f32 %v2587, %v258
      %v2594 = vmul.f32 %v2583, %v262
      %v2595 = vmul.f32 %v2588, %v258
      %v2596 = vmul.f32 %v2584, %v262
      %v2597 = vpack.c.bf16 %v2591, %v2589
      %v2598 = vpack.c.bf16 %v2592, %v2590
      %v2599 = vpack.c.bf16 %v2595, %v2593
      %v2600 = vpack.c.bf16 %v2596, %v2594
      %2601 = vst [vmem:[#allocation2] sm:$0xff] %v2597
      %2602 = vst [vmem:[#allocation2 + $0x8] sm:$0xff] %v2598
      %2603 = vst [vmem:[#allocation2 + $0x10] sm:$0xff] %v2599
      %2604 = vst [vmem:[#allocation2 + $0x18] sm:$0xff] %v2600
      %2605 = vrot.lane.b32.xlu0 %v2557, 16
      %v2606 = vpop.permute.xlu0 %2605
      %2607 = vrot.lane.b32.xlu0 %v2559, 16
      %v2608 = vpop.permute.xlu0 %2607
      %2609 = vrot.lane.b32.xlu0 %v2561, 16
      %v2610 = vpop.permute.xlu0 %2609
      %2611 = vrot.lane.b32.xlu0 %v2563, 16
      %v2612 = vpop.permute.xlu0 %2611
      %2613 = vrot.lane.b32.xlu0 %v2558, 16
      %v2614 = vpop.permute.xlu0 %2613
      %2615 = vrot.lane.b32.xlu0 %v2560, 16
      %v2616 = vpop.permute.xlu0 %2615
      %2617 = vrot.lane.b32.xlu0 %v2562, 16
      %v2618 = vpop.permute.xlu0 %2617
      %2619 = vrot.lane.b32.xlu0 %v2564, 16
      %v2620 = vpop.permute.xlu0 %2619
      %v2621 = vsel %vm423, %v2606, %v2614
      %v2622 = vsel %vm423, %v2608, %v2616
      %v2623 = vsel %vm423, %v2610, %v2618
      %v2624 = vsel %vm423, %v2612, %v2620
      %v2625 = vsel %vm423, %v2614, %v2606
      %v2626 = vsel %vm423, %v2616, %v2608
      %v2627 = vsel %vm423, %v2618, %v2610
      %v2628 = vsel %vm423, %v2620, %v2612
      %v2629 = vmul.f32 %v2625, %v271
      %v2630 = vmul.f32 %v2621, %v275
      %v2631 = vmul.f32 %v2626, %v271
      %v2632 = vmul.f32 %v2622, %v275
      %v2633 = vmul.f32 %v2627, %v271
      %v2634 = vmul.f32 %v2623, %v275
      %v2635 = vmul.f32 %v2628, %v271
      %v2636 = vmul.f32 %v2624, %v275
      %v2637 = vpack.c.bf16 %v2631, %v2629
      %v2638 = vpack.c.bf16 %v2632, %v2630
      %v2639 = vpack.c.bf16 %v2635, %v2633
      %v2640 = vpack.c.bf16 %v2636, %v2634
      %2641 = vst [vmem:[#allocation2 + $0x20] sm:$0xff] %v2637
      %2642 = vst [vmem:[#allocation2 + $0x28] sm:$0xff] %v2638
      %2643 = vst [vmem:[#allocation2 + $0x30] sm:$0xff] %v2639
      %2644 = vst [vmem:[#allocation2 + $0x38] sm:$0xff] %v2640
      %2645 = vrot.lane.b32.xlu0 %v2557, 15
      %v2646 = vpop.permute.xlu0 %2645
      %2647 = vrot.lane.b32.xlu0 %v2559, 15
      %v2648 = vpop.permute.xlu0 %2647
      %2649 = vrot.lane.b32.xlu0 %v2561, 15
      %v2650 = vpop.permute.xlu0 %2649
      %2651 = vrot.lane.b32.xlu0 %v2563, 15
      %v2652 = vpop.permute.xlu0 %2651
      %2653 = vrot.lane.b32.xlu0 %v2558, 15
      %v2654 = vpop.permute.xlu0 %2653
      %2655 = vrot.lane.b32.xlu0 %v2560, 15
      %v2656 = vpop.permute.xlu0 %2655
      %2657 = vrot.lane.b32.xlu0 %v2562, 15
      %v2658 = vpop.permute.xlu0 %2657
      %2659 = vrot.lane.b32.xlu0 %v2564, 15
      %v2660 = vpop.permute.xlu0 %2659
      %v2661 = vsel %vm464, %v2646, %v2654
      %v2662 = vsel %vm464, %v2648, %v2656
      %v2663 = vsel %vm464, %v2650, %v2658
      %v2664 = vsel %vm464, %v2652, %v2660
      %v2665 = vsel %vm464, %v2654, %v2646
      %v2666 = vsel %vm464, %v2656, %v2648
      %v2667 = vsel %vm464, %v2658, %v2650
      %v2668 = vsel %vm464, %v2660, %v2652
      %v2669 = vmul.f32 %v2665, %v284
      %v2670 = vmul.f32 %v2661, %v288
      %v2671 = vmul.f32 %v2666, %v284
      %v2672 = vmul.f32 %v2662, %v288
      %v2673 = vmul.f32 %v2667, %v284
      %v2674 = vmul.f32 %v2663, %v288
      %v2675 = vmul.f32 %v2668, %v284
      %v2676 = vmul.f32 %v2664, %v288
      %v2677 = vpack.c.bf16 %v2671, %v2669
      %v2678 = vpack.c.bf16 %v2672, %v2670
      %v2679 = vpack.c.bf16 %v2675, %v2673
      %v2680 = vpack.c.bf16 %v2676, %v2674
      %2681 = vst [vmem:[#allocation2 + $0x40] sm:$0xff] %v2677
      %2682 = vst [vmem:[#allocation2 + $0x48] sm:$0xff] %v2678
      %2683 = vst [vmem:[#allocation2 + $0x50] sm:$0xff] %v2679
      %2684 = vst [vmem:[#allocation2 + $0x58] sm:$0xff] %v2680
      %2685 = vrot.lane.b32.xlu0 %v2557, 1
      %v2686 = vpop.permute.xlu0 %2685
      %2687 = vrot.lane.b32.xlu0 %v2559, 1
      %v2688 = vpop.permute.xlu0 %2687
      %2689 = vrot.lane.b32.xlu0 %v2561, 1
      %v2690 = vpop.permute.xlu0 %2689
      %2691 = vrot.lane.b32.xlu0 %v2563, 1
      %v2692 = vpop.permute.xlu0 %2691
      %2693 = vrot.lane.b32.xlu0 %v2558, 1
      %v2694 = vpop.permute.xlu0 %2693
      %2695 = vrot.lane.b32.xlu0 %v2560, 1
      %v2696 = vpop.permute.xlu0 %2695
      %2697 = vrot.lane.b32.xlu0 %v2562, 1
      %v2698 = vpop.permute.xlu0 %2697
      %2699 = vrot.lane.b32.xlu0 %v2564, 1
      %v2700 = vpop.permute.xlu0 %2699
      %v2701 = vsel %vm505, %v2686, %v2694
      %v2702 = vsel %vm505, %v2688, %v2696
      %v2703 = vsel %vm505, %v2690, %v2698
      %v2704 = vsel %vm505, %v2692, %v2700
      %v2705 = vsel %vm505, %v2694, %v2686
      %v2706 = vsel %vm505, %v2696, %v2688
      %v2707 = vsel %vm505, %v2698, %v2690
      %v2708 = vsel %vm505, %v2700, %v2692
      %v2709 = vmul.f32 %v2705, %v297
      %v2710 = vmul.f32 %v2701, %v301
      %v2711 = vmul.f32 %v2706, %v297
      %v2712 = vmul.f32 %v2702, %v301
      %v2713 = vmul.f32 %v2707, %v297
      %v2714 = vmul.f32 %v2703, %v301
      %v2715 = vmul.f32 %v2708, %v297
      %v2716 = vmul.f32 %v2704, %v301
      %v2717 = vpack.c.bf16 %v2711, %v2709
      %v2718 = vpack.c.bf16 %v2712, %v2710
      %v2719 = vpack.c.bf16 %v2715, %v2713
      %v2720 = vpack.c.bf16 %v2716, %v2714
      %2721 = vst [vmem:[#allocation2 + $0x60] sm:$0xff] %v2717
      %2722 = vst [vmem:[#allocation2 + $0x68] sm:$0xff] %v2718
      %2723 = vst [vmem:[#allocation2 + $0x70] sm:$0xff] %v2719
      %2724 = vst [vmem:[#allocation2 + $0x78] sm:$0xff] %v2720
      %v2725 = vpack.c.bf16 %v2559, %v2557
      %v2726 = vpack.c.bf16 %v2560, %v2558
      %v2727 = vpack.c.bf16 %v2563, %v2561
      %v2728 = vpack.c.bf16 %v2564, %v2562
      %2729 = vst [vmem:[#allocation2 + $0x80] sm:$0xff] %v2725
      %2730 = vst [vmem:[#allocation2 + $0x88] sm:$0xff] %v2726
      %2731 = vst [vmem:[#allocation2 + $0x90] sm:$0xff] %v2727
      %2732 = vst [vmem:[#allocation2 + $0x98] sm:$0xff] %v2728
      %2733 = vrot.lane.b32.xlu0 %v2557, 127
      %v2734 = vpop.permute.xlu0 %2733
      %2735 = vrot.lane.b32.xlu0 %v2559, 127
      %v2736 = vpop.permute.xlu0 %2735
      %2737 = vrot.lane.b32.xlu0 %v2561, 127
      %v2738 = vpop.permute.xlu0 %2737
      %2739 = vrot.lane.b32.xlu0 %v2563, 127
      %v2740 = vpop.permute.xlu0 %2739
      %2741 = vrot.lane.b32.xlu0 %v2558, 127
      %v2742 = vpop.permute.xlu0 %2741
      %2743 = vrot.lane.b32.xlu0 %v2560, 127
      %v2744 = vpop.permute.xlu0 %2743
      %2745 = vrot.lane.b32.xlu0 %v2562, 127
      %v2746 = vpop.permute.xlu0 %2745
      %2747 = vrot.lane.b32.xlu0 %v2564, 127
      %v2748 = vpop.permute.xlu0 %2747
      %v2749 = vsel %vm554, %v2734, %v2742
      %v2750 = vsel %vm554, %v2736, %v2744
      %v2751 = vsel %vm554, %v2738, %v2746
      %v2752 = vsel %vm554, %v2740, %v2748
      %v2753 = vsel %vm554, %v2742, %v2734
      %v2754 = vsel %vm554, %v2744, %v2736
      %v2755 = vsel %vm554, %v2746, %v2738
      %v2756 = vsel %vm554, %v2748, %v2740
      %v2757 = vmul.f32 %v2749, %v310
      %v2758 = vmul.f32 %v2753, %v314
      %v2759 = vmul.f32 %v2750, %v310
      %v2760 = vmul.f32 %v2754, %v314
      %v2761 = vmul.f32 %v2751, %v310
      %v2762 = vmul.f32 %v2755, %v314
      %v2763 = vmul.f32 %v2752, %v310
      %v2764 = vmul.f32 %v2756, %v314
      %v2765 = vpack.c.bf16 %v2759, %v2757
      %v2766 = vpack.c.bf16 %v2760, %v2758
      %v2767 = vpack.c.bf16 %v2763, %v2761
      %v2768 = vpack.c.bf16 %v2764, %v2762
      %2769 = vst [vmem:[#allocation2 + $0xa0] sm:$0xff] %v2765
      %2770 = vst [vmem:[#allocation2 + $0xa8] sm:$0xff] %v2766
      %2771 = vst [vmem:[#allocation2 + $0xb0] sm:$0xff] %v2767
      %2772 = vst [vmem:[#allocation2 + $0xb8] sm:$0xff] %v2768
      %2773 = vrot.lane.b32.xlu0 %v2557, 113
      %v2774 = vpop.permute.xlu0 %2773
      %2775 = vrot.lane.b32.xlu0 %v2559, 113
      %v2776 = vpop.permute.xlu0 %2775
      %2777 = vrot.lane.b32.xlu0 %v2561, 113
      %v2778 = vpop.permute.xlu0 %2777
      %2779 = vrot.lane.b32.xlu0 %v2563, 113
      %v2780 = vpop.permute.xlu0 %2779
      %2781 = vrot.lane.b32.xlu0 %v2558, 113
      %v2782 = vpop.permute.xlu0 %2781
      %2783 = vrot.lane.b32.xlu0 %v2560, 113
      %v2784 = vpop.permute.xlu0 %2783
      %2785 = vrot.lane.b32.xlu0 %v2562, 113
      %v2786 = vpop.permute.xlu0 %2785
      %2787 = vrot.lane.b32.xlu0 %v2564, 113
      %v2788 = vpop.permute.xlu0 %2787
      %v2789 = vsel %vm595, %v2774, %v2782
      %v2790 = vsel %vm595, %v2776, %v2784
      %v2791 = vsel %vm595, %v2778, %v2786
      %v2792 = vsel %vm595, %v2780, %v2788
      %v2793 = vsel %vm595, %v2782, %v2774
      %v2794 = vsel %vm595, %v2784, %v2776
      %v2795 = vsel %vm595, %v2786, %v2778
      %v2796 = vsel %vm595, %v2788, %v2780
      %v2797 = vmul.f32 %v2789, %v323
      %v2798 = vmul.f32 %v2793, %v327
      %v2799 = vmul.f32 %v2790, %v323
      %v2800 = vmul.f32 %v2794, %v327
      %v2801 = vmul.f32 %v2791, %v323
      %v2802 = vmul.f32 %v2795, %v327
      %v2803 = vmul.f32 %v2792, %v323
      %v2804 = vmul.f32 %v2796, %v327
      %v2805 = vpack.c.bf16 %v2799, %v2797
      %v2806 = vpack.c.bf16 %v2800, %v2798
      %v2807 = vpack.c.bf16 %v2803, %v2801
      %v2808 = vpack.c.bf16 %v2804, %v2802
      %2809 = vst [vmem:[#allocation2 + $0xc0] sm:$0xff] %v2805
      %2810 = vst [vmem:[#allocation2 + $0xc8] sm:$0xff] %v2806
      %2811 = vst [vmem:[#allocation2 + $0xd0] sm:$0xff] %v2807
      %2812 = vst [vmem:[#allocation2 + $0xd8] sm:$0xff] %v2808
      %2813 = vrot.lane.b32.xlu0 %v2557, 112
      %v2814 = vpop.permute.xlu0 %2813
      %2815 = vrot.lane.b32.xlu0 %v2559, 112
      %v2816 = vpop.permute.xlu0 %2815
      %2817 = vrot.lane.b32.xlu0 %v2561, 112
      %v2818 = vpop.permute.xlu0 %2817
      %2819 = vrot.lane.b32.xlu0 %v2563, 112
      %v2820 = vpop.permute.xlu0 %2819
      %2821 = vrot.lane.b32.xlu0 %v2558, 112
      %v2822 = vpop.permute.xlu0 %2821
      %2823 = vrot.lane.b32.xlu0 %v2560, 112
      %v2824 = vpop.permute.xlu0 %2823
      %2825 = vrot.lane.b32.xlu0 %v2562, 112
      %v2826 = vpop.permute.xlu0 %2825
      %2827 = vrot.lane.b32.xlu0 %v2564, 112
      %v2828 = vpop.permute.xlu0 %2827
      %v2829 = vsel %vm636, %v2814, %v2822
      %v2830 = vsel %vm636, %v2816, %v2824
      %v2831 = vsel %vm636, %v2818, %v2826
      %v2832 = vsel %vm636, %v2820, %v2828
      %v2833 = vsel %vm636, %v2822, %v2814
      %v2834 = vsel %vm636, %v2824, %v2816
      %v2835 = vsel %vm636, %v2826, %v2818
      %v2836 = vsel %vm636, %v2828, %v2820
      %v2837 = vmul.f32 %v2829, %v336
      %v2838 = vmul.f32 %v2833, %v340
      %v2839 = vmul.f32 %v2830, %v336
      %v2840 = vmul.f32 %v2834, %v340
      %v2841 = vmul.f32 %v2831, %v336
      %v2842 = vmul.f32 %v2835, %v340
      %v2843 = vmul.f32 %v2832, %v336
      %v2844 = vmul.f32 %v2836, %v340
      %v2845 = vpack.c.bf16 %v2839, %v2837
      %v2846 = vpack.c.bf16 %v2840, %v2838
      %v2847 = vpack.c.bf16 %v2843, %v2841
      %v2848 = vpack.c.bf16 %v2844, %v2842
      %2849 = vst [vmem:[#allocation2 + $0xe0] sm:$0xff] %v2845
      %2850 = vst [vmem:[#allocation2 + $0xe8] sm:$0xff] %v2846
      %2851 = vst [vmem:[#allocation2 + $0xf0] sm:$0xff] %v2847
      %2852 = vst [vmem:[#allocation2 + $0xf8] sm:$0xff] %v2848
      %2853 = vrot.lane.b32.xlu0 %v2557, 111
      %v2854 = vpop.permute.xlu0 %2853
      %2855 = vrot.lane.b32.xlu0 %v2559, 111
      %v2856 = vpop.permute.xlu0 %2855
      %2857 = vrot.lane.b32.xlu0 %v2561, 111
      %v2858 = vpop.permute.xlu0 %2857
      %2859 = vrot.lane.b32.xlu0 %v2563, 111
      %v2860 = vpop.permute.xlu0 %2859
      %2861 = vrot.lane.b32.xlu0 %v2558, 111
      %v2862 = vpop.permute.xlu0 %2861
      %2863 = vrot.lane.b32.xlu0 %v2560, 111
      %v2864 = vpop.permute.xlu0 %2863
      %2865 = vrot.lane.b32.xlu0 %v2562, 111
      %v2866 = vpop.permute.xlu0 %2865
      %2867 = vrot.lane.b32.xlu0 %v2564, 111
      %v2868 = vpop.permute.xlu0 %2867
      %v2869 = vsel %vm677, %v2854, %v2862
      %v2870 = vsel %vm677, %v2856, %v2864
      %v2871 = vsel %vm677, %v2858, %v2866
      %v2872 = vsel %vm677, %v2860, %v2868
      %v2873 = vsel %vm677, %v2862, %v2854
      %v2874 = vsel %vm677, %v2864, %v2856
      %v2875 = vsel %vm677, %v2866, %v2858
      %v2876 = vsel %vm677, %v2868, %v2860
      %v2877 = vmul.f32 %v2869, %v349
      %v2878 = vmul.f32 %v2873, %v353
      %v2879 = vmul.f32 %v2870, %v349
      %v2880 = vmul.f32 %v2874, %v353
      %v2881 = vmul.f32 %v2871, %v349
      %v2882 = vmul.f32 %v2875, %v353
      %v2883 = vmul.f32 %v2872, %v349
      %v2884 = vmul.f32 %v2876, %v353
      %v2885 = vpack.c.bf16 %v2879, %v2877
      %v2886 = vpack.c.bf16 %v2880, %v2878
      %v2887 = vpack.c.bf16 %v2883, %v2881
      %v2888 = vpack.c.bf16 %v2884, %v2882
      %2889 = vst [vmem:[#allocation2 + $0x100] sm:$0xff] %v2885
      %2890 = vst [vmem:[#allocation2 + $0x108] sm:$0xff] %v2886
      %2891 = vst [vmem:[#allocation2 + $0x110] sm:$0xff] %v2887
      %2892 = vst [vmem:[#allocation2 + $0x118] sm:$0xff] %v2888
      %s2893 = scalar_lea.vmem %s1, 192
      %v2894 = vld [vmem:[%s2893] sm:$0xff]
      %v2895 = vld [vmem:[%s2893 + $0x8] sm:$0xf]
      %v2896 = vld [vmem:[%s2893 + $0xc] sm:$0xff]
      %v2897 = vld [vmem:[%s2893 + $0x14] sm:$0xf]
      %v2898 = vld [vmem:[%s2893 + $0x18] sm:$0xff]
      %v2899 = vld [vmem:[%s2893 + $0x20] sm:$0xf]
      %v2900 = vld [vmem:[%s2893 + $0x24] sm:$0xff]
      %v2901 = vld [vmem:[%s2893 + $0x2c] sm:$0xf]
      %v2902 = vld [vmem:[#allocation2] sm:$0xff]
      %v2903 = vld [vmem:[#allocation2 + $0x8] sm:$0xff]
      %v2904 = vld [vmem:[#allocation2 + $0x10] sm:$0xff]
      %v2905 = vld [vmem:[#allocation2 + $0x18] sm:$0xff]
      %v2906 = vld [vmem:[#allocation2 + $0x20] sm:$0xff]
      %v2907 = vld [vmem:[#allocation2 + $0x28] sm:$0xff]
      %v2908 = vld [vmem:[#allocation2 + $0x30] sm:$0xff]
      %v2909 = vld [vmem:[#allocation2 + $0x38] sm:$0xff]
      %v2910 = vld [vmem:[#allocation2 + $0x40] sm:$0xff]
      %v2911 = vld [vmem:[#allocation2 + $0x48] sm:$0xff]
      %v2912 = vld [vmem:[#allocation2 + $0x50] sm:$0xff]
      %v2913 = vld [vmem:[#allocation2 + $0x58] sm:$0xff]
      %v2914 = vld [vmem:[#allocation2 + $0x60] sm:$0xff]
      %v2915 = vld [vmem:[#allocation2 + $0x68] sm:$0xff]
      %v2916 = vld [vmem:[#allocation2 + $0x70] sm:$0xff]
      %v2917 = vld [vmem:[#allocation2 + $0x78] sm:$0xff]
      %v2918 = vld [vmem:[#allocation2 + $0x80] sm:$0xff]
      %v2919 = vld [vmem:[#allocation2 + $0x88] sm:$0xff]
      %v2920 = vld [vmem:[#allocation2 + $0x90] sm:$0xff]
      %v2921 = vld [vmem:[#allocation2 + $0x98] sm:$0xff]
      %v2922 = vld [vmem:[#allocation2 + $0xa0] sm:$0xff]
      %v2923 = vld [vmem:[#allocation2 + $0xa8] sm:$0xff]
      %v2924 = vld [vmem:[#allocation2 + $0xb0] sm:$0xff]
      %v2925 = vld [vmem:[#allocation2 + $0xb8] sm:$0xff]
      %v2926 = vld [vmem:[#allocation2 + $0xc0] sm:$0xff]
      %v2927 = vld [vmem:[#allocation2 + $0xc8] sm:$0xff]
      %v2928 = vld [vmem:[#allocation2 + $0xd0] sm:$0xff]
      %v2929 = vld [vmem:[#allocation2 + $0xd8] sm:$0xff]
      %v2930 = vld [vmem:[#allocation2 + $0xe0] sm:$0xff]
      %v2931 = vld [vmem:[#allocation2 + $0xe8] sm:$0xff]
      %v2932 = vld [vmem:[#allocation2 + $0xf0] sm:$0xff]
      %v2933 = vld [vmem:[#allocation2 + $0xf8] sm:$0xff]
      %v2934 = vld [vmem:[#allocation2 + $0x100] sm:$0xff]
      %v2935 = vld [vmem:[#allocation2 + $0x108] sm:$0xff]
      %v2936 = vld [vmem:[#allocation2 + $0x110] sm:$0xff]
      %v2937 = vld [vmem:[#allocation2 + $0x118] sm:$0xff]
      %s2938 = scalar_lea.vmem %s2, 128
      %v2939 = vld [vmem:[%s2938] sm:$0xff]
      %v2940 = vld [vmem:[%s2938 + $0x8] sm:$0xff]
      %v2941 = vld [vmem:[%s2938 + $0x10] sm:$0xff]
      %v2942 = vld [vmem:[%s2938 + $0x18] sm:$0xff]
      %2944 = vset.pattern.permute.xlu0 0
      %2945 = vperm.xlu0 %2944, %v2939
      %v2946 = vpop.permute.xlu0 %2945
      %2949 = vset.pattern.permute.xlu0 0
      %2950 = vperm.xlu0 %2949, %v2940
      %v2951 = vpop.permute.xlu0 %2950
      %2954 = vset.pattern.permute.xlu0 0
      %2955 = vperm.xlu0 %2954, %v2941
      %v2956 = vpop.permute.xlu0 %2955
      %2959 = vset.pattern.permute.xlu0 0
      %2960 = vperm.xlu0 %2959, %v2942
      %v2961 = vpop.permute.xlu0 %2960
      %v2971 = vunpack.c.l.b16 %v2894
      %v2972 = vunpack.c.h.b16 %v2894
      %v2973 = vunpack.c.l.b16 %v2895
      %v2974 = vunpack.c.l.b16 %v2896
      %v2975 = vunpack.c.h.b16 %v2896
      %v2976 = vunpack.c.l.b16 %v2897
      %v2977 = vunpack.c.l.b16 %v2898
      %v2978 = vunpack.c.h.b16 %v2898
      %v2979 = vunpack.c.l.b16 %v2899
      %v2980 = vunpack.c.l.b16 %v2900
      %v2981 = vunpack.c.h.b16 %v2900
      %v2982 = vunpack.c.l.b16 %v2901
      %v2983 = vpack.c.b16 %v2974, %v2971
      %v2984 = vpack.c.b16 %v2975, %v2972
      %v2985 = vpack.c.b16 %v2976, %v2973
      %v2986 = vpack.c.b16 %v2980, %v2977
      %v2987 = vpack.c.b16 %v2981, %v2978
      %v2988 = vpack.c.b16 %v2982, %v2979
      %v2994 = vsel %vm800, %v2985, 0
      %v2997 = vsel %vm800, %v2988, 0
      %2999 = vmatprep.subr.bf16.mxu0 %v2903
      %3000 = vmatpush1.bf16.msra.mxu0 %v2902
      %3001 = vmatprep.subr.bf16.mxu0 %v2905
      %3002 = vmatpush1.bf16.msra.mxu0 %v2904
      %3003 = vmatprep.subr.bf16.mxu0 %v2907
      %3004 = vmatpush1.bf16.msra.mxu0 %v2906
      %3005 = vmatprep.subr.bf16.mxu0 %v2909
      %3006 = vmatpush1.bf16.msra.mxu0 %v2908
      %3007 = vmatprep.subr.bf16.mxu0 %v2911
      %3008 = vmatpush1.bf16.msra.mxu0 %v2910
      %3009 = vmatprep.subr.bf16.mxu0 %v2913
      %3010 = vmatpush1.bf16.msra.mxu0 %v2912
      %3011 = vmatprep.subr.bf16.mxu0 %v2915
      %3012 = vmatpush1.bf16.msra.mxu0 %v2914
      %3013 = vmatprep.subr.bf16.mxu0 %v2917
      %3014 = vmatpush1.bf16.msra.mxu0 %v2916
      %3015 = vmatprep.subr.bf16.mxu0 %v2919
      %3016 = vmatpush1.bf16.msra.mxu0 %v2918
      %3017 = vmatprep.subr.bf16.mxu0 %v2921
      %3018 = vmatpush1.bf16.msra.mxu0 %v2920
      %3019 = vmatprep.subr.bf16.mxu0 %v2923
      %3020 = vmatpush1.bf16.msra.mxu0 %v2922
      %3021 = vmatprep.subr.bf16.mxu0 %v2925
      %3022 = vmatpush1.bf16.msra.mxu0 %v2924
      %3023 = vmatprep.subr.bf16.mxu0 %v2927
      %3024 = vmatpush1.bf16.msra.mxu0 %v2926
      %3025 = vmatprep.subr.bf16.mxu0 %v2929
      %3026 = vmatpush1.bf16.msra.mxu0 %v2928
      %3027 = vmatprep.subr.bf16.mxu0 %v2931
      %3028 = vmatpush1.bf16.msra.mxu0 %v2930
      %3029 = vmatprep.subr.bf16.mxu0 %v2933
      %3030 = vmatpush1.bf16.msra.mxu0 %v2932
      %3031 = vmatprep.mubr.bf16.mxu0 %v2984
      %3032 = vmatmul.mubr.bf16.gmra.mrb[0].mxu0 %v2983
      %v3033 = vpop.f32.mrb[0].mxu0
      %v3034 = vadd.f32 %v2946, %v3033
      %v3035 = vpop.f32.mrb[0].mxu0
      %v3036 = vadd.f32 %v2946, %v3035
      %v3037 = vpop.f32.mrb[0].mxu0
      %v3038 = vadd.f32 %v2951, %v3037
      %v3039 = vpop.f32.mrb[0].mxu0
      %v3040 = vadd.f32 %v2951, %v3039
      %3041 = vmatprep.mubr.bf16.mxu0 %v2987
      %3042 = vmatmul.mubr.bf16.gmra.mrb[0].mxu0 %v2986
      %v3043 = vpop.f32.mrb[0].mxu0
      %v3044 = vadd.f32 %v2956, %v3043
      %v3045 = vpop.f32.mrb[0].mxu0
      %v3046 = vadd.f32 %v2956, %v3045
      %v3047 = vpop.f32.mrb[0].mxu0
      %v3048 = vadd.f32 %v2961, %v3047
      %v3049 = vpop.f32.mrb[0].mxu0
      %v3050 = vadd.f32 %v2961, %v3049
      %3051 = vdwg.mxu0
      %3052 = vmatprep.subr.bf16.mxu0 %v2935
      %3053 = vmatpush1.bf16.msra.mxu0 %v2934
      %3054 = vmatprep.subr.bf16.mxu0 %v2937
      %3055 = vmatpush1.bf16.msra.mxu0 %v2936
      %3056 = vmatprep.subr.bf16.mxu0 0
      %3057 = vmatpush1.bf16.msra.mxu0 0
      %3058 = vmatprep.subr.bf16.mxu0 0
      %3059 = vmatpush1.bf16.msra.mxu0 0
      %3060 = vmatprep.subr.bf16.mxu0 0
      %3061 = vmatpush1.bf16.msra.mxu0 0
      %3062 = vmatprep.subr.bf16.mxu0 0
      %3063 = vmatpush1.bf16.msra.mxu0 0
      %3064 = vmatprep.subr.bf16.mxu0 0
      %3065 = vmatpush1.bf16.msra.mxu0 0
      %3066 = vmatprep.subr.bf16.mxu0 0
      %3067 = vmatpush1.bf16.msra.mxu0 0
      %3068 = vmatprep.subr.bf16.mxu0 0
      %3069 = vmatpush1.bf16.msra.mxu0 0
      %3070 = vmatprep.subr.bf16.mxu0 0
      %3071 = vmatpush1.bf16.msra.mxu0 0
      %3072 = vmatprep.subr.bf16.mxu0 0
      %3073 = vmatpush1.bf16.msra.mxu0 0
      %3074 = vmatprep.subr.bf16.mxu0 0
      %3075 = vmatpush1.bf16.msra.mxu0 0
      %3076 = vmatprep.subr.bf16.mxu0 0
      %3077 = vmatpush1.bf16.msra.mxu0 0
      %3078 = vmatprep.subr.bf16.mxu0 0
      %3079 = vmatpush1.bf16.msra.mxu0 0
      %3080 = vmatprep.subr.bf16.mxu0 0
      %3081 = vmatpush1.bf16.msra.mxu0 0
      %3082 = vmatprep.subr.bf16.mxu0 0
      %3083 = vmatpush1.bf16.msra.mxu0 0
      %3084 = vmatprep.mubr.bf16.mxu0 0
      %3085 = vmatmul.mubr.bf16.gmra.mrb[0].mxu0 %v2994
      %v3086 = vpop.f32.mrb[0].mxu0
      %v3087 = vadd.f32 %v3034, %v3086
      %v3088 = vpop.f32.mrb[0].mxu0
      %v3089 = vadd.f32 %v3036, %v3088
      %v3090 = vpop.f32.mrb[0].mxu0
      %v3091 = vadd.f32 %v3038, %v3090
      %v3092 = vpop.f32.mrb[0].mxu0
      %v3093 = vadd.f32 %v3040, %v3092
      %3094 = vmatprep.mubr.bf16.mxu0 0
      %3095 = vmatmul.mubr.bf16.gmra.mrb[0].mxu0 %v2997
      %v3096 = vpop.f32.mrb[0].mxu0
      %v3097 = vadd.f32 %v3044, %v3096
      %v3098 = vpop.f32.mrb[0].mxu0
      %v3099 = vadd.f32 %v3046, %v3098
      %v3100 = vpop.f32.mrb[0].mxu0
      %v3101 = vadd.f32 %v3048, %v3100
      %v3102 = vpop.f32.mrb[0].mxu0
      %v3103 = vadd.f32 %v3050, %v3102
      %3104 = vdwg.mxu0
      %v3105 = vmax.f32 %v3087, 0.0
      %v3106 = vmax.f32 %v3089, 0.0
      %v3107 = vmax.f32 %v3091, 0.0
      %v3108 = vmax.f32 %v3093, 0.0
      %v3109 = vmax.f32 %v3097, 0.0
      %v3110 = vmax.f32 %v3099, 0.0
      %v3111 = vmax.f32 %v3101, 0.0
      %v3112 = vmax.f32 %v3103, 0.0
      %v3113 = vld [vmem:[%s3] sm:$0x3]
      %v3114 = vpack.c.bf16 %v3107, %v3105
      %v3115 = vpack.c.bf16 %v3108, %v3106
      %v3116 = vpack.c.bf16 %v3111, %v3109
      %v3117 = vpack.c.bf16 %v3112, %v3110
      %v3118 = vld [vmem:[%s4] sm:$0x7]
      %3120 = vset.pattern.permute.xlu0 0
      %3121 = vperm.xlu0 %3120, %v3118
      %v3122 = vpop.permute.xlu0 %3121
      %v3125 = vsel %vm800, %v3113, 0
      %3127 = vmatprep.subr.bf16.mxu0 %v3115
      %3128 = vmatpush1.bf16.msra.mxu0 %v3114
      %3129 = vmatprep.subr.bf16.mxu0 %v3117
      %3130 = vmatpush1.bf16.msra.mxu0 %v3116
      %3131 = vmatprep.subr.bf16.mxu0 0
      %3132 = vmatpush1.bf16.msra.mxu0 0
      %3133 = vmatprep.subr.bf16.mxu0 0
      %3134 = vmatpush1.bf16.msra.mxu0 0
      %3135 = vmatprep.subr.bf16.mxu0 0
      %3136 = vmatpush1.bf16.msra.mxu0 0
      %3137 = vmatprep.subr.bf16.mxu0 0
      %3138 = vmatpush1.bf16.msra.mxu0 0
      %3139 = vmatprep.subr.bf16.mxu0 0
      %3140 = vmatpush1.bf16.msra.mxu0 0
      %3141 = vmatprep.subr.bf16.mxu0 0
      %3142 = vmatpush1.bf16.msra.mxu0 0
      %3143 = vmatprep.subr.bf16.mxu0 0
      %3144 = vmatpush1.bf16.msra.mxu0 0
      %3145 = vmatprep.subr.bf16.mxu0 0
      %3146 = vmatpush1.bf16.msra.mxu0 0
      %3147 = vmatprep.subr.bf16.mxu0 0
      %3148 = vmatpush1.bf16.msra.mxu0 0
      %3149 = vmatprep.subr.bf16.mxu0 0
      %3150 = vmatpush1.bf16.msra.mxu0 0
      %3151 = vmatprep.subr.bf16.mxu0 0
      %3152 = vmatpush1.bf16.msra.mxu0 0
      %3153 = vmatprep.subr.bf16.mxu0 0
      %3154 = vmatpush1.bf16.msra.mxu0 0
      %3155 = vmatprep.subr.bf16.mxu0 0
      %3156 = vmatpush1.bf16.msra.mxu0 0
      %3157 = vmatprep.subr.bf16.mxu0 0
      %3158 = vmatpush1.bf16.msra.mxu0 0
      %3159 = vmatprep.mubr.bf16.mxu0 0
      %3160 = vmatmul.mubr.bf16.gmra.mrb[0].mxu0 %v3125
      %v3161 = vpop.f32.mrb[0].mxu0
      %v3162 = vadd.f32 %v3122, %v3161
      %v3163 = vpop.f32.mrb[0].mxu0
      %v3164 = vadd.f32 %v3122, %v3163
      %v3165 = vpop.f32.mrb[0].mxu0
      %v3166 = vpop.f32.mrb[0].mxu0
      %3167 = vdwg.mxu0
      %v3170 = vcombine.low %v3162, %v3164
      %3172 = vst [vmem:[%s251] sm:$0x77] %v3170
      %p3173 = scmp.lt.s32.totalorder %s17, 1
      %s3174 = scalar_select %p3173, %s17, 1
      %s3175 = smul.addr %s3174, 2
      %s3176 = smul.addr %s3175, 4
      %s3177 = scalar_lea.vmem %s6, %s3176
      // Predicated region
      $region45: #{wakey_fcn_forward.1} parent=43 // pred_check
        %p3178 = pneg %p166
      $region46: #{wakey_fcn_forward.1} parent=43 // pred_check_branch
        %3180 = sbr.rel (%p3178) target = $region48
      $region47: #{wakey_fcn_forward.1} parent=43 // pred_region
        _
      $region48: #{wakey_fcn_forward.1} parent=43 // pred_fallthru
        _
    $region44: #{wakey_fcn_forward.1} parent=5 // pred_fallthru
      _
    %p3181 = scmp.le.s32.totalorder 2, %s12
    // Predicated region
    $region49: #{wakey_fcn_forward.1} parent=5 // pred_check
      %p3182 = pneg %p3181
    $region50: #{wakey_fcn_forward.1} parent=5 // pred_check_branch
      %3184 = sbr.rel (%p3182) target = $region52
    $region51: #{wakey_fcn_forward.1} parent=5 // pred_region
      %s3185 = ssub.s32 %s12, 2
      // Predicated region
      $region53: #{wakey_fcn_forward.1} parent=51 // pred_check
        %p3186 = pneg %p172
      $region54: #{wakey_fcn_forward.1} parent=51 // pred_check_branch
        %3188 = sbr.rel (%p3186) target = $region56
      $region55: #{wakey_fcn_forward.1} parent=51 // pred_region
        %p3189 = scmp.lt.s32.totalorder %s18, 1
        %s3190 = scalar_select %p3189, %s18, 1
        %s3191 = smul.addr %s3190, 2
        %s3192 = smul.addr %s3191, 4
        %s3193 = scalar_lea.vmem %s6, %s3192
      $region56: #{wakey_fcn_forward.1} parent=51 // pred_fallthru
        _
    $region52: #{wakey_fcn_forward.1} parent=5 // pred_fallthru
      _
  $region6: #{wakey_fcn_forward.1} parent=0 // loop_footer
    %s16 = sadd.s32 1, %s12
  $region7: #{wakey_fcn_forward.1} parent=0 // loop_footer_branch
    %11 = sbr.rel target = $region3
  $region8: #{wakey_fcn_forward.1} parent=0 // loop_exit
    _

</llo_original>
